<compile_context>
chip_gen: v7x
topology: tpu7x:2x2x1
jax: 0.10.0
libtpu: 0.0.40
codegen_flags: <defaults>
</compile_context>

<pallas_src>
import numpy as np
import jax
import jax.numpy as jnp
from jax.experimental import pallas as pl
from jax.experimental.pallas import tpu as pltpu

W_PAD = 128   # padded feature width (lane dim)
SUB = 128     # MXU sub-tile rows (kept at 128 so the f32 carry is 16 vregs)
TB = 256      # rows per grid step (= n_sub * SUB)


# ----------------------------------------------------------------------------
# Shape bookkeeping mirroring the PyTorch module __init__ (glue, plain Python)
# ----------------------------------------------------------------------------
def _prodnet_dims(in_N, num_L):
    """(in, out) dims of each Linear of one ProdNet, plus its out_N."""
    if in_N % 2 == 0:
        mid_N = 6 * in_N
        out_N = in_N // 2
    else:
        mid_N = 6 * (in_N - 1) + 2
        out_N = in_N // 2 + 1
    dims = [(in_N, mid_N)]
    for _ in range(1, num_L):
        dims.append((mid_N, mid_N))
    dims.append((mid_N, out_N))
    return dims, out_N


def bitree_layer_dims(in_N, num_L):
    """All Linear layers of BiTreeProd in forward order + per-layer ReLU flag."""
    prod_in = [in_N]
    if in_N > 1:
        _, cur = _prodnet_dims(in_N, num_L)
        while cur > 1:
            prod_in.append(cur)
            _, cur = _prodnet_dims(cur, num_L)

    layer_dims, relu_flags = [], []
    for pin in prod_in:
        dims, _ = _prodnet_dims(pin, num_L)
        for j, d in enumerate(dims):
            layer_dims.append(d)
            # ProdNet applies .clamp(min=0) after every layer except its last
            relu_flags.append(1 if j < len(dims) - 1 else 0)
    return layer_dims, relu_flags


def init_params(layer_dims, key):
    """Deterministic init matching torch.nn.Linear default (uniform +-1/sqrt(fan_in))."""
    ws, bs = [], []
    for (fi, fo) in layer_dims:
        key, k1, k2 = jax.random.split(key, 3)
        bound = 1.0 / np.sqrt(fi)
        # stored as (in, out) == torch weight.T so forward is h @ w + b
        ws.append(jax.random.uniform(k1, (fi, fo), jnp.float32, -bound, bound))
        bs.append(jax.random.uniform(k2, (fo,), jnp.float32, -bound, bound))
    return ws, bs


def pack_params(ws, bs, weight_dtype=jnp.float32):
    """Zero-pad every layer to (W_PAD, W_PAD) and stack.  Biases stay f32."""
    L = len(ws)
    Wt = np.zeros((L, W_PAD, W_PAD), np.float32)
    Bt = np.zeros((L, 1, W_PAD), np.float32)
    for l, (w, b) in enumerate(zip(ws, bs)):
        fi, fo = w.shape
        assert fi <= W_PAD and fo <= W_PAD, "increase W_PAD for this config"
        Wt[l, :fi, :fo] = np.asarray(w)
        Bt[l, 0, :fo] = np.asarray(b)
    return jnp.asarray(Wt, dtype=weight_dtype), jnp.asarray(Bt, dtype=jnp.float32)


# ----------------------------------------------------------------------------
# Pallas kernel: fully-unrolled fused MLP chain, activation carried in vregs
# ----------------------------------------------------------------------------
def make_mlp_chain_kernel(relu_flags, n_sub, compute_dtype):
    """relu_flags: tuple of compile-time per-layer ReLU flags (closure)."""
    L = len(relu_flags)

    def kernel(x_ref, w_ref, b_ref, o_ref):
        # Outer: 128-row sub-tiles of the batch block (static Python unroll).
        # Inner: all L layers, also statically unrolled -> LLO sees the whole
        # chain; the activation `h` never touches VMEM between layers.
        for s in range(n_sub):
            r0 = s * SUB
            h = x_ref[r0:r0 + SUB, :].astype(jnp.float32)
            for l in range(L):
                y = jnp.dot(h.astype(compute_dtype), w_ref[l],
                            preferred_element_type=jnp.float32)
                y = y + b_ref[l]                  # bias/ReLU stay f32 (v5e VPU)
                if relu_flags[l]:
                    y = jnp.maximum(y, 0.0)
                h = y
            o_ref[r0:r0 + SUB, :] = h.astype(jnp.float32)

    return kernel


def bitree_prod_forward(x, Wt, Bt, relu_flags, out_dim, *, block_rows=TB):
    N, in_N = x.shape
    L = Wt.shape[0]
    assert block_rows % SUB == 0
    n_sub = block_rows // SUB

    # Pad only the feature (lane) dim; ragged batch tiles handled by the grid.
    xp = jnp.pad(x.astype(jnp.float32), ((0, 0), (0, W_PAD - in_N)))

    grid = (pl.cdiv(N, block_rows),)
    kernel = make_mlp_chain_kernel(tuple(int(r) for r in relu_flags),
                                   n_sub, Wt.dtype)

    w_bytes = int(np.prod(Wt.shape)) * int(jnp.dtype(Wt.dtype).itemsize)
    cost = pl.CostEstimate(
        flops=2 * grid[0] * L * block_rows * W_PAD * W_PAD,
        transcendentals=0,
        bytes_accessed=xp.size * 4 + N * W_PAD * 4 + w_bytes + Bt.size * 4,
    )

    out = pl.pallas_call(
        kernel,
        out_shape=jax.ShapeDtypeStruct((N, W_PAD), jnp.float32),
        grid_spec=pltpu.PrefetchScalarGridSpec(
            num_scalar_prefetch=0,
            grid=grid,
            in_specs=[
                pl.BlockSpec((block_rows, W_PAD), lambda i: (i, 0)),
                pl.BlockSpec((L, W_PAD, W_PAD), lambda i: (0, 0, 0)),
                pl.BlockSpec((L, 1, W_PAD), lambda i: (0, 0, 0)),
            ],
            out_specs=pl.BlockSpec((block_rows, W_PAD), lambda i: (i, 0)),
        ),
        compiler_params=pltpu.CompilerParams(
            dimension_semantics=("parallel",)),
        cost_estimate=cost,
    )(xp, Wt, Bt)

    return out[:, :out_dim]


# ----------------------------------------------------------------------------
# Pure-JAX reference (same math, no Pallas) for a correctness check
# ----------------------------------------------------------------------------
def ref_forward(x, ws, bs, relu_flags):
    h = x.astype(jnp.float32)
    for w, b, r in zip(ws, bs, relu_flags):
        h = h @ w + b
        if r:
            h = jnp.maximum(h, 0.0)
    return h


if __name__ == "__main__":
    # BiTreeProd(in_N=4, num_L=3, min_val=-1.0, max_val=1.0)
    # min_val / max_val only affect poly_init (not the forward graph), so they
    # do not enter the kernel; we use deterministic random parameters.
    # TODO(synk): poly_init / xavier_init / set_double are init-only utilities
    # with no forward-pass role; not translated.
    in_N, num_L = 4, 3
    N = 512   # 2 grid tiles of 256 rows -> both v7x TensorCores get work

    layer_dims, relu_flags = bitree_layer_dims(in_N, num_L)
    out_dim = layer_dims[-1][1]   # == 1 (binary product tree reduces to 1 output)

    key = jax.random.PRNGKey(0)
    key, kx = jax.random.split(key)
    x = jax.random.uniform(kx, (N, in_N), jnp.float32, -1.0, 1.0)
    ws, bs = init_params(layer_dims, key)

    y_ref = jax.block_until_ready(ref_forward(x, ws, bs, relu_flags))

    # f32 weight path (exact vs. reference).
    Wt32, Bt = pack_params(ws, bs, jnp.float32)
    y32 = jax.block_until_ready(
        bitree_prod_forward(x, Wt32, Bt, relu_flags, out_dim))
    assert y32.shape == (N, out_dim), y32.shape
    if not np.allclose(np.asarray(y32), np.asarray(y_ref), rtol=1e-5, atol=1e-5):
        raise AssertionError("Pallas f32 output does not match JAX reference")

    # bf16 weight path (matches v6e/v7x bf16-native MXU; f32 accumulate/bias).
    Wt16, Bt16 = pack_params(ws, bs, jnp.bfloat16)
    y16 = jax.block_until_ready(
        bitree_prod_forward(x, Wt16, Bt16, relu_flags, out_dim))
    if not np.allclose(np.asarray(y16), np.asarray(y_ref), rtol=1e-1, atol=2e-1):
        raise AssertionError("Pallas bf16 output diverges from JAX reference")

    print("KERNEL_OK")
</pallas_src>

<mosaic_0001>
module attributes {stable_mosaic.version = 11 : i64} {
  func.func @kernel(%arg0: i32, %arg1: memref<256x128xf32, #tpu.memory_space<vmem>>, %arg2: memref<8x128x128xf32, #tpu.memory_space<vmem>>, %arg3: memref<8x1x128xf32, #tpu.memory_space<vmem>>, %arg4: memref<256x128xf32, #tpu.memory_space<vmem>>) attributes {dimension_semantics = [#tpu.dimension_semantics<parallel>], iteration_bounds = array<i64: 2>, scalar_prefetch = 0 : i64, scratch_operands = 0 : i64, tpu.core_type = #tpu.core_type<tc>, window_params = [{transform_indices = @transform_0, window_bounds = array<i64: 256, 128>}, {pipeline_mode = #tpu.pipeline_mode<synchronous>, transform_indices = @transform_1, window_bounds = array<i64: 8, 128, 128>}, {pipeline_mode = #tpu.pipeline_mode<synchronous>, transform_indices = @transform_2, window_bounds = array<i64: 8, 1, 128>}, {transform_indices = @transform_3, window_bounds = array<i64: 256, 128>}]} {
    %c0 = arith.constant 0 : index
    %c0_0 = arith.constant 0 : index
    %0 = vector.load %arg1[%c0, %c0_0] : memref<256x128xf32, #tpu.memory_space<vmem>>, vector<128x128xf32>
    %c0_1 = arith.constant 0 : index
    %c0_2 = arith.constant 0 : index
    %c0_3 = arith.constant 0 : index
    %1 = vector.load %arg2[%c0_1, %c0_2, %c0_3] : memref<8x128x128xf32, #tpu.memory_space<vmem>>, vector<1x128x128xf32>
    %2 = vector.shape_cast %1 : vector<1x128x128xf32> to vector<128x128xf32>
    %cst = arith.constant dense<0.000000e+00> : vector<128x128xf32>
    %3 = tpu.matmul %0, %2, %cst {dimension_numbers = #tpu.dot_dimension_numbers<[1], [0], [0], [1], [0, 0, 1, 1], [], []>} : vector<128x128xf32>, vector<128x128xf32>, vector<128x128xf32> -> vector<128x128xf32>
    %c0_4 = arith.constant 0 : index
    %c0_5 = arith.constant 0 : index
    %c0_6 = arith.constant 0 : index
    %4 = vector.load %arg3[%c0_4, %c0_5, %c0_6] : memref<8x1x128xf32, #tpu.memory_space<vmem>>, vector<1x1x128xf32>
    %5 = vector.shape_cast %4 : vector<1x1x128xf32> to vector<1x128xf32>
    %6 = vector.broadcast %5 : vector<1x128xf32> to vector<128x128xf32>
    %7 = arith.addf %3, %6 : vector<128x128xf32>
    %cst_7 = arith.constant 0.000000e+00 : f32
    %8 = vector.broadcast %cst_7 : f32 to vector<128x128xf32>
    %9 = arith.maximumf %7, %8 : vector<128x128xf32>
    %c1 = arith.constant 1 : index
    %c0_8 = arith.constant 0 : index
    %c0_9 = arith.constant 0 : index
    %10 = vector.load %arg2[%c1, %c0_8, %c0_9] : memref<8x128x128xf32, #tpu.memory_space<vmem>>, vector<1x128x128xf32>
    %11 = vector.shape_cast %10 : vector<1x128x128xf32> to vector<128x128xf32>
    %cst_10 = arith.constant dense<0.000000e+00> : vector<128x128xf32>
    %12 = tpu.matmul %9, %11, %cst_10 {dimension_numbers = #tpu.dot_dimension_numbers<[1], [0], [0], [1], [0, 0, 1, 1], [], []>} : vector<128x128xf32>, vector<128x128xf32>, vector<128x128xf32> -> vector<128x128xf32>
    %c1_11 = arith.constant 1 : index
    %c0_12 = arith.constant 0 : index
    %c0_13 = arith.constant 0 : index
    %13 = vector.load %arg3[%c1_11, %c0_12, %c0_13] : memref<8x1x128xf32, #tpu.memory_space<vmem>>, vector<1x1x128xf32>
    %14 = vector.shape_cast %13 : vector<1x1x128xf32> to vector<1x128xf32>
    %15 = vector.broadcast %14 : vector<1x128xf32> to vector<128x128xf32>
    %16 = arith.addf %12, %15 : vector<128x128xf32>
    %cst_14 = arith.constant 0.000000e+00 : f32
    %17 = vector.broadcast %cst_14 : f32 to vector<128x128xf32>
    %18 = arith.maximumf %16, %17 : vector<128x128xf32>
    %c2 = arith.constant 2 : index
    %c0_15 = arith.constant 0 : index
    %c0_16 = arith.constant 0 : index
    %19 = vector.load %arg2[%c2, %c0_15, %c0_16] : memref<8x128x128xf32, #tpu.memory_space<vmem>>, vector<1x128x128xf32>
    %20 = vector.shape_cast %19 : vector<1x128x128xf32> to vector<128x128xf32>
    %cst_17 = arith.constant dense<0.000000e+00> : vector<128x128xf32>
    %21 = tpu.matmul %18, %20, %cst_17 {dimension_numbers = #tpu.dot_dimension_numbers<[1], [0], [0], [1], [0, 0, 1, 1], [], []>} : vector<128x128xf32>, vector<128x128xf32>, vector<128x128xf32> -> vector<128x128xf32>
    %c2_18 = arith.constant 2 : index
    %c0_19 = arith.constant 0 : index
    %c0_20 = arith.constant 0 : index
    %22 = vector.load %arg3[%c2_18, %c0_19, %c0_20] : memref<8x1x128xf32, #tpu.memory_space<vmem>>, vector<1x1x128xf32>
    %23 = vector.shape_cast %22 : vector<1x1x128xf32> to vector<1x128xf32>
    %24 = vector.broadcast %23 : vector<1x128xf32> to vector<128x128xf32>
    %25 = arith.addf %21, %24 : vector<128x128xf32>
    %cst_21 = arith.constant 0.000000e+00 : f32
    %26 = vector.broadcast %cst_21 : f32 to vector<128x128xf32>
    %27 = arith.maximumf %25, %26 : vector<128x128xf32>
    %c3 = arith.constant 3 : index
    %c0_22 = arith.constant 0 : index
    %c0_23 = arith.constant 0 : index
    %28 = vector.load %arg2[%c3, %c0_22, %c0_23] : memref<8x128x128xf32, #tpu.memory_space<vmem>>, vector<1x128x128xf32>
    %29 = vector.shape_cast %28 : vector<1x128x128xf32> to vector<128x128xf32>
    %cst_24 = arith.constant dense<0.000000e+00> : vector<128x128xf32>
    %30 = tpu.matmul %27, %29, %cst_24 {dimension_numbers = #tpu.dot_dimension_numbers<[1], [0], [0], [1], [0, 0, 1, 1], [], []>} : vector<128x128xf32>, vector<128x128xf32>, vector<128x128xf32> -> vector<128x128xf32>
    %c3_25 = arith.constant 3 : index
    %c0_26 = arith.constant 0 : index
    %c0_27 = arith.constant 0 : index
    %31 = vector.load %arg3[%c3_25, %c0_26, %c0_27] : memref<8x1x128xf32, #tpu.memory_space<vmem>>, vector<1x1x128xf32>
    %32 = vector.shape_cast %31 : vector<1x1x128xf32> to vector<1x128xf32>
    %33 = vector.broadcast %32 : vector<1x128xf32> to vector<128x128xf32>
    %34 = arith.addf %30, %33 : vector<128x128xf32>
    %c4 = arith.constant 4 : index
    %c0_28 = arith.constant 0 : index
    %c0_29 = arith.constant 0 : index
    %35 = vector.load %arg2[%c4, %c0_28, %c0_29] : memref<8x128x128xf32, #tpu.memory_space<vmem>>, vector<1x128x128xf32>
    %36 = vector.shape_cast %35 : vector<1x128x128xf32> to vector<128x128xf32>
    %cst_30 = arith.constant dense<0.000000e+00> : vector<128x128xf32>
    %37 = tpu.matmul %34, %36, %cst_30 {dimension_numbers = #tpu.dot_dimension_numbers<[1], [0], [0], [1], [0, 0, 1, 1], [], []>} : vector<128x128xf32>, vector<128x128xf32>, vector<128x128xf32> -> vector<128x128xf32>
    %c4_31 = arith.constant 4 : index
    %c0_32 = arith.constant 0 : index
    %c0_33 = arith.constant 0 : index
    %38 = vector.load %arg3[%c4_31, %c0_32, %c0_33] : memref<8x1x128xf32, #tpu.memory_space<vmem>>, vector<1x1x128xf32>
    %39 = vector.shape_cast %38 : vector<1x1x128xf32> to vector<1x128xf32>
    %40 = vector.broadcast %39 : vector<1x128xf32> to vector<128x128xf32>
    %41 = arith.addf %37, %40 : vector<128x128xf32>
    %cst_34 = arith.constant 0.000000e+00 : f32
    %42 = vector.broadcast %cst_34 : f32 to vector<128x128xf32>
    %43 = arith.maximumf %41, %42 : vector<128x128xf32>
    %c5 = arith.constant 5 : index
    %c0_35 = arith.constant 0 : index
    %c0_36 = arith.constant 0 : index
    %44 = vector.load %arg2[%c5, %c0_35, %c0_36] : memref<8x128x128xf32, #tpu.memory_space<vmem>>, vector<1x128x128xf32>
    %45 = vector.shape_cast %44 : vector<1x128x128xf32> to vector<128x128xf32>
    %cst_37 = arith.constant dense<0.000000e+00> : vector<128x128xf32>
    %46 = tpu.matmul %43, %45, %cst_37 {dimension_numbers = #tpu.dot_dimension_numbers<[1], [0], [0], [1], [0, 0, 1, 1], [], []>} : vector<128x128xf32>, vector<128x128xf32>, vector<128x128xf32> -> vector<128x128xf32>
    %c5_38 = arith.constant 5 : index
    %c0_39 = arith.constant 0 : index
    %c0_40 = arith.constant 0 : index
    %47 = vector.load %arg3[%c5_38, %c0_39, %c0_40] : memref<8x1x128xf32, #tpu.memory_space<vmem>>, vector<1x1x128xf32>
    %48 = vector.shape_cast %47 : vector<1x1x128xf32> to vector<1x128xf32>
    %49 = vector.broadcast %48 : vector<1x128xf32> to vector<128x128xf32>
    %50 = arith.addf %46, %49 : vector<128x128xf32>
    %cst_41 = arith.constant 0.000000e+00 : f32
    %51 = vector.broadcast %cst_41 : f32 to vector<128x128xf32>
    %52 = arith.maximumf %50, %51 : vector<128x128xf32>
    %c6 = arith.constant 6 : index
    %c0_42 = arith.constant 0 : index
    %c0_43 = arith.constant 0 : index
    %53 = vector.load %arg2[%c6, %c0_42, %c0_43] : memref<8x128x128xf32, #tpu.memory_space<vmem>>, vector<1x128x128xf32>
    %54 = vector.shape_cast %53 : vector<1x128x128xf32> to vector<128x128xf32>
    %cst_44 = arith.constant dense<0.000000e+00> : vector<128x128xf32>
    %55 = tpu.matmul %52, %54, %cst_44 {dimension_numbers = #tpu.dot_dimension_numbers<[1], [0], [0], [1], [0, 0, 1, 1], [], []>} : vector<128x128xf32>, vector<128x128xf32>, vector<128x128xf32> -> vector<128x128xf32>
    %c6_45 = arith.constant 6 : index
    %c0_46 = arith.constant 0 : index
    %c0_47 = arith.constant 0 : index
    %56 = vector.load %arg3[%c6_45, %c0_46, %c0_47] : memref<8x1x128xf32, #tpu.memory_space<vmem>>, vector<1x1x128xf32>
    %57 = vector.shape_cast %56 : vector<1x1x128xf32> to vector<1x128xf32>
    %58 = vector.broadcast %57 : vector<1x128xf32> to vector<128x128xf32>
    %59 = arith.addf %55, %58 : vector<128x128xf32>
    %cst_48 = arith.constant 0.000000e+00 : f32
    %60 = vector.broadcast %cst_48 : f32 to vector<128x128xf32>
    %61 = arith.maximumf %59, %60 : vector<128x128xf32>
    %c7 = arith.constant 7 : index
    %c0_49 = arith.constant 0 : index
    %c0_50 = arith.constant 0 : index
    %62 = vector.load %arg2[%c7, %c0_49, %c0_50] : memref<8x128x128xf32, #tpu.memory_space<vmem>>, vector<1x128x128xf32>
    %63 = vector.shape_cast %62 : vector<1x128x128xf32> to vector<128x128xf32>
    %cst_51 = arith.constant dense<0.000000e+00> : vector<128x128xf32>
    %64 = tpu.matmul %61, %63, %cst_51 {dimension_numbers = #tpu.dot_dimension_numbers<[1], [0], [0], [1], [0, 0, 1, 1], [], []>} : vector<128x128xf32>, vector<128x128xf32>, vector<128x128xf32> -> vector<128x128xf32>
    %c7_52 = arith.constant 7 : index
    %c0_53 = arith.constant 0 : index
    %c0_54 = arith.constant 0 : index
    %65 = vector.load %arg3[%c7_52, %c0_53, %c0_54] : memref<8x1x128xf32, #tpu.memory_space<vmem>>, vector<1x1x128xf32>
    %66 = vector.shape_cast %65 : vector<1x1x128xf32> to vector<1x128xf32>
    %67 = vector.broadcast %66 : vector<1x128xf32> to vector<128x128xf32>
    %68 = arith.addf %64, %67 : vector<128x128xf32>
    %c0_55 = arith.constant 0 : index
    %c0_56 = arith.constant 0 : index
    %69 = vector.load %arg4[%c0_55, %c0_56] : memref<256x128xf32, #tpu.memory_space<vmem>>, vector<128x128xf32>
    tpu.vector_store %arg4[%c0_55, %c0_56], %68 {strides = array<i32>} : memref<256x128xf32, #tpu.memory_space<vmem>>, vector<128x128xf32>,
    %c128 = arith.constant 128 : index
    %c0_57 = arith.constant 0 : index
    %70 = vector.load %arg1[%c128, %c0_57] : memref<256x128xf32, #tpu.memory_space<vmem>>, vector<128x128xf32>
    %c0_58 = arith.constant 0 : index
    %c0_59 = arith.constant 0 : index
    %c0_60 = arith.constant 0 : index
    %71 = vector.load %arg2[%c0_58, %c0_59, %c0_60] : memref<8x128x128xf32, #tpu.memory_space<vmem>>, vector<1x128x128xf32>
    %72 = vector.shape_cast %71 : vector<1x128x128xf32> to vector<128x128xf32>
    %cst_61 = arith.constant dense<0.000000e+00> : vector<128x128xf32>
    %73 = tpu.matmul %70, %72, %cst_61 {dimension_numbers = #tpu.dot_dimension_numbers<[1], [0], [0], [1], [0, 0, 1, 1], [], []>} : vector<128x128xf32>, vector<128x128xf32>, vector<128x128xf32> -> vector<128x128xf32>
    %c0_62 = arith.constant 0 : index
    %c0_63 = arith.constant 0 : index
    %c0_64 = arith.constant 0 : index
    %74 = vector.load %arg3[%c0_62, %c0_63, %c0_64] : memref<8x1x128xf32, #tpu.memory_space<vmem>>, vector<1x1x128xf32>
    %75 = vector.shape_cast %74 : vector<1x1x128xf32> to vector<1x128xf32>
    %76 = vector.broadcast %75 : vector<1x128xf32> to vector<128x128xf32>
    %77 = arith.addf %73, %76 : vector<128x128xf32>
    %cst_65 = arith.constant 0.000000e+00 : f32
    %78 = vector.broadcast %cst_65 : f32 to vector<128x128xf32>
    %79 = arith.maximumf %77, %78 : vector<128x128xf32>
    %c1_66 = arith.constant 1 : index
    %c0_67 = arith.constant 0 : index
    %c0_68 = arith.constant 0 : index
    %80 = vector.load %arg2[%c1_66, %c0_67, %c0_68] : memref<8x128x128xf32, #tpu.memory_space<vmem>>, vector<1x128x128xf32>
    %81 = vector.shape_cast %80 : vector<1x128x128xf32> to vector<128x128xf32>
    %cst_69 = arith.constant dense<0.000000e+00> : vector<128x128xf32>
    %82 = tpu.matmul %79, %81, %cst_69 {dimension_numbers = #tpu.dot_dimension_numbers<[1], [0], [0], [1], [0, 0, 1, 1], [], []>} : vector<128x128xf32>, vector<128x128xf32>, vector<128x128xf32> -> vector<128x128xf32>
    %c1_70 = arith.constant 1 : index
    %c0_71 = arith.constant 0 : index
    %c0_72 = arith.constant 0 : index
    %83 = vector.load %arg3[%c1_70, %c0_71, %c0_72] : memref<8x1x128xf32, #tpu.memory_space<vmem>>, vector<1x1x128xf32>
    %84 = vector.shape_cast %83 : vector<1x1x128xf32> to vector<1x128xf32>
    %85 = vector.broadcast %84 : vector<1x128xf32> to vector<128x128xf32>
    %86 = arith.addf %82, %85 : vector<128x128xf32>
    %cst_73 = arith.constant 0.000000e+00 : f32
    %87 = vector.broadcast %cst_73 : f32 to vector<128x128xf32>
    %88 = arith.maximumf %86, %87 : vector<128x128xf32>
    %c2_74 = arith.constant 2 : index
    %c0_75 = arith.constant 0 : index
    %c0_76 = arith.constant 0 : index
    %89 = vector.load %arg2[%c2_74, %c0_75, %c0_76] : memref<8x128x128xf32, #tpu.memory_space<vmem>>, vector<1x128x128xf32>
    %90 = vector.shape_cast %89 : vector<1x128x128xf32> to vector<128x128xf32>
    %cst_77 = arith.constant dense<0.000000e+00> : vector<128x128xf32>
    %91 = tpu.matmul %88, %90, %cst_77 {dimension_numbers = #tpu.dot_dimension_numbers<[1], [0], [0], [1], [0, 0, 1, 1], [], []>} : vector<128x128xf32>, vector<128x128xf32>, vector<128x128xf32> -> vector<128x128xf32>
    %c2_78 = arith.constant 2 : index
    %c0_79 = arith.constant 0 : index
    %c0_80 = arith.constant 0 : index
    %92 = vector.load %arg3[%c2_78, %c0_79, %c0_80] : memref<8x1x128xf32, #tpu.memory_space<vmem>>, vector<1x1x128xf32>
    %93 = vector.shape_cast %92 : vector<1x1x128xf32> to vector<1x128xf32>
    %94 = vector.broadcast %93 : vector<1x128xf32> to vector<128x128xf32>
    %95 = arith.addf %91, %94 : vector<128x128xf32>
    %cst_81 = arith.constant 0.000000e+00 : f32
    %96 = vector.broadcast %cst_81 : f32 to vector<128x128xf32>
    %97 = arith.maximumf %95, %96 : vector<128x128xf32>
    %c3_82 = arith.constant 3 : index
    %c0_83 = arith.constant 0 : index
    %c0_84 = arith.constant 0 : index
    %98 = vector.load %arg2[%c3_82, %c0_83, %c0_84] : memref<8x128x128xf32, #tpu.memory_space<vmem>>, vector<1x128x128xf32>
    %99 = vector.shape_cast %98 : vector<1x128x128xf32> to vector<128x128xf32>
    %cst_85 = arith.constant dense<0.000000e+00> : vector<128x128xf32>
    %100 = tpu.matmul %97, %99, %cst_85 {dimension_numbers = #tpu.dot_dimension_numbers<[1], [0], [0], [1], [0, 0, 1, 1], [], []>} : vector<128x128xf32>, vector<128x128xf32>, vector<128x128xf32> -> vector<128x128xf32>
    %c3_86 = arith.constant 3 : index
    %c0_87 = arith.constant 0 : index
    %c0_88 = arith.constant 0 : index
    %101 = vector.load %arg3[%c3_86, %c0_87, %c0_88] : memref<8x1x128xf32, #tpu.memory_space<vmem>>, vector<1x1x128xf32>
    %102 = vector.shape_cast %101 : vector<1x1x128xf32> to vector<1x128xf32>
    %103 = vector.broadcast %102 : vector<1x128xf32> to vector<128x128xf32>
    %104 = arith.addf %100, %103 : vector<128x128xf32>
    %c4_89 = arith.constant 4 : index
    %c0_90 = arith.constant 0 : index
    %c0_91 = arith.constant 0 : index
    %105 = vector.load %arg2[%c4_89, %c0_90, %c0_91] : memref<8x128x128xf32, #tpu.memory_space<vmem>>, vector<1x128x128xf32>
    %106 = vector.shape_cast %105 : vector<1x128x128xf32> to vector<128x128xf32>
    %cst_92 = arith.constant dense<0.000000e+00> : vector<128x128xf32>
    %107 = tpu.matmul %104, %106, %cst_92 {dimension_numbers = #tpu.dot_dimension_numbers<[1], [0], [0], [1], [0, 0, 1, 1], [], []>} : vector<128x128xf32>, vector<128x128xf32>, vector<128x128xf32> -> vector<128x128xf32>
    %c4_93 = arith.constant 4 : index
    %c0_94 = arith.constant 0 : index
    %c0_95 = arith.constant 0 : index
    %108 = vector.load %arg3[%c4_93, %c0_94, %c0_95] : memref<8x1x128xf32, #tpu.memory_space<vmem>>, vector<1x1x128xf32>
    %109 = vector.shape_cast %108 : vector<1x1x128xf32> to vector<1x128xf32>
    %110 = vector.broadcast %109 : vector<1x128xf32> to vector<128x128xf32>
    %111 = arith.addf %107, %110 : vector<128x128xf32>
    %cst_96 = arith.constant 0.000000e+00 : f32
    %112 = vector.broadcast %cst_96 : f32 to vector<128x128xf32>
    %113 = arith.maximumf %111, %112 : vector<128x128xf32>
    %c5_97 = arith.constant 5 : index
    %c0_98 = arith.constant 0 : index
    %c0_99 = arith.constant 0 : index
    %114 = vector.load %arg2[%c5_97, %c0_98, %c0_99] : memref<8x128x128xf32, #tpu.memory_space<vmem>>, vector<1x128x128xf32>
    %115 = vector.shape_cast %114 : vector<1x128x128xf32> to vector<128x128xf32>
    %cst_100 = arith.constant dense<0.000000e+00> : vector<128x128xf32>
    %116 = tpu.matmul %113, %115, %cst_100 {dimension_numbers = #tpu.dot_dimension_numbers<[1], [0], [0], [1], [0, 0, 1, 1], [], []>} : vector<128x128xf32>, vector<128x128xf32>, vector<128x128xf32> -> vector<128x128xf32>
    %c5_101 = arith.constant 5 : index
    %c0_102 = arith.constant 0 : index
    %c0_103 = arith.constant 0 : index
    %117 = vector.load %arg3[%c5_101, %c0_102, %c0_103] : memref<8x1x128xf32, #tpu.memory_space<vmem>>, vector<1x1x128xf32>
    %118 = vector.shape_cast %117 : vector<1x1x128xf32> to vector<1x128xf32>
    %119 = vector.broadcast %118 : vector<1x128xf32> to vector<128x128xf32>
    %120 = arith.addf %116, %119 : vector<128x128xf32>
    %cst_104 = arith.constant 0.000000e+00 : f32
    %121 = vector.broadcast %cst_104 : f32 to vector<128x128xf32>
    %122 = arith.maximumf %120, %121 : vector<128x128xf32>
    %c6_105 = arith.constant 6 : index
    %c0_106 = arith.constant 0 : index
    %c0_107 = arith.constant 0 : index
    %123 = vector.load %arg2[%c6_105, %c0_106, %c0_107] : memref<8x128x128xf32, #tpu.memory_space<vmem>>, vector<1x128x128xf32>
    %124 = vector.shape_cast %123 : vector<1x128x128xf32> to vector<128x128xf32>
    %cst_108 = arith.constant dense<0.000000e+00> : vector<128x128xf32>
    %125 = tpu.matmul %122, %124, %cst_108 {dimension_numbers = #tpu.dot_dimension_numbers<[1], [0], [0], [1], [0, 0, 1, 1], [], []>} : vector<128x128xf32>, vector<128x128xf32>, vector<128x128xf32> -> vector<128x128xf32>
    %c6_109 = arith.constant 6 : index
    %c0_110 = arith.constant 0 : index
    %c0_111 = arith.constant 0 : index
    %126 = vector.load %arg3[%c6_109, %c0_110, %c0_111] : memref<8x1x128xf32, #tpu.memory_space<vmem>>, vector<1x1x128xf32>
    %127 = vector.shape_cast %126 : vector<1x1x128xf32> to vector<1x128xf32>
    %128 = vector.broadcast %127 : vector<1x128xf32> to vector<128x128xf32>
    %129 = arith.addf %125, %128 : vector<128x128xf32>
    %cst_112 = arith.constant 0.000000e+00 : f32
    %130 = vector.broadcast %cst_112 : f32 to vector<128x128xf32>
    %131 = arith.maximumf %129, %130 : vector<128x128xf32>
    %c7_113 = arith.constant 7 : index
    %c0_114 = arith.constant 0 : index
    %c0_115 = arith.constant 0 : index
    %132 = vector.load %arg2[%c7_113, %c0_114, %c0_115] : memref<8x128x128xf32, #tpu.memory_space<vmem>>, vector<1x128x128xf32>
    %133 = vector.shape_cast %132 : vector<1x128x128xf32> to vector<128x128xf32>
    %cst_116 = arith.constant dense<0.000000e+00> : vector<128x128xf32>
    %134 = tpu.matmul %131, %133, %cst_116 {dimension_numbers = #tpu.dot_dimension_numbers<[1], [0], [0], [1], [0, 0, 1, 1], [], []>} : vector<128x128xf32>, vector<128x128xf32>, vector<128x128xf32> -> vector<128x128xf32>
    %c7_117 = arith.constant 7 : index
    %c0_118 = arith.constant 0 : index
    %c0_119 = arith.constant 0 : index
    %135 = vector.load %arg3[%c7_117, %c0_118, %c0_119] : memref<8x1x128xf32, #tpu.memory_space<vmem>>, vector<1x1x128xf32>
    %136 = vector.shape_cast %135 : vector<1x1x128xf32> to vector<1x128xf32>
    %137 = vector.broadcast %136 : vector<1x128xf32> to vector<128x128xf32>
    %138 = arith.addf %134, %137 : vector<128x128xf32>
    %c128_120 = arith.constant 128 : index
    %c0_121 = arith.constant 0 : index
    %139 = vector.load %arg4[%c128_120, %c0_121] : memref<256x128xf32, #tpu.memory_space<vmem>>, vector<128x128xf32>
    tpu.vector_store %arg4[%c128_120, %c0_121], %138 {strides = array<i32>} : memref<256x128xf32, #tpu.memory_space<vmem>>, vector<128x128xf32>,
    return
  }
  func.func @transform_0(%arg0: i32) -> (i32, i32) {
    %c0_i32 = arith.constant 0 : i32
    %c0_i32_0 = arith.constant 0 : i32
    return %arg0, %c0_i32 : i32, i32
  }
  func.func @transform_1(%arg0: i32) -> (i32, i32, i32) {
    %c0_i32 = arith.constant 0 : i32
    %c0_i32_0 = arith.constant 0 : i32
    %c0_i32_1 = arith.constant 0 : i32
    %c0_i32_2 = arith.constant 0 : i32
    return %c0_i32, %c0_i32_0, %c0_i32_1 : i32, i32, i32
  }
  func.func @transform_2(%arg0: i32) -> (i32, i32, i32) {
    %c0_i32 = arith.constant 0 : i32
    %c0_i32_0 = arith.constant 0 : i32
    %c0_i32_1 = arith.constant 0 : i32
    %c0_i32_2 = arith.constant 0 : i32
    return %c0_i32, %c0_i32_0, %c0_i32_1 : i32, i32, i32
  }
  func.func @transform_3(%arg0: i32) -> (i32, i32) {
    %c0_i32 = arith.constant 0 : i32
    %c0_i32_0 = arith.constant 0 : i32
    return %arg0, %c0_i32 : i32, i32
  }
}

</mosaic_0001>

<llo_original>
// kernel: tpu_custom_call.1
$region0: #{tpu_custom_call.1}
  #allocation0 [shape = 'u32[]', space=smem, size = 0x4, offset = 0x4, fixed_abs, tag = 'smem constant byte address 0x4 - core index']
  #allocation1 [shape = 'u32[144,128]{1,0:T(1,128)}', space=vmem, size = 0x12000, scoped, tag = 'internal scratch']
  %s0 = inlined_call_operand.hbm [shape: f32[512,128], index: 0, kind: input, shape index: {}]
  %s1 = inlined_call_operand.hbm [shape: f32[8,128,128], index: 1, kind: input, shape index: {}]
  %s2 = inlined_call_operand.hbm [shape: f32[8,1,128], index: 2, kind: input, shape index: {}]
  %s3 = inlined_call_operand.hbm [shape: f32[512,128], index: 3, kind: output, shape index: {}]
  %s4 = sld [smem:[#allocation0]]
  $region57: #{tpu_custom_call.1} parent=0
    _
  %s6 = ssub.s32 1, %s4
  %s7 = scalar_select 0, %s6, %s4
  $region1: #{tpu_custom_call.1} parent=0
    #allocation2 [shape = 'u8[262144]{0}', space=vmem, size = 0x40000, scoped, tag = 'input window, operand 0']
    #allocation3 [shape = 's32[2]{0}', space=sflag, size = 0x8, scoped, tag = 'scoped memory for tpu_custom_call.1']
    #allocation4 [shape = 's32[2]{0}', space=sflag, size = 0x8, scoped, tag = 'scoped memory for tpu_custom_call.1']
    #allocation5 [shape = 'u8[524288]{0}', space=vmem, size = 0x80000, scoped, tag = 'input window, operand 1, single buffered']
    #allocation6 [shape = 's32[1]{0}', space=sflag, size = 0x4, scoped, tag = 'scoped memory for tpu_custom_call.1']
    #allocation7 [shape = 'u8[4096]{0}', space=vmem, size = 0x1000, scoped, tag = 'input window, operand 2, single buffered']
    #allocation8 [shape = 'u8[262144]{0}', space=vmem, size = 0x40000, scoped, tag = 'output window, operand 0']
    %8 = vsyncpa [#allocation3], 0
    %s9 = scalar_lea.sflag [#allocation3], 1
    %10 = vsyncpa %s9, 0
    %11 = vsyncpa [#allocation6], 0
    %12 = vsyncpa [#allocation4], 0
    %s13 = scalar_lea.sflag [#allocation4], 1
    %14 = vsyncpa %s13, 0
    loop: start=0, step=1, limit=4
    $region2: #{tpu_custom_call.1} parent=1 // loop_pre_header
      _
    $region3: #{tpu_custom_call.1} parent=1 // loop_header
      %s16 = sphi 0, %s20
      %p17 = scmp.ge.s32.totalorder %s16, 4
      %s26 = sphi 0, %s28
      %s29 = sphi 0, %s26
      %s30 = sphi 0, %s29
      %s46 = sphi 0, %s30
      %s50 = sphi 0, %s50
      %s52 = sphi 0, %s50
      %s53 = sphi 0, %s52
      %s67 = sphi 0, %s53
      %s71 = sphi 0, %s71
      %s73 = sphi 0, %s71
      %s74 = sphi 0, %s73
      %s88 = sphi 0, %s74
      %s94 = sphi 0, %s96
      %s97 = sphi 0, %s94
      %s98 = sphi 0, %s97
      %s114 = sphi 0, %s98
    $region4: #{tpu_custom_call.1} parent=1 // loop_header_branch
      %19 = sbr.rel (%p17) target = $region8
    $region5: #{tpu_custom_call.1} parent=1 // loop_body
      %s21 = ssub.s32 %s16, 1
      %s22 = ssub.s32 %s16, 2
      %s23 = sadd.s32 %s16, 1
      %s24 = ssub.s32 %s16, %s23
      %p25 = scmp.eq.s32.totalorder %s24, 0
      %s27 = sadd.s32 %s26, 1
      %s28 = scalar_select %p25, %s26, %s27
      %p31 = pneg %p25
      %p32 = scmp.eq.s32.totalorder %s16, 1
      %p33 = por %p31, %p32
      %p34 = scmp.ne.s32.totalorder %s26, %s29
      %p35 = scmp.eq.s32.totalorder %s16, 0
      %p36 = por %p34, %p35
      %p37 = scmp.ne.s32.totalorder %s26, %s29
      %p38 = scmp.eq.s32.totalorder %s21, 1
      %p39 = por %p37, %p38
      %p40 = scmp.ne.s32.totalorder %s29, %s30
      %p41 = scmp.eq.s32.totalorder %s21, 0
      %p42 = por %p40, %p41
      %p43 = scmp.ne.s32.totalorder %s29, %s30
      %p44 = scmp.eq.s32.totalorder %s22, 1
      %p45 = por %p43, %p44
      %p47 = scmp.ne.s32.totalorder %s30, %s46
      %p48 = scmp.eq.s32.totalorder %s22, 0
      %p49 = por %p47, %p48
      %s51 = sadd.s32 %s50, 1
      %p54 = scmp.eq.s32.totalorder %s16, 1
      %p55 = scmp.ne.s32.totalorder %s50, %s52
      %p56 = scmp.eq.s32.totalorder %s16, 0
      %p57 = por %p55, %p56
      %p58 = scmp.ne.s32.totalorder %s50, %s52
      %p59 = scmp.eq.s32.totalorder %s21, 1
      %p60 = por %p58, %p59
      %p61 = scmp.ne.s32.totalorder %s52, %s53
      %p62 = scmp.eq.s32.totalorder %s21, 0
      %p63 = por %p61, %p62
      %p64 = scmp.ne.s32.totalorder %s52, %s53
      %p65 = scmp.eq.s32.totalorder %s22, 1
      %p66 = por %p64, %p65
      %p68 = scmp.ne.s32.totalorder %s53, %s67
      %p69 = scmp.eq.s32.totalorder %s22, 0
      %p70 = por %p68, %p69
      %s72 = sadd.s32 %s71, 1
      %p75 = scmp.eq.s32.totalorder %s16, 1
      %p76 = scmp.ne.s32.totalorder %s71, %s73
      %p77 = scmp.eq.s32.totalorder %s16, 0
      %p78 = por %p76, %p77
      %p79 = scmp.ne.s32.totalorder %s71, %s73
      %p80 = scmp.eq.s32.totalorder %s21, 1
      %p81 = por %p79, %p80
      %p82 = scmp.ne.s32.totalorder %s73, %s74
      %p83 = scmp.eq.s32.totalorder %s21, 0
      %p84 = por %p82, %p83
      %p85 = scmp.ne.s32.totalorder %s73, %s74
      %p86 = scmp.eq.s32.totalorder %s22, 1
      %p87 = por %p85, %p86
      %p89 = scmp.ne.s32.totalorder %s74, %s88
      %p90 = scmp.eq.s32.totalorder %s22, 0
      %p91 = por %p89, %p90
      %s92 = ssub.s32 %s16, %s23
      %p93 = scmp.eq.s32.totalorder %s92, 0
      %s95 = sadd.s32 %s94, 1
      %s96 = scalar_select %p93, %s94, %s95
      %p99 = pneg %p93
      %p100 = scmp.eq.s32.totalorder %s16, 1
      %p101 = por %p99, %p100
      %p102 = scmp.ne.s32.totalorder %s94, %s97
      %p103 = scmp.eq.s32.totalorder %s16, 0
      %p104 = por %p102, %p103
      %p105 = scmp.ne.s32.totalorder %s94, %s97
      %p106 = scmp.eq.s32.totalorder %s21, 1
      %p107 = por %p105, %p106
      %p108 = scmp.ne.s32.totalorder %s97, %s98
      %p109 = scmp.eq.s32.totalorder %s21, 0
      %p110 = por %p108, %p109
      %p111 = scmp.ne.s32.totalorder %s97, %s98
      %p112 = scmp.eq.s32.totalorder %s22, 1
      %p113 = por %p111, %p112
      %p115 = scmp.ne.s32.totalorder %s98, %s114
      %p116 = scmp.eq.s32.totalorder %s22, 0
      %p117 = por %p115, %p116
      %p118 = scmp.le.s32.totalorder 1, %s16
      %p119 = scmp.lt.s32.totalorder %s16, 3
      %p120 = pnand %p118, %p119
      %p121 = pneg %p120
      // Predicated region
      $region9: #{tpu_custom_call.1} parent=5 // pred_check
        _
      $region10: #{tpu_custom_call.1} parent=5 // pred_check_branch
        %123 = sbr.rel (%p120) target = $region12
      $region11: #{tpu_custom_call.1} parent=5 // pred_region
        %s124 = ssub.s32 %s16, 1
        // Predicated region
        $region13: #{tpu_custom_call.1} parent=11 // pred_check
          %p125 = pneg %p63
        $region14: #{tpu_custom_call.1} parent=11 // pred_check_branch
          %127 = sbr.rel (%p125) target = $region16
        $region15: #{tpu_custom_call.1} parent=11 // pred_region
          %s129 = ssub.s32 16384, 16384
          %130 = vsyncadd [#allocation6], %s129
          %s131 = sshll.u32 [#allocation5], 4
          %s132 = int_to_ptr.vmem [resolvable:$true] %s131
          %137 = dma.hbm_to_vmem [thread:$0]  %s1, 16384, %s132, [#allocation6], 128, 128, 8
        $region16: #{tpu_custom_call.1} parent=11 // pred_fallthru
          _
        // Predicated region
        $region17: #{tpu_custom_call.1} parent=11 // pred_check
          %p138 = pneg %p84
        $region18: #{tpu_custom_call.1} parent=11 // pred_check_branch
          %140 = sbr.rel (%p138) target = $region20
        $region19: #{tpu_custom_call.1} parent=11 // pred_region
          %s142 = ssub.s32 128, 128
          %143 = vsyncadd [#allocation6], %s142
          %s144 = sshll.u32 [#allocation7], 4
          %s145 = int_to_ptr.vmem [resolvable:$true] %s144
          %150 = dma.hbm_to_vmem [thread:$0]  %s2, 128, %s145, [#allocation6], 16, 16, 1
        $region20: #{tpu_custom_call.1} parent=11 // pred_fallthru
          _
      $region12: #{tpu_custom_call.1} parent=5 // pred_fallthru
        _
      %p151 = scmp.lt.s32.totalorder %s16, 2
      // Predicated region
      $region21: #{tpu_custom_call.1} parent=5 // pred_check
        %p152 = pneg %p151
      $region22: #{tpu_custom_call.1} parent=5 // pred_check_branch
        %154 = sbr.rel (%p152) target = $region24
      $region23: #{tpu_custom_call.1} parent=5 // pred_region
        // Predicated region
        $region25: #{tpu_custom_call.1} parent=23 // pred_check
          %p155 = pneg %p36
        $region26: #{tpu_custom_call.1} parent=23 // pred_check_branch
          %157 = sbr.rel (%p155) target = $region28
        $region27: #{tpu_custom_call.1} parent=23 // pred_region
          %s158 = sand.u32 %s26, 1
          %s159 = scalar_lea.sflag [#allocation3], %s158
          %s160 = sand.u32 %s26, 1
          %s161 = smul.addr %s160, 256
          %s162 = scalar_lea.vmem [#allocation2], %s161
          %s163 = smul.u32 32, %s16
          %s165 = ssub.s32 4096, 4096
          %166 = vsyncadd %s159, %s165
          %s167 = smul.addr %s163, 128
          %s168 = scalar_lea.hbm %s0, %s167
          %s169 = sshll.u32 %s162, 4
          %s170 = int_to_ptr.vmem [resolvable:$true] %s169
          %175 = dma.hbm_to_vmem [thread:$0]  %s168, 4096, %s170, %s159, 128, 128, 8
        $region28: #{tpu_custom_call.1} parent=23 // pred_fallthru
          _
      $region24: #{tpu_custom_call.1} parent=5 // pred_fallthru
        _
      %p176 = scmp.le.s32.totalorder 1, %s16
      %p177 = scmp.lt.s32.totalorder %s16, 3
      %p178 = pnand %p176, %p177
      %p179 = pneg %p178
      // Predicated region
      $region29: #{tpu_custom_call.1} parent=5 // pred_check
        _
      $region30: #{tpu_custom_call.1} parent=5 // pred_check_branch
        %181 = sbr.rel (%p178) target = $region32
      $region31: #{tpu_custom_call.1} parent=5 // pred_region
        %s182 = ssub.s32 %s16, 1
        %s183 = sand.u32 %s29, 1
        %s184 = scalar_lea.sflag [#allocation3], %s183
        %s185 = sand.u32 %s29, 1
        %s186 = smul.addr %s185, 256
        %s187 = scalar_lea.vmem [#allocation2], %s186
        // Predicated region
        $region33: #{tpu_custom_call.1} parent=31 // pred_check
          %p188 = pneg %p42
        $region34: #{tpu_custom_call.1} parent=31 // pred_check_branch
          %190 = sbr.rel (%p188) target = $region36
        $region35: #{tpu_custom_call.1} parent=31 // pred_region
          %191 = dma.done %s184, 4096
        $region36: #{tpu_custom_call.1} parent=31 // pred_fallthru
          _
        // Predicated region
        $region37: #{tpu_custom_call.1} parent=31 // pred_check
          %p192 = pneg %p63
        $region38: #{tpu_custom_call.1} parent=31 // pred_check_branch
          %194 = sbr.rel (%p192) target = $region40
        $region39: #{tpu_custom_call.1} parent=31 // pred_region
          %195 = dma.done [#allocation6], 16384
        $region40: #{tpu_custom_call.1} parent=31 // pred_fallthru
          _
        // Predicated region
        $region41: #{tpu_custom_call.1} parent=31 // pred_check
          %p196 = pneg %p84
        $region42: #{tpu_custom_call.1} parent=31 // pred_check_branch
          %198 = sbr.rel (%p196) target = $region44
        $region43: #{tpu_custom_call.1} parent=31 // pred_region
          %199 = dma.done [#allocation6], 128
        $region44: #{tpu_custom_call.1} parent=31 // pred_fallthru
          _
        %s200 = sand.u32 %s29, 1
        %s201 = scalar_lea.sflag [#allocation3], %s200
        %s202 = sand.u32 %s29, 1
        %s203 = smul.addr %s202, 256
        %s204 = scalar_lea.vmem [#allocation2], %s203
        %p205 = pneg %p42
        %p206 = pneg %p39
        %p207 = pneg %p63
        %p208 = pneg %p60
        %p209 = pneg %p84
        %p210 = pneg %p81
        %p211 = pneg %p110
        %p212 = pneg %p107
        %s213 = sand.u32 %s97, 1
        %s214 = scalar_lea.sflag [#allocation4], %s213
        %s215 = sand.u32 %s97, 1
        %s216 = smul.addr %s215, 256
        %s217 = scalar_lea.vmem [#allocation8], %s216
        %s218 = smul.u32 32, %s21
        %s219 = smul.u32 32, %s21
        %v220 = vld [vmem:[%s187] sm:$0xff]
        %v221 = vld [vmem:[%s187 + $0x8] sm:$0xff]
        %v222 = vld [vmem:[%s187 + $0x10] sm:$0xff]
        %v223 = vld [vmem:[%s187 + $0x18] sm:$0xff]
        %v224 = vld [vmem:[%s187 + $0x20] sm:$0xff]
        %v225 = vld [vmem:[%s187 + $0x28] sm:$0xff]
        %v226 = vld [vmem:[%s187 + $0x30] sm:$0xff]
        %v227 = vld [vmem:[%s187 + $0x38] sm:$0xff]
        %v228 = vld [vmem:[%s187 + $0x40] sm:$0xff]
        %v229 = vld [vmem:[%s187 + $0x48] sm:$0xff]
        %v230 = vld [vmem:[%s187 + $0x50] sm:$0xff]
        %v231 = vld [vmem:[%s187 + $0x58] sm:$0xff]
        %v232 = vld [vmem:[%s187 + $0x60] sm:$0xff]
        %v233 = vld [vmem:[%s187 + $0x68] sm:$0xff]
        %v234 = vld [vmem:[%s187 + $0x70] sm:$0xff]
        %v235 = vld [vmem:[%s187 + $0x78] sm:$0xff]
        %v236 = vld [vmem:[#allocation5] sm:$0xff]
        %v237 = vld [vmem:[#allocation5 + $0x8] sm:$0xff]
        %v238 = vld [vmem:[#allocation5 + $0x10] sm:$0xff]
        %v239 = vld [vmem:[#allocation5 + $0x18] sm:$0xff]
        %v240 = vld [vmem:[#allocation5 + $0x20] sm:$0xff]
        %v241 = vld [vmem:[#allocation5 + $0x28] sm:$0xff]
        %v242 = vld [vmem:[#allocation5 + $0x30] sm:$0xff]
        %v243 = vld [vmem:[#allocation5 + $0x38] sm:$0xff]
        %v244 = vld [vmem:[#allocation5 + $0x40] sm:$0xff]
        %v245 = vld [vmem:[#allocation5 + $0x48] sm:$0xff]
        %v246 = vld [vmem:[#allocation5 + $0x50] sm:$0xff]
        %v247 = vld [vmem:[#allocation5 + $0x58] sm:$0xff]
        %v248 = vld [vmem:[#allocation5 + $0x60] sm:$0xff]
        %v249 = vld [vmem:[#allocation5 + $0x68] sm:$0xff]
        %v250 = vld [vmem:[#allocation5 + $0x70] sm:$0xff]
        %v251 = vld [vmem:[#allocation5 + $0x78] sm:$0xff]
        %v252 = vld [vmem:[#allocation7] sm:$0x1]
        %v254 = vlaneseq
        %v255 = vshrl.u32 %v254, 7
        %v256 = vsub.s32 0, %v255
        %v257 = vrot.slane %v252, %v256
        %259 = vmatprep.subr.mxu0 0.0
        %260 = vmatpush1.msra.mxu0 %v236
        %261 = vmatprep.subr.mxu0 0.0
        %262 = vmatpush1.msra.mxu0 %v237
        %263 = vmatprep.subr.mxu0 0.0
        %264 = vmatpush1.msra.mxu0 %v238
        %265 = vmatprep.subr.mxu0 0.0
        %266 = vmatpush1.msra.mxu0 %v239
        %267 = vmatprep.subr.mxu0 0.0
        %268 = vmatpush1.msra.mxu0 %v240
        %269 = vmatprep.subr.mxu0 0.0
        %270 = vmatpush1.msra.mxu0 %v241
        %271 = vmatprep.subr.mxu0 0.0
        %272 = vmatpush1.msra.mxu0 %v242
        %273 = vmatprep.subr.mxu0 0.0
        %274 = vmatpush1.msra.mxu0 %v243
        %275 = vmatprep.subr.mxu0 0.0
        %276 = vmatpush1.msra.mxu0 %v244
        %277 = vmatprep.subr.mxu0 0.0
        %278 = vmatpush1.msra.mxu0 %v245
        %279 = vmatprep.subr.mxu0 0.0
        %280 = vmatpush1.msra.mxu0 %v246
        %281 = vmatprep.subr.mxu0 0.0
        %282 = vmatpush1.msra.mxu0 %v247
        %283 = vmatprep.subr.mxu0 0.0
        %284 = vmatpush1.msra.mxu0 %v248
        %285 = vmatprep.subr.mxu0 0.0
        %286 = vmatpush1.msra.mxu0 %v249
        %287 = vmatprep.subr.mxu0 0.0
        %288 = vmatpush1.msra.mxu0 %v250
        %289 = vmatprep.subr.mxu0 0.0
        %290 = vmatpush1.msra.mxu0 %v251
        %291 = vmatprep.subr.mxu0 0.0
        %292 = vmatpush1.msra.mxu0 0.0
        %293 = vmatprep.subr.mxu0 0.0
        %294 = vmatpush1.msra.mxu0 0.0
        %295 = vmatprep.subr.mxu0 0.0
        %296 = vmatpush1.msra.mxu0 0.0
        %297 = vmatprep.subr.mxu0 0.0
        %298 = vmatpush1.msra.mxu0 0.0
        %299 = vmatprep.subr.mxu0 0.0
        %300 = vmatpush1.msra.mxu0 0.0
        %301 = vmatprep.subr.mxu0 0.0
        %302 = vmatpush1.msra.mxu0 0.0
        %303 = vmatprep.subr.mxu0 0.0
        %304 = vmatpush1.msra.mxu0 0.0
        %305 = vmatprep.subr.mxu0 0.0
        %306 = vmatpush1.msra.mxu0 0.0
        %307 = vmatprep.subr.mxu0 0.0
        %308 = vmatpush1.msra.mxu0 0.0
        %309 = vmatprep.subr.mxu0 0.0
        %310 = vmatpush1.msra.mxu0 0.0
        %311 = vmatprep.subr.mxu0 0.0
        %312 = vmatpush1.msra.mxu0 0.0
        %313 = vmatprep.subr.mxu0 0.0
        %314 = vmatpush1.msra.mxu0 0.0
        %315 = vmatprep.subr.mxu0 0.0
        %316 = vmatpush1.msra.mxu0 0.0
        %317 = vmatprep.subr.mxu0 0.0
        %318 = vmatpush1.msra.mxu0 0.0
        %319 = vmatprep.subr.mxu0 0.0
        %320 = vmatpush1.msra.mxu0 0.0
        %321 = vmatprep.subr.mxu0 0.0
        %322 = vmatpush1.msra.mxu0 0.0
        %323 = vmatprep.mubr.f32.mxu0 0.0
        %324 = vmatmul.mubr.f32.gmra.mrb[0].mxu0 %v220
        %v325 = vpop.f32.mrb[0].mxu0
        %v326 = vadd.f32 %v257, %v325
        %v327 = vpop.f32.mrb[0].mxu0
        %328 = vmatprep.mubr.f32.mxu0 0.0
        %329 = vmatmul.mubr.f32.gmra.mrb[0].mxu0 %v221
        %v330 = vpop.f32.mrb[0].mxu0
        %v331 = vadd.f32 %v257, %v330
        %v332 = vpop.f32.mrb[0].mxu0
        %333 = vmatprep.mubr.f32.mxu0 0.0
        %334 = vmatmul.mubr.f32.gmra.mrb[0].mxu0 %v222
        %v335 = vpop.f32.mrb[0].mxu0
        %v336 = vadd.f32 %v257, %v335
        %v337 = vpop.f32.mrb[0].mxu0
        %338 = vmatprep.mubr.f32.mxu0 0.0
        %339 = vmatmul.mubr.f32.gmra.mrb[0].mxu0 %v223
        %v340 = vpop.f32.mrb[0].mxu0
        %v341 = vadd.f32 %v257, %v340
        %v342 = vpop.f32.mrb[0].mxu0
        %343 = vmatprep.mubr.f32.mxu0 0.0
        %344 = vmatmul.mubr.f32.gmra.mrb[0].mxu0 %v224
        %v345 = vpop.f32.mrb[0].mxu0
        %v346 = vadd.f32 %v257, %v345
        %v347 = vpop.f32.mrb[0].mxu0
        %348 = vmatprep.mubr.f32.mxu0 0.0
        %349 = vmatmul.mubr.f32.gmra.mrb[0].mxu0 %v225
        %v350 = vpop.f32.mrb[0].mxu0
        %v351 = vadd.f32 %v257, %v350
        %v352 = vpop.f32.mrb[0].mxu0
        %353 = vmatprep.mubr.f32.mxu0 0.0
        %354 = vmatmul.mubr.f32.gmra.mrb[0].mxu0 %v226
        %v355 = vpop.f32.mrb[0].mxu0
        %v356 = vadd.f32 %v257, %v355
        %v357 = vpop.f32.mrb[0].mxu0
        %358 = vmatprep.mubr.f32.mxu0 0.0
        %359 = vmatmul.mubr.f32.gmra.mrb[0].mxu0 %v227
        %v360 = vpop.f32.mrb[0].mxu0
        %v361 = vadd.f32 %v257, %v360
        %v362 = vpop.f32.mrb[0].mxu0
        %363 = vmatprep.mubr.f32.mxu0 0.0
        %364 = vmatmul.mubr.f32.gmra.mrb[0].mxu0 %v228
        %v365 = vpop.f32.mrb[0].mxu0
        %v366 = vadd.f32 %v257, %v365
        %v367 = vpop.f32.mrb[0].mxu0
        %368 = vmatprep.mubr.f32.mxu0 0.0
        %369 = vmatmul.mubr.f32.gmra.mrb[0].mxu0 %v229
        %v370 = vpop.f32.mrb[0].mxu0
        %v371 = vadd.f32 %v257, %v370
        %v372 = vpop.f32.mrb[0].mxu0
        %373 = vmatprep.mubr.f32.mxu0 0.0
        %374 = vmatmul.mubr.f32.gmra.mrb[0].mxu0 %v230
        %v375 = vpop.f32.mrb[0].mxu0
        %v376 = vadd.f32 %v257, %v375
        %v377 = vpop.f32.mrb[0].mxu0
        %378 = vmatprep.mubr.f32.mxu0 0.0
        %379 = vmatmul.mubr.f32.gmra.mrb[0].mxu0 %v231
        %v380 = vpop.f32.mrb[0].mxu0
        %v381 = vadd.f32 %v257, %v380
        %v382 = vpop.f32.mrb[0].mxu0
        %383 = vmatprep.mubr.f32.mxu0 0.0
        %384 = vmatmul.mubr.f32.gmra.mrb[0].mxu0 %v232
        %v385 = vpop.f32.mrb[0].mxu0
        %v386 = vadd.f32 %v257, %v385
        %v387 = vpop.f32.mrb[0].mxu0
        %388 = vmatprep.mubr.f32.mxu0 0.0
        %389 = vmatmul.mubr.f32.gmra.mrb[0].mxu0 %v233
        %v390 = vpop.f32.mrb[0].mxu0
        %v391 = vadd.f32 %v257, %v390
        %v392 = vpop.f32.mrb[0].mxu0
        %393 = vmatprep.mubr.f32.mxu0 0.0
        %394 = vmatmul.mubr.f32.gmra.mrb[0].mxu0 %v234
        %v395 = vpop.f32.mrb[0].mxu0
        %v396 = vadd.f32 %v257, %v395
        %v397 = vpop.f32.mrb[0].mxu0
        %398 = vmatprep.mubr.f32.mxu0 0.0
        %399 = vmatmul.mubr.f32.gmra.mrb[0].mxu0 %v235
        %v400 = vpop.f32.mrb[0].mxu0
        %v401 = vadd.f32 %v257, %v400
        %v402 = vpop.f32.mrb[0].mxu0
        %403 = vdwg.mxu0
        %v404 = vmax.f32 %v326, 0.0
        %v405 = vmax.f32 %v331, 0.0
        %v406 = vmax.f32 %v336, 0.0
        %v407 = vmax.f32 %v341, 0.0
        %v408 = vmax.f32 %v346, 0.0
        %v409 = vmax.f32 %v351, 0.0
        %v410 = vmax.f32 %v356, 0.0
        %v411 = vmax.f32 %v361, 0.0
        %v412 = vmax.f32 %v366, 0.0
        %v413 = vmax.f32 %v371, 0.0
        %v414 = vmax.f32 %v376, 0.0
        %v415 = vmax.f32 %v381, 0.0
        %v416 = vmax.f32 %v386, 0.0
        %v417 = vmax.f32 %v391, 0.0
        %v418 = vmax.f32 %v396, 0.0
        %v419 = vmax.f32 %v401, 0.0
        %s420 = scalar_lea.vmem [#allocation5], 128
        %v421 = vld [vmem:[%s420] sm:$0xff]
        %v422 = vld [vmem:[%s420 + $0x8] sm:$0xff]
        %v423 = vld [vmem:[%s420 + $0x10] sm:$0xff]
        %v424 = vld [vmem:[%s420 + $0x18] sm:$0xff]
        %v425 = vld [vmem:[%s420 + $0x20] sm:$0xff]
        %v426 = vld [vmem:[%s420 + $0x28] sm:$0xff]
        %v427 = vld [vmem:[%s420 + $0x30] sm:$0xff]
        %v428 = vld [vmem:[%s420 + $0x38] sm:$0xff]
        %v429 = vld [vmem:[%s420 + $0x40] sm:$0xff]
        %v430 = vld [vmem:[%s420 + $0x48] sm:$0xff]
        %v431 = vld [vmem:[%s420 + $0x50] sm:$0xff]
        %v432 = vld [vmem:[%s420 + $0x58] sm:$0xff]
        %v433 = vld [vmem:[%s420 + $0x60] sm:$0xff]
        %v434 = vld [vmem:[%s420 + $0x68] sm:$0xff]
        %v435 = vld [vmem:[%s420 + $0x70] sm:$0xff]
        %v436 = vld [vmem:[%s420 + $0x78] sm:$0xff]
        %s437 = scalar_lea.vmem [#allocation7], 1
        %v438 = vld [vmem:[%s437] sm:$0x1]
        %v440 = vlaneseq
        %v441 = vshrl.u32 %v440, 7
        %v442 = vsub.s32 0, %v441
        %v443 = vrot.slane %v438, %v442
        %445 = vmatprep.subr.mxu0 0.0
        %446 = vmatpush1.msra.mxu0 %v421
        %447 = vmatprep.subr.mxu0 0.0
        %448 = vmatpush1.msra.mxu0 %v422
        %449 = vmatprep.subr.mxu0 0.0
        %450 = vmatpush1.msra.mxu0 %v423
        %451 = vmatprep.subr.mxu0 0.0
        %452 = vmatpush1.msra.mxu0 %v424
        %453 = vmatprep.subr.mxu0 0.0
        %454 = vmatpush1.msra.mxu0 %v425
        %455 = vmatprep.subr.mxu0 0.0
        %456 = vmatpush1.msra.mxu0 %v426
        %457 = vmatprep.subr.mxu0 0.0
        %458 = vmatpush1.msra.mxu0 %v427
        %459 = vmatprep.subr.mxu0 0.0
        %460 = vmatpush1.msra.mxu0 %v428
        %461 = vmatprep.subr.mxu0 0.0
        %462 = vmatpush1.msra.mxu0 %v429
        %463 = vmatprep.subr.mxu0 0.0
        %464 = vmatpush1.msra.mxu0 %v430
        %465 = vmatprep.subr.mxu0 0.0
        %466 = vmatpush1.msra.mxu0 %v431
        %467 = vmatprep.subr.mxu0 0.0
        %468 = vmatpush1.msra.mxu0 %v432
        %469 = vmatprep.subr.mxu0 0.0
        %470 = vmatpush1.msra.mxu0 %v433
        %471 = vmatprep.subr.mxu0 0.0
        %472 = vmatpush1.msra.mxu0 %v434
        %473 = vmatprep.subr.mxu0 0.0
        %474 = vmatpush1.msra.mxu0 %v435
        %475 = vmatprep.subr.mxu0 0.0
        %476 = vmatpush1.msra.mxu0 %v436
        %477 = vmatprep.subr.mxu0 0.0
        %478 = vmatpush1.msra.mxu0 0.0
        %479 = vmatprep.subr.mxu0 0.0
        %480 = vmatpush1.msra.mxu0 0.0
        %481 = vmatprep.subr.mxu0 0.0
        %482 = vmatpush1.msra.mxu0 0.0
        %483 = vmatprep.subr.mxu0 0.0
        %484 = vmatpush1.msra.mxu0 0.0
        %485 = vmatprep.subr.mxu0 0.0
        %486 = vmatpush1.msra.mxu0 0.0
        %487 = vmatprep.subr.mxu0 0.0
        %488 = vmatpush1.msra.mxu0 0.0
        %489 = vmatprep.subr.mxu0 0.0
        %490 = vmatpush1.msra.mxu0 0.0
        %491 = vmatprep.subr.mxu0 0.0
        %492 = vmatpush1.msra.mxu0 0.0
        %493 = vmatprep.subr.mxu0 0.0
        %494 = vmatpush1.msra.mxu0 0.0
        %495 = vmatprep.subr.mxu0 0.0
        %496 = vmatpush1.msra.mxu0 0.0
        %497 = vmatprep.subr.mxu0 0.0
        %498 = vmatpush1.msra.mxu0 0.0
        %499 = vmatprep.subr.mxu0 0.0
        %500 = vmatpush1.msra.mxu0 0.0
        %501 = vmatprep.subr.mxu0 0.0
        %502 = vmatpush1.msra.mxu0 0.0
        %503 = vmatprep.subr.mxu0 0.0
        %504 = vmatpush1.msra.mxu0 0.0
        %505 = vmatprep.subr.mxu0 0.0
        %506 = vmatpush1.msra.mxu0 0.0
        %507 = vmatprep.subr.mxu0 0.0
        %508 = vmatpush1.msra.mxu0 0.0
        %509 = vmatprep.mubr.f32.mxu0 0.0
        %510 = vmatmul.mubr.f32.gmra.mrb[0].mxu0 %v404
        %v511 = vpop.f32.mrb[0].mxu0
        %v512 = vadd.f32 %v443, %v511
        %v513 = vpop.f32.mrb[0].mxu0
        %514 = vmatprep.mubr.f32.mxu0 0.0
        %515 = vmatmul.mubr.f32.gmra.mrb[0].mxu0 %v405
        %v516 = vpop.f32.mrb[0].mxu0
        %v517 = vadd.f32 %v443, %v516
        %v518 = vpop.f32.mrb[0].mxu0
        %519 = vmatprep.mubr.f32.mxu0 0.0
        %520 = vmatmul.mubr.f32.gmra.mrb[0].mxu0 %v406
        %v521 = vpop.f32.mrb[0].mxu0
        %v522 = vadd.f32 %v443, %v521
        %v523 = vpop.f32.mrb[0].mxu0
        %524 = vmatprep.mubr.f32.mxu0 0.0
        %525 = vmatmul.mubr.f32.gmra.mrb[0].mxu0 %v407
        %v526 = vpop.f32.mrb[0].mxu0
        %v527 = vadd.f32 %v443, %v526
        %v528 = vpop.f32.mrb[0].mxu0
        %529 = vmatprep.mubr.f32.mxu0 0.0
        %530 = vmatmul.mubr.f32.gmra.mrb[0].mxu0 %v408
        %v531 = vpop.f32.mrb[0].mxu0
        %v532 = vadd.f32 %v443, %v531
        %v533 = vpop.f32.mrb[0].mxu0
        %534 = vmatprep.mubr.f32.mxu0 0.0
        %535 = vmatmul.mubr.f32.gmra.mrb[0].mxu0 %v409
        %v536 = vpop.f32.mrb[0].mxu0
        %v537 = vadd.f32 %v443, %v536
        %v538 = vpop.f32.mrb[0].mxu0
        %539 = vmatprep.mubr.f32.mxu0 0.0
        %540 = vmatmul.mubr.f32.gmra.mrb[0].mxu0 %v410
        %v541 = vpop.f32.mrb[0].mxu0
        %v542 = vadd.f32 %v443, %v541
        %v543 = vpop.f32.mrb[0].mxu0
        %544 = vmatprep.mubr.f32.mxu0 0.0
        %545 = vmatmul.mubr.f32.gmra.mrb[0].mxu0 %v411
        %v546 = vpop.f32.mrb[0].mxu0
        %v547 = vadd.f32 %v443, %v546
        %v548 = vpop.f32.mrb[0].mxu0
        %549 = vmatprep.mubr.f32.mxu0 0.0
        %550 = vmatmul.mubr.f32.gmra.mrb[0].mxu0 %v412
        %v551 = vpop.f32.mrb[0].mxu0
        %v552 = vadd.f32 %v443, %v551
        %v553 = vpop.f32.mrb[0].mxu0
        %554 = vmatprep.mubr.f32.mxu0 0.0
        %555 = vmatmul.mubr.f32.gmra.mrb[0].mxu0 %v413
        %v556 = vpop.f32.mrb[0].mxu0
        %v557 = vadd.f32 %v443, %v556
        %v558 = vpop.f32.mrb[0].mxu0
        %559 = vmatprep.mubr.f32.mxu0 0.0
        %560 = vmatmul.mubr.f32.gmra.mrb[0].mxu0 %v414
        %v561 = vpop.f32.mrb[0].mxu0
        %v562 = vadd.f32 %v443, %v561
        %v563 = vpop.f32.mrb[0].mxu0
        %564 = vmatprep.mubr.f32.mxu0 0.0
        %565 = vmatmul.mubr.f32.gmra.mrb[0].mxu0 %v415
        %v566 = vpop.f32.mrb[0].mxu0
        %v567 = vadd.f32 %v443, %v566
        %v568 = vpop.f32.mrb[0].mxu0
        %569 = vmatprep.mubr.f32.mxu0 0.0
        %570 = vmatmul.mubr.f32.gmra.mrb[0].mxu0 %v416
        %v571 = vpop.f32.mrb[0].mxu0
        %v572 = vadd.f32 %v443, %v571
        %v573 = vpop.f32.mrb[0].mxu0
        %574 = vmatprep.mubr.f32.mxu0 0.0
        %575 = vmatmul.mubr.f32.gmra.mrb[0].mxu0 %v417
        %v576 = vpop.f32.mrb[0].mxu0
        %v577 = vadd.f32 %v443, %v576
        %v578 = vpop.f32.mrb[0].mxu0
        %579 = vmatprep.mubr.f32.mxu0 0.0
        %580 = vmatmul.mubr.f32.gmra.mrb[0].mxu0 %v418
        %v581 = vpop.f32.mrb[0].mxu0
        %v582 = vadd.f32 %v443, %v581
        %v583 = vpop.f32.mrb[0].mxu0
        %584 = vmatprep.mubr.f32.mxu0 0.0
        %585 = vmatmul.mubr.f32.gmra.mrb[0].mxu0 %v419
        %v586 = vpop.f32.mrb[0].mxu0
        %v587 = vadd.f32 %v443, %v586
        %v588 = vpop.f32.mrb[0].mxu0
        %589 = vdwg.mxu0
        %v590 = vmax.f32 %v512, 0.0
        %v591 = vmax.f32 %v517, 0.0
        %v592 = vmax.f32 %v522, 0.0
        %v593 = vmax.f32 %v527, 0.0
        %v594 = vmax.f32 %v532, 0.0
        %v595 = vmax.f32 %v537, 0.0
        %v596 = vmax.f32 %v542, 0.0
        %v597 = vmax.f32 %v547, 0.0
        %v598 = vmax.f32 %v552, 0.0
        %v599 = vmax.f32 %v557, 0.0
        %v600 = vmax.f32 %v562, 0.0
        %v601 = vmax.f32 %v567, 0.0
        %v602 = vmax.f32 %v572, 0.0
        %v603 = vmax.f32 %v577, 0.0
        %v604 = vmax.f32 %v582, 0.0
        %v605 = vmax.f32 %v587, 0.0
        %s606 = scalar_lea.vmem [#allocation5], 256
        %v607 = vld [vmem:[%s606] sm:$0xff]
        %v608 = vld [vmem:[%s606 + $0x8] sm:$0xff]
        %v609 = vld [vmem:[%s606 + $0x10] sm:$0xff]
        %v610 = vld [vmem:[%s606 + $0x18] sm:$0xff]
        %v611 = vld [vmem:[%s606 + $0x20] sm:$0xff]
        %v612 = vld [vmem:[%s606 + $0x28] sm:$0xff]
        %v613 = vld [vmem:[%s606 + $0x30] sm:$0xff]
        %v614 = vld [vmem:[%s606 + $0x38] sm:$0xff]
        %v615 = vld [vmem:[%s606 + $0x40] sm:$0xff]
        %v616 = vld [vmem:[%s606 + $0x48] sm:$0xff]
        %v617 = vld [vmem:[%s606 + $0x50] sm:$0xff]
        %v618 = vld [vmem:[%s606 + $0x58] sm:$0xff]
        %v619 = vld [vmem:[%s606 + $0x60] sm:$0xff]
        %v620 = vld [vmem:[%s606 + $0x68] sm:$0xff]
        %v621 = vld [vmem:[%s606 + $0x70] sm:$0xff]
        %v622 = vld [vmem:[%s606 + $0x78] sm:$0xff]
        %s623 = scalar_lea.vmem [#allocation7], 2
        %v624 = vld [vmem:[%s623] sm:$0x1]
        %v626 = vlaneseq
        %v627 = vshrl.u32 %v626, 7
        %v628 = vsub.s32 0, %v627
        %v629 = vrot.slane %v624, %v628
        %631 = vmatprep.subr.mxu0 0.0
        %632 = vmatpush1.msra.mxu0 %v607
        %633 = vmatprep.subr.mxu0 0.0
        %634 = vmatpush1.msra.mxu0 %v608
        %635 = vmatprep.subr.mxu0 0.0
        %636 = vmatpush1.msra.mxu0 %v609
        %637 = vmatprep.subr.mxu0 0.0
        %638 = vmatpush1.msra.mxu0 %v610
        %639 = vmatprep.subr.mxu0 0.0
        %640 = vmatpush1.msra.mxu0 %v611
        %641 = vmatprep.subr.mxu0 0.0
        %642 = vmatpush1.msra.mxu0 %v612
        %643 = vmatprep.subr.mxu0 0.0
        %644 = vmatpush1.msra.mxu0 %v613
        %645 = vmatprep.subr.mxu0 0.0
        %646 = vmatpush1.msra.mxu0 %v614
        %647 = vmatprep.subr.mxu0 0.0
        %648 = vmatpush1.msra.mxu0 %v615
        %649 = vmatprep.subr.mxu0 0.0
        %650 = vmatpush1.msra.mxu0 %v616
        %651 = vmatprep.subr.mxu0 0.0
        %652 = vmatpush1.msra.mxu0 %v617
        %653 = vmatprep.subr.mxu0 0.0
        %654 = vmatpush1.msra.mxu0 %v618
        %655 = vmatprep.subr.mxu0 0.0
        %656 = vmatpush1.msra.mxu0 %v619
        %657 = vmatprep.subr.mxu0 0.0
        %658 = vmatpush1.msra.mxu0 %v620
        %659 = vmatprep.subr.mxu0 0.0
        %660 = vmatpush1.msra.mxu0 %v621
        %661 = vmatprep.subr.mxu0 0.0
        %662 = vmatpush1.msra.mxu0 %v622
        %663 = vmatprep.subr.mxu0 0.0
        %664 = vmatpush1.msra.mxu0 0.0
        %665 = vmatprep.subr.mxu0 0.0
        %666 = vmatpush1.msra.mxu0 0.0
        %667 = vmatprep.subr.mxu0 0.0
        %668 = vmatpush1.msra.mxu0 0.0
        %669 = vmatprep.subr.mxu0 0.0
        %670 = vmatpush1.msra.mxu0 0.0
        %671 = vmatprep.subr.mxu0 0.0
        %672 = vmatpush1.msra.mxu0 0.0
        %673 = vmatprep.subr.mxu0 0.0
        %674 = vmatpush1.msra.mxu0 0.0
        %675 = vmatprep.subr.mxu0 0.0
        %676 = vmatpush1.msra.mxu0 0.0
        %677 = vmatprep.subr.mxu0 0.0
        %678 = vmatpush1.msra.mxu0 0.0
        %679 = vmatprep.subr.mxu0 0.0
        %680 = vmatpush1.msra.mxu0 0.0
        %681 = vmatprep.subr.mxu0 0.0
        %682 = vmatpush1.msra.mxu0 0.0
        %683 = vmatprep.subr.mxu0 0.0
        %684 = vmatpush1.msra.mxu0 0.0
        %685 = vmatprep.subr.mxu0 0.0
        %686 = vmatpush1.msra.mxu0 0.0
        %687 = vmatprep.subr.mxu0 0.0
        %688 = vmatpush1.msra.mxu0 0.0
        %689 = vmatprep.subr.mxu0 0.0
        %690 = vmatpush1.msra.mxu0 0.0
        %691 = vmatprep.subr.mxu0 0.0
        %692 = vmatpush1.msra.mxu0 0.0
        %693 = vmatprep.subr.mxu0 0.0
        %694 = vmatpush1.msra.mxu0 0.0
        %695 = vmatprep.mubr.f32.mxu0 0.0
        %696 = vmatmul.mubr.f32.gmra.mrb[0].mxu0 %v590
        %v697 = vpop.f32.mrb[0].mxu0
        %v698 = vadd.f32 %v629, %v697
        %v699 = vpop.f32.mrb[0].mxu0
        %700 = vmatprep.mubr.f32.mxu0 0.0
        %701 = vmatmul.mubr.f32.gmra.mrb[0].mxu0 %v591
        %v702 = vpop.f32.mrb[0].mxu0
        %v703 = vadd.f32 %v629, %v702
        %v704 = vpop.f32.mrb[0].mxu0
        %705 = vmatprep.mubr.f32.mxu0 0.0
        %706 = vmatmul.mubr.f32.gmra.mrb[0].mxu0 %v592
        %v707 = vpop.f32.mrb[0].mxu0
        %v708 = vadd.f32 %v629, %v707
        %v709 = vpop.f32.mrb[0].mxu0
        %710 = vmatprep.mubr.f32.mxu0 0.0
        %711 = vmatmul.mubr.f32.gmra.mrb[0].mxu0 %v593
        %v712 = vpop.f32.mrb[0].mxu0
        %v713 = vadd.f32 %v629, %v712
        %v714 = vpop.f32.mrb[0].mxu0
        %715 = vmatprep.mubr.f32.mxu0 0.0
        %716 = vmatmul.mubr.f32.gmra.mrb[0].mxu0 %v594
        %v717 = vpop.f32.mrb[0].mxu0
        %v718 = vadd.f32 %v629, %v717
        %v719 = vpop.f32.mrb[0].mxu0
        %720 = vmatprep.mubr.f32.mxu0 0.0
        %721 = vmatmul.mubr.f32.gmra.mrb[0].mxu0 %v595
        %v722 = vpop.f32.mrb[0].mxu0
        %v723 = vadd.f32 %v629, %v722
        %v724 = vpop.f32.mrb[0].mxu0
        %725 = vmatprep.mubr.f32.mxu0 0.0
        %726 = vmatmul.mubr.f32.gmra.mrb[0].mxu0 %v596
        %v727 = vpop.f32.mrb[0].mxu0
        %v728 = vadd.f32 %v629, %v727
        %v729 = vpop.f32.mrb[0].mxu0
        %730 = vmatprep.mubr.f32.mxu0 0.0
        %731 = vmatmul.mubr.f32.gmra.mrb[0].mxu0 %v597
        %v732 = vpop.f32.mrb[0].mxu0
        %v733 = vadd.f32 %v629, %v732
        %v734 = vpop.f32.mrb[0].mxu0
        %735 = vmatprep.mubr.f32.mxu0 0.0
        %736 = vmatmul.mubr.f32.gmra.mrb[0].mxu0 %v598
        %v737 = vpop.f32.mrb[0].mxu0
        %v738 = vadd.f32 %v629, %v737
        %v739 = vpop.f32.mrb[0].mxu0
        %740 = vmatprep.mubr.f32.mxu0 0.0
        %741 = vmatmul.mubr.f32.gmra.mrb[0].mxu0 %v599
        %v742 = vpop.f32.mrb[0].mxu0
        %v743 = vadd.f32 %v629, %v742
        %v744 = vpop.f32.mrb[0].mxu0
        %745 = vmatprep.mubr.f32.mxu0 0.0
        %746 = vmatmul.mubr.f32.gmra.mrb[0].mxu0 %v600
        %v747 = vpop.f32.mrb[0].mxu0
        %v748 = vadd.f32 %v629, %v747
        %v749 = vpop.f32.mrb[0].mxu0
        %750 = vmatprep.mubr.f32.mxu0 0.0
        %751 = vmatmul.mubr.f32.gmra.mrb[0].mxu0 %v601
        %v752 = vpop.f32.mrb[0].mxu0
        %v753 = vadd.f32 %v629, %v752
        %v754 = vpop.f32.mrb[0].mxu0
        %755 = vmatprep.mubr.f32.mxu0 0.0
        %756 = vmatmul.mubr.f32.gmra.mrb[0].mxu0 %v602
        %v757 = vpop.f32.mrb[0].mxu0
        %v758 = vadd.f32 %v629, %v757
        %v759 = vpop.f32.mrb[0].mxu0
        %760 = vmatprep.mubr.f32.mxu0 0.0
        %761 = vmatmul.mubr.f32.gmra.mrb[0].mxu0 %v603
        %v762 = vpop.f32.mrb[0].mxu0
        %v763 = vadd.f32 %v629, %v762
        %v764 = vpop.f32.mrb[0].mxu0
        %765 = vmatprep.mubr.f32.mxu0 0.0
        %766 = vmatmul.mubr.f32.gmra.mrb[0].mxu0 %v604
        %v767 = vpop.f32.mrb[0].mxu0
        %v768 = vadd.f32 %v629, %v767
        %v769 = vpop.f32.mrb[0].mxu0
        %770 = vmatprep.mubr.f32.mxu0 0.0
        %771 = vmatmul.mubr.f32.gmra.mrb[0].mxu0 %v605
        %v772 = vpop.f32.mrb[0].mxu0
        %v773 = vadd.f32 %v629, %v772
        %v774 = vpop.f32.mrb[0].mxu0
        %775 = vdwg.mxu0
        %v776 = vmax.f32 %v698, 0.0
        %v777 = vmax.f32 %v703, 0.0
        %v778 = vmax.f32 %v708, 0.0
        %v779 = vmax.f32 %v713, 0.0
        %v780 = vmax.f32 %v718, 0.0
        %v781 = vmax.f32 %v723, 0.0
        %v782 = vmax.f32 %v728, 0.0
        %v783 = vmax.f32 %v733, 0.0
        %v784 = vmax.f32 %v738, 0.0
        %v785 = vmax.f32 %v743, 0.0
        %v786 = vmax.f32 %v748, 0.0
        %v787 = vmax.f32 %v753, 0.0
        %v788 = vmax.f32 %v758, 0.0
        %v789 = vmax.f32 %v763, 0.0
        %v790 = vmax.f32 %v768, 0.0
        %v791 = vmax.f32 %v773, 0.0
        %s792 = scalar_lea.vmem [#allocation5], 384
        %v793 = vld [vmem:[%s792] sm:$0xff]
        %v794 = vld [vmem:[%s792 + $0x8] sm:$0xff]
        %v795 = vld [vmem:[%s792 + $0x10] sm:$0xff]
        %v796 = vld [vmem:[%s792 + $0x18] sm:$0xff]
        %v797 = vld [vmem:[%s792 + $0x20] sm:$0xff]
        %v798 = vld [vmem:[%s792 + $0x28] sm:$0xff]
        %v799 = vld [vmem:[%s792 + $0x30] sm:$0xff]
        %v800 = vld [vmem:[%s792 + $0x38] sm:$0xff]
        %v801 = vld [vmem:[%s792 + $0x40] sm:$0xff]
        %v802 = vld [vmem:[%s792 + $0x48] sm:$0xff]
        %v803 = vld [vmem:[%s792 + $0x50] sm:$0xff]
        %v804 = vld [vmem:[%s792 + $0x58] sm:$0xff]
        %v805 = vld [vmem:[%s792 + $0x60] sm:$0xff]
        %v806 = vld [vmem:[%s792 + $0x68] sm:$0xff]
        %v807 = vld [vmem:[%s792 + $0x70] sm:$0xff]
        %v808 = vld [vmem:[%s792 + $0x78] sm:$0xff]
        %s809 = scalar_lea.vmem [#allocation7], 3
        %v810 = vld [vmem:[%s809] sm:$0x1]
        %v812 = vlaneseq
        %v813 = vshrl.u32 %v812, 7
        %v814 = vsub.s32 0, %v813
        %v815 = vrot.slane %v810, %v814
        %817 = vmatprep.subr.mxu0 0.0
        %818 = vmatpush1.msra.mxu0 %v793
        %819 = vmatprep.subr.mxu0 0.0
        %820 = vmatpush1.msra.mxu0 %v794
        %821 = vmatprep.subr.mxu0 0.0
        %822 = vmatpush1.msra.mxu0 %v795
        %823 = vmatprep.subr.mxu0 0.0
        %824 = vmatpush1.msra.mxu0 %v796
        %825 = vmatprep.subr.mxu0 0.0
        %826 = vmatpush1.msra.mxu0 %v797
        %827 = vmatprep.subr.mxu0 0.0
        %828 = vmatpush1.msra.mxu0 %v798
        %829 = vmatprep.subr.mxu0 0.0
        %830 = vmatpush1.msra.mxu0 %v799
        %831 = vmatprep.subr.mxu0 0.0
        %832 = vmatpush1.msra.mxu0 %v800
        %833 = vmatprep.subr.mxu0 0.0
        %834 = vmatpush1.msra.mxu0 %v801
        %835 = vmatprep.subr.mxu0 0.0
        %836 = vmatpush1.msra.mxu0 %v802
        %837 = vmatprep.subr.mxu0 0.0
        %838 = vmatpush1.msra.mxu0 %v803
        %839 = vmatprep.subr.mxu0 0.0
        %840 = vmatpush1.msra.mxu0 %v804
        %841 = vmatprep.subr.mxu0 0.0
        %842 = vmatpush1.msra.mxu0 %v805
        %843 = vmatprep.subr.mxu0 0.0
        %844 = vmatpush1.msra.mxu0 %v806
        %845 = vmatprep.subr.mxu0 0.0
        %846 = vmatpush1.msra.mxu0 %v807
        %847 = vmatprep.subr.mxu0 0.0
        %848 = vmatpush1.msra.mxu0 %v808
        %849 = vmatprep.subr.mxu0 0.0
        %850 = vmatpush1.msra.mxu0 0.0
        %851 = vmatprep.subr.mxu0 0.0
        %852 = vmatpush1.msra.mxu0 0.0
        %853 = vmatprep.subr.mxu0 0.0
        %854 = vmatpush1.msra.mxu0 0.0
        %855 = vmatprep.subr.mxu0 0.0
        %856 = vmatpush1.msra.mxu0 0.0
        %857 = vmatprep.subr.mxu0 0.0
        %858 = vmatpush1.msra.mxu0 0.0
        %859 = vmatprep.subr.mxu0 0.0
        %860 = vmatpush1.msra.mxu0 0.0
        %861 = vmatprep.subr.mxu0 0.0
        %862 = vmatpush1.msra.mxu0 0.0
        %863 = vmatprep.subr.mxu0 0.0
        %864 = vmatpush1.msra.mxu0 0.0
        %865 = vmatprep.subr.mxu0 0.0
        %866 = vmatpush1.msra.mxu0 0.0
        %867 = vmatprep.subr.mxu0 0.0
        %868 = vmatpush1.msra.mxu0 0.0
        %869 = vmatprep.subr.mxu0 0.0
        %870 = vmatpush1.msra.mxu0 0.0
        %871 = vmatprep.subr.mxu0 0.0
        %872 = vmatpush1.msra.mxu0 0.0
        %873 = vmatprep.subr.mxu0 0.0
        %874 = vmatpush1.msra.mxu0 0.0
        %875 = vmatprep.subr.mxu0 0.0
        %876 = vmatpush1.msra.mxu0 0.0
        %877 = vmatprep.subr.mxu0 0.0
        %878 = vmatpush1.msra.mxu0 0.0
        %879 = vmatprep.subr.mxu0 0.0
        %880 = vmatpush1.msra.mxu0 0.0
        %881 = vmatprep.mubr.f32.mxu0 0.0
        %882 = vmatmul.mubr.f32.gmra.mrb[0].mxu0 %v776
        %v883 = vpop.f32.mrb[0].mxu0
        %v884 = vadd.f32 %v815, %v883
        %v885 = vpop.f32.mrb[0].mxu0
        %886 = vmatprep.mubr.f32.mxu0 0.0
        %887 = vmatmul.mubr.f32.gmra.mrb[0].mxu0 %v777
        %v888 = vpop.f32.mrb[0].mxu0
        %v889 = vadd.f32 %v815, %v888
        %v890 = vpop.f32.mrb[0].mxu0
        %891 = vmatprep.mubr.f32.mxu0 0.0
        %892 = vmatmul.mubr.f32.gmra.mrb[0].mxu0 %v778
        %v893 = vpop.f32.mrb[0].mxu0
        %v894 = vadd.f32 %v815, %v893
        %v895 = vpop.f32.mrb[0].mxu0
        %896 = vmatprep.mubr.f32.mxu0 0.0
        %897 = vmatmul.mubr.f32.gmra.mrb[0].mxu0 %v779
        %v898 = vpop.f32.mrb[0].mxu0
        %v899 = vadd.f32 %v815, %v898
        %v900 = vpop.f32.mrb[0].mxu0
        %901 = vmatprep.mubr.f32.mxu0 0.0
        %902 = vmatmul.mubr.f32.gmra.mrb[0].mxu0 %v780
        %v903 = vpop.f32.mrb[0].mxu0
        %v904 = vadd.f32 %v815, %v903
        %v905 = vpop.f32.mrb[0].mxu0
        %906 = vmatprep.mubr.f32.mxu0 0.0
        %907 = vmatmul.mubr.f32.gmra.mrb[0].mxu0 %v781
        %v908 = vpop.f32.mrb[0].mxu0
        %v909 = vadd.f32 %v815, %v908
        %v910 = vpop.f32.mrb[0].mxu0
        %911 = vmatprep.mubr.f32.mxu0 0.0
        %912 = vmatmul.mubr.f32.gmra.mrb[0].mxu0 %v782
        %v913 = vpop.f32.mrb[0].mxu0
        %v914 = vadd.f32 %v815, %v913
        %v915 = vpop.f32.mrb[0].mxu0
        %916 = vmatprep.mubr.f32.mxu0 0.0
        %917 = vmatmul.mubr.f32.gmra.mrb[0].mxu0 %v783
        %v918 = vpop.f32.mrb[0].mxu0
        %v919 = vadd.f32 %v815, %v918
        %v920 = vpop.f32.mrb[0].mxu0
        %921 = vmatprep.mubr.f32.mxu0 0.0
        %922 = vmatmul.mubr.f32.gmra.mrb[0].mxu0 %v784
        %v923 = vpop.f32.mrb[0].mxu0
        %v924 = vadd.f32 %v815, %v923
        %v925 = vpop.f32.mrb[0].mxu0
        %926 = vmatprep.mubr.f32.mxu0 0.0
        %927 = vmatmul.mubr.f32.gmra.mrb[0].mxu0 %v785
        %v928 = vpop.f32.mrb[0].mxu0
        %v929 = vadd.f32 %v815, %v928
        %v930 = vpop.f32.mrb[0].mxu0
        %931 = vmatprep.mubr.f32.mxu0 0.0
        %932 = vmatmul.mubr.f32.gmra.mrb[0].mxu0 %v786
        %v933 = vpop.f32.mrb[0].mxu0
        %v934 = vadd.f32 %v815, %v933
        %v935 = vpop.f32.mrb[0].mxu0
        %936 = vmatprep.mubr.f32.mxu0 0.0
        %937 = vmatmul.mubr.f32.gmra.mrb[0].mxu0 %v787
        %v938 = vpop.f32.mrb[0].mxu0
        %v939 = vadd.f32 %v815, %v938
        %v940 = vpop.f32.mrb[0].mxu0
        %941 = vmatprep.mubr.f32.mxu0 0.0
        %942 = vmatmul.mubr.f32.gmra.mrb[0].mxu0 %v788
        %v943 = vpop.f32.mrb[0].mxu0
        %v944 = vadd.f32 %v815, %v943
        %v945 = vpop.f32.mrb[0].mxu0
        %946 = vmatprep.mubr.f32.mxu0 0.0
        %947 = vmatmul.mubr.f32.gmra.mrb[0].mxu0 %v789
        %v948 = vpop.f32.mrb[0].mxu0
        %v949 = vadd.f32 %v815, %v948
        %v950 = vpop.f32.mrb[0].mxu0
        %951 = vmatprep.mubr.f32.mxu0 0.0
        %952 = vmatmul.mubr.f32.gmra.mrb[0].mxu0 %v790
        %v953 = vpop.f32.mrb[0].mxu0
        %v954 = vadd.f32 %v815, %v953
        %v955 = vpop.f32.mrb[0].mxu0
        %956 = vmatprep.mubr.f32.mxu0 0.0
        %957 = vmatmul.mubr.f32.gmra.mrb[0].mxu0 %v791
        %v958 = vpop.f32.mrb[0].mxu0
        %v959 = vadd.f32 %v815, %v958
        %v960 = vpop.f32.mrb[0].mxu0
        %961 = vdwg.mxu0
        %s962 = scalar_lea.vmem [#allocation5], 512
        %v963 = vld [vmem:[%s962] sm:$0xff]
        %v964 = vld [vmem:[%s962 + $0x8] sm:$0xff]
        %v965 = vld [vmem:[%s962 + $0x10] sm:$0xff]
        %v966 = vld [vmem:[%s962 + $0x18] sm:$0xff]
        %v967 = vld [vmem:[%s962 + $0x20] sm:$0xff]
        %v968 = vld [vmem:[%s962 + $0x28] sm:$0xff]
        %v969 = vld [vmem:[%s962 + $0x30] sm:$0xff]
        %v970 = vld [vmem:[%s962 + $0x38] sm:$0xff]
        %v971 = vld [vmem:[%s962 + $0x40] sm:$0xff]
        %v972 = vld [vmem:[%s962 + $0x48] sm:$0xff]
        %v973 = vld [vmem:[%s962 + $0x50] sm:$0xff]
        %v974 = vld [vmem:[%s962 + $0x58] sm:$0xff]
        %v975 = vld [vmem:[%s962 + $0x60] sm:$0xff]
        %v976 = vld [vmem:[%s962 + $0x68] sm:$0xff]
        %v977 = vld [vmem:[%s962 + $0x70] sm:$0xff]
        %v978 = vld [vmem:[%s962 + $0x78] sm:$0xff]
        %s979 = scalar_lea.vmem [#allocation7], 4
        %v980 = vld [vmem:[%s979] sm:$0x1]
        %v982 = vlaneseq
        %v983 = vshrl.u32 %v982, 7
        %v984 = vsub.s32 0, %v983
        %v985 = vrot.slane %v980, %v984
        %987 = vmatprep.subr.mxu0 0.0
        %988 = vmatpush1.msra.mxu0 %v963
        %989 = vmatprep.subr.mxu0 0.0
        %990 = vmatpush1.msra.mxu0 %v964
        %991 = vmatprep.subr.mxu0 0.0
        %992 = vmatpush1.msra.mxu0 %v965
        %993 = vmatprep.subr.mxu0 0.0
        %994 = vmatpush1.msra.mxu0 %v966
        %995 = vmatprep.subr.mxu0 0.0
        %996 = vmatpush1.msra.mxu0 %v967
        %997 = vmatprep.subr.mxu0 0.0
        %998 = vmatpush1.msra.mxu0 %v968
        %999 = vmatprep.subr.mxu0 0.0
        %1000 = vmatpush1.msra.mxu0 %v969
        %1001 = vmatprep.subr.mxu0 0.0
        %1002 = vmatpush1.msra.mxu0 %v970
        %1003 = vmatprep.subr.mxu0 0.0
        %1004 = vmatpush1.msra.mxu0 %v971
        %1005 = vmatprep.subr.mxu0 0.0
        %1006 = vmatpush1.msra.mxu0 %v972
        %1007 = vmatprep.subr.mxu0 0.0
        %1008 = vmatpush1.msra.mxu0 %v973
        %1009 = vmatprep.subr.mxu0 0.0
        %1010 = vmatpush1.msra.mxu0 %v974
        %1011 = vmatprep.subr.mxu0 0.0
        %1012 = vmatpush1.msra.mxu0 %v975
        %1013 = vmatprep.subr.mxu0 0.0
        %1014 = vmatpush1.msra.mxu0 %v976
        %1015 = vmatprep.subr.mxu0 0.0
        %1016 = vmatpush1.msra.mxu0 %v977
        %1017 = vmatprep.subr.mxu0 0.0
        %1018 = vmatpush1.msra.mxu0 %v978
        %1019 = vmatprep.subr.mxu0 0.0
        %1020 = vmatpush1.msra.mxu0 0.0
        %1021 = vmatprep.subr.mxu0 0.0
        %1022 = vmatpush1.msra.mxu0 0.0
        %1023 = vmatprep.subr.mxu0 0.0
        %1024 = vmatpush1.msra.mxu0 0.0
        %1025 = vmatprep.subr.mxu0 0.0
        %1026 = vmatpush1.msra.mxu0 0.0
        %1027 = vmatprep.subr.mxu0 0.0
        %1028 = vmatpush1.msra.mxu0 0.0
        %1029 = vmatprep.subr.mxu0 0.0
        %1030 = vmatpush1.msra.mxu0 0.0
        %1031 = vmatprep.subr.mxu0 0.0
        %1032 = vmatpush1.msra.mxu0 0.0
        %1033 = vmatprep.subr.mxu0 0.0
        %1034 = vmatpush1.msra.mxu0 0.0
        %1035 = vmatprep.subr.mxu0 0.0
        %1036 = vmatpush1.msra.mxu0 0.0
        %1037 = vmatprep.subr.mxu0 0.0
        %1038 = vmatpush1.msra.mxu0 0.0
        %1039 = vmatprep.subr.mxu0 0.0
        %1040 = vmatpush1.msra.mxu0 0.0
        %1041 = vmatprep.subr.mxu0 0.0
        %1042 = vmatpush1.msra.mxu0 0.0
        %1043 = vmatprep.subr.mxu0 0.0
        %1044 = vmatpush1.msra.mxu0 0.0
        %1045 = vmatprep.subr.mxu0 0.0
        %1046 = vmatpush1.msra.mxu0 0.0
        %1047 = vmatprep.subr.mxu0 0.0
        %1048 = vmatpush1.msra.mxu0 0.0
        %1049 = vmatprep.subr.mxu0 0.0
        %1050 = vmatpush1.msra.mxu0 0.0
        %1051 = vmatprep.mubr.f32.mxu0 0.0
        %1052 = vmatmul.mubr.f32.gmra.mrb[0].mxu0 %v884
        %v1053 = vpop.f32.mrb[0].mxu0
        %v1054 = vadd.f32 %v985, %v1053
        %v1055 = vpop.f32.mrb[0].mxu0
        %1056 = vmatprep.mubr.f32.mxu0 0.0
        %1057 = vmatmul.mubr.f32.gmra.mrb[0].mxu0 %v889
        %v1058 = vpop.f32.mrb[0].mxu0
        %v1059 = vadd.f32 %v985, %v1058
        %v1060 = vpop.f32.mrb[0].mxu0
        %1061 = vmatprep.mubr.f32.mxu0 0.0
        %1062 = vmatmul.mubr.f32.gmra.mrb[0].mxu0 %v894
        %v1063 = vpop.f32.mrb[0].mxu0
        %v1064 = vadd.f32 %v985, %v1063
        %v1065 = vpop.f32.mrb[0].mxu0
        %1066 = vmatprep.mubr.f32.mxu0 0.0
        %1067 = vmatmul.mubr.f32.gmra.mrb[0].mxu0 %v899
        %v1068 = vpop.f32.mrb[0].mxu0
        %v1069 = vadd.f32 %v985, %v1068
        %v1070 = vpop.f32.mrb[0].mxu0
        %1071 = vmatprep.mubr.f32.mxu0 0.0
        %1072 = vmatmul.mubr.f32.gmra.mrb[0].mxu0 %v904
        %v1073 = vpop.f32.mrb[0].mxu0
        %v1074 = vadd.f32 %v985, %v1073
        %v1075 = vpop.f32.mrb[0].mxu0
        %1076 = vmatprep.mubr.f32.mxu0 0.0
        %1077 = vmatmul.mubr.f32.gmra.mrb[0].mxu0 %v909
        %v1078 = vpop.f32.mrb[0].mxu0
        %v1079 = vadd.f32 %v985, %v1078
        %v1080 = vpop.f32.mrb[0].mxu0
        %1081 = vmatprep.mubr.f32.mxu0 0.0
        %1082 = vmatmul.mubr.f32.gmra.mrb[0].mxu0 %v914
        %v1083 = vpop.f32.mrb[0].mxu0
        %v1084 = vadd.f32 %v985, %v1083
        %v1085 = vpop.f32.mrb[0].mxu0
        %1086 = vmatprep.mubr.f32.mxu0 0.0
        %1087 = vmatmul.mubr.f32.gmra.mrb[0].mxu0 %v919
        %v1088 = vpop.f32.mrb[0].mxu0
        %v1089 = vadd.f32 %v985, %v1088
        %v1090 = vpop.f32.mrb[0].mxu0
        %1091 = vmatprep.mubr.f32.mxu0 0.0
        %1092 = vmatmul.mubr.f32.gmra.mrb[0].mxu0 %v924
        %v1093 = vpop.f32.mrb[0].mxu0
        %v1094 = vadd.f32 %v985, %v1093
        %v1095 = vpop.f32.mrb[0].mxu0
        %1096 = vmatprep.mubr.f32.mxu0 0.0
        %1097 = vmatmul.mubr.f32.gmra.mrb[0].mxu0 %v929
        %v1098 = vpop.f32.mrb[0].mxu0
        %v1099 = vadd.f32 %v985, %v1098
        %v1100 = vpop.f32.mrb[0].mxu0
        %1101 = vmatprep.mubr.f32.mxu0 0.0
        %1102 = vmatmul.mubr.f32.gmra.mrb[0].mxu0 %v934
        %v1103 = vpop.f32.mrb[0].mxu0
        %v1104 = vadd.f32 %v985, %v1103
        %v1105 = vpop.f32.mrb[0].mxu0
        %1106 = vmatprep.mubr.f32.mxu0 0.0
        %1107 = vmatmul.mubr.f32.gmra.mrb[0].mxu0 %v939
        %v1108 = vpop.f32.mrb[0].mxu0
        %v1109 = vadd.f32 %v985, %v1108
        %v1110 = vpop.f32.mrb[0].mxu0
        %1111 = vmatprep.mubr.f32.mxu0 0.0
        %1112 = vmatmul.mubr.f32.gmra.mrb[0].mxu0 %v944
        %v1113 = vpop.f32.mrb[0].mxu0
        %v1114 = vadd.f32 %v985, %v1113
        %v1115 = vpop.f32.mrb[0].mxu0
        %1116 = vmatprep.mubr.f32.mxu0 0.0
        %1117 = vmatmul.mubr.f32.gmra.mrb[0].mxu0 %v949
        %v1118 = vpop.f32.mrb[0].mxu0
        %v1119 = vadd.f32 %v985, %v1118
        %v1120 = vpop.f32.mrb[0].mxu0
        %1121 = vmatprep.mubr.f32.mxu0 0.0
        %1122 = vmatmul.mubr.f32.gmra.mrb[0].mxu0 %v954
        %v1123 = vpop.f32.mrb[0].mxu0
        %v1124 = vadd.f32 %v985, %v1123
        %v1125 = vpop.f32.mrb[0].mxu0
        %1126 = vmatprep.mubr.f32.mxu0 0.0
        %1127 = vmatmul.mubr.f32.gmra.mrb[0].mxu0 %v959
        %v1128 = vpop.f32.mrb[0].mxu0
        %v1129 = vadd.f32 %v985, %v1128
        %v1130 = vpop.f32.mrb[0].mxu0
        %1131 = vdwg.mxu0
        %v1132 = vmax.f32 %v1054, 0.0
        %v1133 = vmax.f32 %v1059, 0.0
        %v1134 = vmax.f32 %v1064, 0.0
        %v1135 = vmax.f32 %v1069, 0.0
        %v1136 = vmax.f32 %v1074, 0.0
        %v1137 = vmax.f32 %v1079, 0.0
        %v1138 = vmax.f32 %v1084, 0.0
        %v1139 = vmax.f32 %v1089, 0.0
        %v1140 = vmax.f32 %v1094, 0.0
        %v1141 = vmax.f32 %v1099, 0.0
        %v1142 = vmax.f32 %v1104, 0.0
        %v1143 = vmax.f32 %v1109, 0.0
        %v1144 = vmax.f32 %v1114, 0.0
        %v1145 = vmax.f32 %v1119, 0.0
        %v1146 = vmax.f32 %v1124, 0.0
        %v1147 = vmax.f32 %v1129, 0.0
        %s1148 = scalar_lea.vmem [#allocation5], 640
        %v1149 = vld [vmem:[%s1148] sm:$0xff]
        %v1150 = vld [vmem:[%s1148 + $0x8] sm:$0xff]
        %v1151 = vld [vmem:[%s1148 + $0x10] sm:$0xff]
        %v1152 = vld [vmem:[%s1148 + $0x18] sm:$0xff]
        %v1153 = vld [vmem:[%s1148 + $0x20] sm:$0xff]
        %v1154 = vld [vmem:[%s1148 + $0x28] sm:$0xff]
        %v1155 = vld [vmem:[%s1148 + $0x30] sm:$0xff]
        %v1156 = vld [vmem:[%s1148 + $0x38] sm:$0xff]
        %v1157 = vld [vmem:[%s1148 + $0x40] sm:$0xff]
        %v1158 = vld [vmem:[%s1148 + $0x48] sm:$0xff]
        %v1159 = vld [vmem:[%s1148 + $0x50] sm:$0xff]
        %v1160 = vld [vmem:[%s1148 + $0x58] sm:$0xff]
        %v1161 = vld [vmem:[%s1148 + $0x60] sm:$0xff]
        %v1162 = vld [vmem:[%s1148 + $0x68] sm:$0xff]
        %v1163 = vld [vmem:[%s1148 + $0x70] sm:$0xff]
        %v1164 = vld [vmem:[%s1148 + $0x78] sm:$0xff]
        %s1165 = scalar_lea.vmem [#allocation7], 5
        %v1166 = vld [vmem:[%s1165] sm:$0x1]
        %v1168 = vlaneseq
        %v1169 = vshrl.u32 %v1168, 7
        %v1170 = vsub.s32 0, %v1169
        %v1171 = vrot.slane %v1166, %v1170
        %1173 = vmatprep.subr.mxu0 0.0
        %1174 = vmatpush1.msra.mxu0 %v1149
        %1175 = vmatprep.subr.mxu0 0.0
        %1176 = vmatpush1.msra.mxu0 %v1150
        %1177 = vmatprep.subr.mxu0 0.0
        %1178 = vmatpush1.msra.mxu0 %v1151
        %1179 = vmatprep.subr.mxu0 0.0
        %1180 = vmatpush1.msra.mxu0 %v1152
        %1181 = vmatprep.subr.mxu0 0.0
        %1182 = vmatpush1.msra.mxu0 %v1153
        %1183 = vmatprep.subr.mxu0 0.0
        %1184 = vmatpush1.msra.mxu0 %v1154
        %1185 = vmatprep.subr.mxu0 0.0
        %1186 = vmatpush1.msra.mxu0 %v1155
        %1187 = vmatprep.subr.mxu0 0.0
        %1188 = vmatpush1.msra.mxu0 %v1156
        %1189 = vmatprep.subr.mxu0 0.0
        %1190 = vmatpush1.msra.mxu0 %v1157
        %1191 = vmatprep.subr.mxu0 0.0
        %1192 = vmatpush1.msra.mxu0 %v1158
        %1193 = vmatprep.subr.mxu0 0.0
        %1194 = vmatpush1.msra.mxu0 %v1159
        %1195 = vmatprep.subr.mxu0 0.0
        %1196 = vmatpush1.msra.mxu0 %v1160
        %1197 = vmatprep.subr.mxu0 0.0
        %1198 = vmatpush1.msra.mxu0 %v1161
        %1199 = vmatprep.subr.mxu0 0.0
        %1200 = vmatpush1.msra.mxu0 %v1162
        %1201 = vmatprep.subr.mxu0 0.0
        %1202 = vmatpush1.msra.mxu0 %v1163
        %1203 = vmatprep.subr.mxu0 0.0
        %1204 = vmatpush1.msra.mxu0 %v1164
        %1205 = vmatprep.subr.mxu0 0.0
        %1206 = vmatpush1.msra.mxu0 0.0
        %1207 = vmatprep.subr.mxu0 0.0
        %1208 = vmatpush1.msra.mxu0 0.0
        %1209 = vmatprep.subr.mxu0 0.0
        %1210 = vmatpush1.msra.mxu0 0.0
        %1211 = vmatprep.subr.mxu0 0.0
        %1212 = vmatpush1.msra.mxu0 0.0
        %1213 = vmatprep.subr.mxu0 0.0
        %1214 = vmatpush1.msra.mxu0 0.0
        %1215 = vmatprep.subr.mxu0 0.0
        %1216 = vmatpush1.msra.mxu0 0.0
        %1217 = vmatprep.subr.mxu0 0.0
        %1218 = vmatpush1.msra.mxu0 0.0
        %1219 = vmatprep.subr.mxu0 0.0
        %1220 = vmatpush1.msra.mxu0 0.0
        %1221 = vmatprep.subr.mxu0 0.0
        %1222 = vmatpush1.msra.mxu0 0.0
        %1223 = vmatprep.subr.mxu0 0.0
        %1224 = vmatpush1.msra.mxu0 0.0
        %1225 = vmatprep.subr.mxu0 0.0
        %1226 = vmatpush1.msra.mxu0 0.0
        %1227 = vmatprep.subr.mxu0 0.0
        %1228 = vmatpush1.msra.mxu0 0.0
        %1229 = vmatprep.subr.mxu0 0.0
        %1230 = vmatpush1.msra.mxu0 0.0
        %1231 = vmatprep.subr.mxu0 0.0
        %1232 = vmatpush1.msra.mxu0 0.0
        %1233 = vmatprep.subr.mxu0 0.0
        %1234 = vmatpush1.msra.mxu0 0.0
        %1235 = vmatprep.subr.mxu0 0.0
        %1236 = vmatpush1.msra.mxu0 0.0
        %1237 = vmatprep.mubr.f32.mxu0 0.0
        %1238 = vmatmul.mubr.f32.gmra.mrb[0].mxu0 %v1132
        %v1239 = vpop.f32.mrb[0].mxu0
        %v1240 = vadd.f32 %v1171, %v1239
        %v1241 = vpop.f32.mrb[0].mxu0
        %1242 = vmatprep.mubr.f32.mxu0 0.0
        %1243 = vmatmul.mubr.f32.gmra.mrb[0].mxu0 %v1133
        %v1244 = vpop.f32.mrb[0].mxu0
        %v1245 = vadd.f32 %v1171, %v1244
        %v1246 = vpop.f32.mrb[0].mxu0
        %1247 = vmatprep.mubr.f32.mxu0 0.0
        %1248 = vmatmul.mubr.f32.gmra.mrb[0].mxu0 %v1134
        %v1249 = vpop.f32.mrb[0].mxu0
        %v1250 = vadd.f32 %v1171, %v1249
        %v1251 = vpop.f32.mrb[0].mxu0
        %1252 = vmatprep.mubr.f32.mxu0 0.0
        %1253 = vmatmul.mubr.f32.gmra.mrb[0].mxu0 %v1135
        %v1254 = vpop.f32.mrb[0].mxu0
        %v1255 = vadd.f32 %v1171, %v1254
        %v1256 = vpop.f32.mrb[0].mxu0
        %1257 = vmatprep.mubr.f32.mxu0 0.0
        %1258 = vmatmul.mubr.f32.gmra.mrb[0].mxu0 %v1136
        %v1259 = vpop.f32.mrb[0].mxu0
        %v1260 = vadd.f32 %v1171, %v1259
        %v1261 = vpop.f32.mrb[0].mxu0
        %1262 = vmatprep.mubr.f32.mxu0 0.0
        %1263 = vmatmul.mubr.f32.gmra.mrb[0].mxu0 %v1137
        %v1264 = vpop.f32.mrb[0].mxu0
        %v1265 = vadd.f32 %v1171, %v1264
        %v1266 = vpop.f32.mrb[0].mxu0
        %1267 = vmatprep.mubr.f32.mxu0 0.0
        %1268 = vmatmul.mubr.f32.gmra.mrb[0].mxu0 %v1138
        %v1269 = vpop.f32.mrb[0].mxu0
        %v1270 = vadd.f32 %v1171, %v1269
        %v1271 = vpop.f32.mrb[0].mxu0
        %1272 = vmatprep.mubr.f32.mxu0 0.0
        %1273 = vmatmul.mubr.f32.gmra.mrb[0].mxu0 %v1139
        %v1274 = vpop.f32.mrb[0].mxu0
        %v1275 = vadd.f32 %v1171, %v1274
        %v1276 = vpop.f32.mrb[0].mxu0
        %1277 = vmatprep.mubr.f32.mxu0 0.0
        %1278 = vmatmul.mubr.f32.gmra.mrb[0].mxu0 %v1140
        %v1279 = vpop.f32.mrb[0].mxu0
        %v1280 = vadd.f32 %v1171, %v1279
        %v1281 = vpop.f32.mrb[0].mxu0
        %1282 = vmatprep.mubr.f32.mxu0 0.0
        %1283 = vmatmul.mubr.f32.gmra.mrb[0].mxu0 %v1141
        %v1284 = vpop.f32.mrb[0].mxu0
        %v1285 = vadd.f32 %v1171, %v1284
        %v1286 = vpop.f32.mrb[0].mxu0
        %1287 = vmatprep.mubr.f32.mxu0 0.0
        %1288 = vmatmul.mubr.f32.gmra.mrb[0].mxu0 %v1142
        %v1289 = vpop.f32.mrb[0].mxu0
        %v1290 = vadd.f32 %v1171, %v1289
        %v1291 = vpop.f32.mrb[0].mxu0
        %1292 = vmatprep.mubr.f32.mxu0 0.0
        %1293 = vmatmul.mubr.f32.gmra.mrb[0].mxu0 %v1143
        %v1294 = vpop.f32.mrb[0].mxu0
        %v1295 = vadd.f32 %v1171, %v1294
        %v1296 = vpop.f32.mrb[0].mxu0
        %1297 = vmatprep.mubr.f32.mxu0 0.0
        %1298 = vmatmul.mubr.f32.gmra.mrb[0].mxu0 %v1144
        %v1299 = vpop.f32.mrb[0].mxu0
        %v1300 = vadd.f32 %v1171, %v1299
        %v1301 = vpop.f32.mrb[0].mxu0
        %1302 = vmatprep.mubr.f32.mxu0 0.0
        %1303 = vmatmul.mubr.f32.gmra.mrb[0].mxu0 %v1145
        %v1304 = vpop.f32.mrb[0].mxu0
        %v1305 = vadd.f32 %v1171, %v1304
        %v1306 = vpop.f32.mrb[0].mxu0
        %1307 = vmatprep.mubr.f32.mxu0 0.0
        %1308 = vmatmul.mubr.f32.gmra.mrb[0].mxu0 %v1146
        %v1309 = vpop.f32.mrb[0].mxu0
        %v1310 = vadd.f32 %v1171, %v1309
        %v1311 = vpop.f32.mrb[0].mxu0
        %1312 = vmatprep.mubr.f32.mxu0 0.0
        %1313 = vmatmul.mubr.f32.gmra.mrb[0].mxu0 %v1147
        %v1314 = vpop.f32.mrb[0].mxu0
        %v1315 = vadd.f32 %v1171, %v1314
        %v1316 = vpop.f32.mrb[0].mxu0
        %1317 = vdwg.mxu0
        %v1318 = vmax.f32 %v1240, 0.0
        %v1319 = vmax.f32 %v1245, 0.0
        %v1320 = vmax.f32 %v1250, 0.0
        %v1321 = vmax.f32 %v1255, 0.0
        %v1322 = vmax.f32 %v1260, 0.0
        %v1323 = vmax.f32 %v1265, 0.0
        %v1324 = vmax.f32 %v1270, 0.0
        %v1325 = vmax.f32 %v1275, 0.0
        %v1326 = vmax.f32 %v1280, 0.0
        %v1327 = vmax.f32 %v1285, 0.0
        %v1328 = vmax.f32 %v1290, 0.0
        %v1329 = vmax.f32 %v1295, 0.0
        %v1330 = vmax.f32 %v1300, 0.0
        %v1331 = vmax.f32 %v1305, 0.0
        %v1332 = vmax.f32 %v1310, 0.0
        %v1333 = vmax.f32 %v1315, 0.0
        %s1334 = scalar_lea.vmem [#allocation5], 768
        %v1335 = vld [vmem:[%s1334] sm:$0xff]
        %v1336 = vld [vmem:[%s1334 + $0x8] sm:$0xff]
        %v1337 = vld [vmem:[%s1334 + $0x10] sm:$0xff]
        %v1338 = vld [vmem:[%s1334 + $0x18] sm:$0xff]
        %v1339 = vld [vmem:[%s1334 + $0x20] sm:$0xff]
        %v1340 = vld [vmem:[%s1334 + $0x28] sm:$0xff]
        %v1341 = vld [vmem:[%s1334 + $0x30] sm:$0xff]
        %v1342 = vld [vmem:[%s1334 + $0x38] sm:$0xff]
        %v1343 = vld [vmem:[%s1334 + $0x40] sm:$0xff]
        %v1344 = vld [vmem:[%s1334 + $0x48] sm:$0xff]
        %v1345 = vld [vmem:[%s1334 + $0x50] sm:$0xff]
        %v1346 = vld [vmem:[%s1334 + $0x58] sm:$0xff]
        %v1347 = vld [vmem:[%s1334 + $0x60] sm:$0xff]
        %v1348 = vld [vmem:[%s1334 + $0x68] sm:$0xff]
        %v1349 = vld [vmem:[%s1334 + $0x70] sm:$0xff]
        %v1350 = vld [vmem:[%s1334 + $0x78] sm:$0xff]
        %s1351 = scalar_lea.vmem [#allocation7], 6
        %v1352 = vld [vmem:[%s1351] sm:$0x1]
        %v1354 = vlaneseq
        %v1355 = vshrl.u32 %v1354, 7
        %v1356 = vsub.s32 0, %v1355
        %v1357 = vrot.slane %v1352, %v1356
        %1359 = vmatprep.subr.mxu0 0.0
        %1360 = vmatpush1.msra.mxu0 %v1335
        %1361 = vmatprep.subr.mxu0 0.0
        %1362 = vmatpush1.msra.mxu0 %v1336
        %1363 = vmatprep.subr.mxu0 0.0
        %1364 = vmatpush1.msra.mxu0 %v1337
        %1365 = vmatprep.subr.mxu0 0.0
        %1366 = vmatpush1.msra.mxu0 %v1338
        %1367 = vmatprep.subr.mxu0 0.0
        %1368 = vmatpush1.msra.mxu0 %v1339
        %1369 = vmatprep.subr.mxu0 0.0
        %1370 = vmatpush1.msra.mxu0 %v1340
        %1371 = vmatprep.subr.mxu0 0.0
        %1372 = vmatpush1.msra.mxu0 %v1341
        %1373 = vmatprep.subr.mxu0 0.0
        %1374 = vmatpush1.msra.mxu0 %v1342
        %1375 = vmatprep.subr.mxu0 0.0
        %1376 = vmatpush1.msra.mxu0 %v1343
        %1377 = vmatprep.subr.mxu0 0.0
        %1378 = vmatpush1.msra.mxu0 %v1344
        %1379 = vmatprep.subr.mxu0 0.0
        %1380 = vmatpush1.msra.mxu0 %v1345
        %1381 = vmatprep.subr.mxu0 0.0
        %1382 = vmatpush1.msra.mxu0 %v1346
        %1383 = vmatprep.subr.mxu0 0.0
        %1384 = vmatpush1.msra.mxu0 %v1347
        %1385 = vmatprep.subr.mxu0 0.0
        %1386 = vmatpush1.msra.mxu0 %v1348
        %1387 = vmatprep.subr.mxu0 0.0
        %1388 = vmatpush1.msra.mxu0 %v1349
        %1389 = vmatprep.subr.mxu0 0.0
        %1390 = vmatpush1.msra.mxu0 %v1350
        %1391 = vmatprep.subr.mxu0 0.0
        %1392 = vmatpush1.msra.mxu0 0.0
        %1393 = vmatprep.subr.mxu0 0.0
        %1394 = vmatpush1.msra.mxu0 0.0
        %1395 = vmatprep.subr.mxu0 0.0
        %1396 = vmatpush1.msra.mxu0 0.0
        %1397 = vmatprep.subr.mxu0 0.0
        %1398 = vmatpush1.msra.mxu0 0.0
        %1399 = vmatprep.subr.mxu0 0.0
        %1400 = vmatpush1.msra.mxu0 0.0
        %1401 = vmatprep.subr.mxu0 0.0
        %1402 = vmatpush1.msra.mxu0 0.0
        %1403 = vmatprep.subr.mxu0 0.0
        %1404 = vmatpush1.msra.mxu0 0.0
        %1405 = vmatprep.subr.mxu0 0.0
        %1406 = vmatpush1.msra.mxu0 0.0
        %1407 = vmatprep.subr.mxu0 0.0
        %1408 = vmatpush1.msra.mxu0 0.0
        %1409 = vmatprep.subr.mxu0 0.0
        %1410 = vmatpush1.msra.mxu0 0.0
        %1411 = vmatprep.subr.mxu0 0.0
        %1412 = vmatpush1.msra.mxu0 0.0
        %1413 = vmatprep.subr.mxu0 0.0
        %1414 = vmatpush1.msra.mxu0 0.0
        %1415 = vmatprep.subr.mxu0 0.0
        %1416 = vmatpush1.msra.mxu0 0.0
        %1417 = vmatprep.subr.mxu0 0.0
        %1418 = vmatpush1.msra.mxu0 0.0
        %1419 = vmatprep.subr.mxu0 0.0
        %1420 = vmatpush1.msra.mxu0 0.0
        %1421 = vmatprep.subr.mxu0 0.0
        %1422 = vmatpush1.msra.mxu0 0.0
        %1423 = vmatprep.mubr.f32.mxu0 0.0
        %1424 = vmatmul.mubr.f32.gmra.mrb[0].mxu0 %v1318
        %v1425 = vpop.f32.mrb[0].mxu0
        %v1426 = vadd.f32 %v1357, %v1425
        %v1427 = vpop.f32.mrb[0].mxu0
        %1428 = vmatprep.mubr.f32.mxu0 0.0
        %1429 = vmatmul.mubr.f32.gmra.mrb[0].mxu0 %v1319
        %v1430 = vpop.f32.mrb[0].mxu0
        %v1431 = vadd.f32 %v1357, %v1430
        %v1432 = vpop.f32.mrb[0].mxu0
        %1433 = vmatprep.mubr.f32.mxu0 0.0
        %1434 = vmatmul.mubr.f32.gmra.mrb[0].mxu0 %v1320
        %v1435 = vpop.f32.mrb[0].mxu0
        %v1436 = vadd.f32 %v1357, %v1435
        %v1437 = vpop.f32.mrb[0].mxu0
        %1438 = vmatprep.mubr.f32.mxu0 0.0
        %1439 = vmatmul.mubr.f32.gmra.mrb[0].mxu0 %v1321
        %v1440 = vpop.f32.mrb[0].mxu0
        %v1441 = vadd.f32 %v1357, %v1440
        %v1442 = vpop.f32.mrb[0].mxu0
        %1443 = vmatprep.mubr.f32.mxu0 0.0
        %1444 = vmatmul.mubr.f32.gmra.mrb[0].mxu0 %v1322
        %v1445 = vpop.f32.mrb[0].mxu0
        %v1446 = vadd.f32 %v1357, %v1445
        %v1447 = vpop.f32.mrb[0].mxu0
        %1448 = vmatprep.mubr.f32.mxu0 0.0
        %1449 = vmatmul.mubr.f32.gmra.mrb[0].mxu0 %v1323
        %v1450 = vpop.f32.mrb[0].mxu0
        %v1451 = vadd.f32 %v1357, %v1450
        %v1452 = vpop.f32.mrb[0].mxu0
        %1453 = vmatprep.mubr.f32.mxu0 0.0
        %1454 = vmatmul.mubr.f32.gmra.mrb[0].mxu0 %v1324
        %v1455 = vpop.f32.mrb[0].mxu0
        %v1456 = vadd.f32 %v1357, %v1455
        %v1457 = vpop.f32.mrb[0].mxu0
        %1458 = vmatprep.mubr.f32.mxu0 0.0
        %1459 = vmatmul.mubr.f32.gmra.mrb[0].mxu0 %v1325
        %v1460 = vpop.f32.mrb[0].mxu0
        %v1461 = vadd.f32 %v1357, %v1460
        %v1462 = vpop.f32.mrb[0].mxu0
        %1463 = vmatprep.mubr.f32.mxu0 0.0
        %1464 = vmatmul.mubr.f32.gmra.mrb[0].mxu0 %v1326
        %v1465 = vpop.f32.mrb[0].mxu0
        %v1466 = vadd.f32 %v1357, %v1465
        %v1467 = vpop.f32.mrb[0].mxu0
        %1468 = vmatprep.mubr.f32.mxu0 0.0
        %1469 = vmatmul.mubr.f32.gmra.mrb[0].mxu0 %v1327
        %v1470 = vpop.f32.mrb[0].mxu0
        %v1471 = vadd.f32 %v1357, %v1470
        %v1472 = vpop.f32.mrb[0].mxu0
        %1473 = vmatprep.mubr.f32.mxu0 0.0
        %1474 = vmatmul.mubr.f32.gmra.mrb[0].mxu0 %v1328
        %v1475 = vpop.f32.mrb[0].mxu0
        %v1476 = vadd.f32 %v1357, %v1475
        %v1477 = vpop.f32.mrb[0].mxu0
        %1478 = vmatprep.mubr.f32.mxu0 0.0
        %1479 = vmatmul.mubr.f32.gmra.mrb[0].mxu0 %v1329
        %v1480 = vpop.f32.mrb[0].mxu0
        %v1481 = vadd.f32 %v1357, %v1480
        %v1482 = vpop.f32.mrb[0].mxu0
        %1483 = vmatprep.mubr.f32.mxu0 0.0
        %1484 = vmatmul.mubr.f32.gmra.mrb[0].mxu0 %v1330
        %v1485 = vpop.f32.mrb[0].mxu0
        %v1486 = vadd.f32 %v1357, %v1485
        %v1487 = vpop.f32.mrb[0].mxu0
        %1488 = vmatprep.mubr.f32.mxu0 0.0
        %1489 = vmatmul.mubr.f32.gmra.mrb[0].mxu0 %v1331
        %v1490 = vpop.f32.mrb[0].mxu0
        %v1491 = vadd.f32 %v1357, %v1490
        %v1492 = vpop.f32.mrb[0].mxu0
        %1493 = vmatprep.mubr.f32.mxu0 0.0
        %1494 = vmatmul.mubr.f32.gmra.mrb[0].mxu0 %v1332
        %v1495 = vpop.f32.mrb[0].mxu0
        %v1496 = vadd.f32 %v1357, %v1495
        %v1497 = vpop.f32.mrb[0].mxu0
        %1498 = vmatprep.mubr.f32.mxu0 0.0
        %1499 = vmatmul.mubr.f32.gmra.mrb[0].mxu0 %v1333
        %v1500 = vpop.f32.mrb[0].mxu0
        %v1501 = vadd.f32 %v1357, %v1500
        %v1502 = vpop.f32.mrb[0].mxu0
        %1503 = vdwg.mxu0
        %v1504 = vmax.f32 %v1426, 0.0
        %v1505 = vmax.f32 %v1431, 0.0
        %v1506 = vmax.f32 %v1436, 0.0
        %v1507 = vmax.f32 %v1441, 0.0
        %v1508 = vmax.f32 %v1446, 0.0
        %v1509 = vmax.f32 %v1451, 0.0
        %v1510 = vmax.f32 %v1456, 0.0
        %v1511 = vmax.f32 %v1461, 0.0
        %v1512 = vmax.f32 %v1466, 0.0
        %v1513 = vmax.f32 %v1471, 0.0
        %v1514 = vmax.f32 %v1476, 0.0
        %v1515 = vmax.f32 %v1481, 0.0
        %v1516 = vmax.f32 %v1486, 0.0
        %v1517 = vmax.f32 %v1491, 0.0
        %v1518 = vmax.f32 %v1496, 0.0
        %v1519 = vmax.f32 %v1501, 0.0
        %s1520 = scalar_lea.vmem [#allocation5], 896
        %v1521 = vld [vmem:[%s1520] sm:$0xff]
        %v1522 = vld [vmem:[%s1520 + $0x8] sm:$0xff]
        %v1523 = vld [vmem:[%s1520 + $0x10] sm:$0xff]
        %v1524 = vld [vmem:[%s1520 + $0x18] sm:$0xff]
        %v1525 = vld [vmem:[%s1520 + $0x20] sm:$0xff]
        %v1526 = vld [vmem:[%s1520 + $0x28] sm:$0xff]
        %v1527 = vld [vmem:[%s1520 + $0x30] sm:$0xff]
        %v1528 = vld [vmem:[%s1520 + $0x38] sm:$0xff]
        %v1529 = vld [vmem:[%s1520 + $0x40] sm:$0xff]
        %v1530 = vld [vmem:[%s1520 + $0x48] sm:$0xff]
        %v1531 = vld [vmem:[%s1520 + $0x50] sm:$0xff]
        %v1532 = vld [vmem:[%s1520 + $0x58] sm:$0xff]
        %v1533 = vld [vmem:[%s1520 + $0x60] sm:$0xff]
        %v1534 = vld [vmem:[%s1520 + $0x68] sm:$0xff]
        %v1535 = vld [vmem:[%s1520 + $0x70] sm:$0xff]
        %v1536 = vld [vmem:[%s1520 + $0x78] sm:$0xff]
        %s1537 = scalar_lea.vmem [#allocation7], 7
        %v1538 = vld [vmem:[%s1537] sm:$0x1]
        %v1540 = vlaneseq
        %v1541 = vshrl.u32 %v1540, 7
        %v1542 = vsub.s32 0, %v1541
        %v1543 = vrot.slane %v1538, %v1542
        %1545 = vmatprep.subr.mxu0 0.0
        %1546 = vmatpush1.msra.mxu0 %v1521
        %1547 = vmatprep.subr.mxu0 0.0
        %1548 = vmatpush1.msra.mxu0 %v1522
        %1549 = vmatprep.subr.mxu0 0.0
        %1550 = vmatpush1.msra.mxu0 %v1523
        %1551 = vmatprep.subr.mxu0 0.0
        %1552 = vmatpush1.msra.mxu0 %v1524
        %1553 = vmatprep.subr.mxu0 0.0
        %1554 = vmatpush1.msra.mxu0 %v1525
        %1555 = vmatprep.subr.mxu0 0.0
        %1556 = vmatpush1.msra.mxu0 %v1526
        %1557 = vmatprep.subr.mxu0 0.0
        %1558 = vmatpush1.msra.mxu0 %v1527
        %1559 = vmatprep.subr.mxu0 0.0
        %1560 = vmatpush1.msra.mxu0 %v1528
        %1561 = vmatprep.subr.mxu0 0.0
        %1562 = vmatpush1.msra.mxu0 %v1529
        %1563 = vmatprep.subr.mxu0 0.0
        %1564 = vmatpush1.msra.mxu0 %v1530
        %1565 = vmatprep.subr.mxu0 0.0
        %1566 = vmatpush1.msra.mxu0 %v1531
        %1567 = vmatprep.subr.mxu0 0.0
        %1568 = vmatpush1.msra.mxu0 %v1532
        %1569 = vmatprep.subr.mxu0 0.0
        %1570 = vmatpush1.msra.mxu0 %v1533
        %1571 = vmatprep.subr.mxu0 0.0
        %1572 = vmatpush1.msra.mxu0 %v1534
        %1573 = vmatprep.subr.mxu0 0.0
        %1574 = vmatpush1.msra.mxu0 %v1535
        %1575 = vmatprep.subr.mxu0 0.0
        %1576 = vmatpush1.msra.mxu0 %v1536
        %1577 = vmatprep.subr.mxu0 0.0
        %1578 = vmatpush1.msra.mxu0 0.0
        %1579 = vmatprep.subr.mxu0 0.0
        %1580 = vmatpush1.msra.mxu0 0.0
        %1581 = vmatprep.subr.mxu0 0.0
        %1582 = vmatpush1.msra.mxu0 0.0
        %1583 = vmatprep.subr.mxu0 0.0
        %1584 = vmatpush1.msra.mxu0 0.0
        %1585 = vmatprep.subr.mxu0 0.0
        %1586 = vmatpush1.msra.mxu0 0.0
        %1587 = vmatprep.subr.mxu0 0.0
        %1588 = vmatpush1.msra.mxu0 0.0
        %1589 = vmatprep.subr.mxu0 0.0
        %1590 = vmatpush1.msra.mxu0 0.0
        %1591 = vmatprep.subr.mxu0 0.0
        %1592 = vmatpush1.msra.mxu0 0.0
        %1593 = vmatprep.subr.mxu0 0.0
        %1594 = vmatpush1.msra.mxu0 0.0
        %1595 = vmatprep.subr.mxu0 0.0
        %1596 = vmatpush1.msra.mxu0 0.0
        %1597 = vmatprep.subr.mxu0 0.0
        %1598 = vmatpush1.msra.mxu0 0.0
        %1599 = vmatprep.subr.mxu0 0.0
        %1600 = vmatpush1.msra.mxu0 0.0
        %1601 = vmatprep.subr.mxu0 0.0
        %1602 = vmatpush1.msra.mxu0 0.0
        %1603 = vmatprep.subr.mxu0 0.0
        %1604 = vmatpush1.msra.mxu0 0.0
        %1605 = vmatprep.subr.mxu0 0.0
        %1606 = vmatpush1.msra.mxu0 0.0
        %1607 = vmatprep.subr.mxu0 0.0
        %1608 = vmatpush1.msra.mxu0 0.0
        %1609 = vmatprep.mubr.f32.mxu0 0.0
        %1610 = vmatmul.mubr.f32.gmra.mrb[0].mxu0 %v1504
        %v1611 = vpop.f32.mrb[0].mxu0
        %v1612 = vadd.f32 %v1543, %v1611
        %v1613 = vpop.f32.mrb[0].mxu0
        %1614 = vmatprep.mubr.f32.mxu0 0.0
        %1615 = vmatmul.mubr.f32.gmra.mrb[0].mxu0 %v1505
        %v1616 = vpop.f32.mrb[0].mxu0
        %v1617 = vadd.f32 %v1543, %v1616
        %v1618 = vpop.f32.mrb[0].mxu0
        %1619 = vmatprep.mubr.f32.mxu0 0.0
        %1620 = vmatmul.mubr.f32.gmra.mrb[0].mxu0 %v1506
        %v1621 = vpop.f32.mrb[0].mxu0
        %v1622 = vadd.f32 %v1543, %v1621
        %v1623 = vpop.f32.mrb[0].mxu0
        %1624 = vmatprep.mubr.f32.mxu0 0.0
        %1625 = vmatmul.mubr.f32.gmra.mrb[0].mxu0 %v1507
        %v1626 = vpop.f32.mrb[0].mxu0
        %v1627 = vadd.f32 %v1543, %v1626
        %v1628 = vpop.f32.mrb[0].mxu0
        %1629 = vmatprep.mubr.f32.mxu0 0.0
        %1630 = vmatmul.mubr.f32.gmra.mrb[0].mxu0 %v1508
        %v1631 = vpop.f32.mrb[0].mxu0
        %v1632 = vadd.f32 %v1543, %v1631
        %v1633 = vpop.f32.mrb[0].mxu0
        %1634 = vmatprep.mubr.f32.mxu0 0.0
        %1635 = vmatmul.mubr.f32.gmra.mrb[0].mxu0 %v1509
        %v1636 = vpop.f32.mrb[0].mxu0
        %v1637 = vadd.f32 %v1543, %v1636
        %v1638 = vpop.f32.mrb[0].mxu0
        %1639 = vmatprep.mubr.f32.mxu0 0.0
        %1640 = vmatmul.mubr.f32.gmra.mrb[0].mxu0 %v1510
        %v1641 = vpop.f32.mrb[0].mxu0
        %v1642 = vadd.f32 %v1543, %v1641
        %v1643 = vpop.f32.mrb[0].mxu0
        %1644 = vmatprep.mubr.f32.mxu0 0.0
        %1645 = vmatmul.mubr.f32.gmra.mrb[0].mxu0 %v1511
        %v1646 = vpop.f32.mrb[0].mxu0
        %v1647 = vadd.f32 %v1543, %v1646
        %v1648 = vpop.f32.mrb[0].mxu0
        %1649 = vmatprep.mubr.f32.mxu0 0.0
        %1650 = vmatmul.mubr.f32.gmra.mrb[0].mxu0 %v1512
        %v1651 = vpop.f32.mrb[0].mxu0
        %v1652 = vadd.f32 %v1543, %v1651
        %v1653 = vpop.f32.mrb[0].mxu0
        %1654 = vmatprep.mubr.f32.mxu0 0.0
        %1655 = vmatmul.mubr.f32.gmra.mrb[0].mxu0 %v1513
        %v1656 = vpop.f32.mrb[0].mxu0
        %v1657 = vadd.f32 %v1543, %v1656
        %v1658 = vpop.f32.mrb[0].mxu0
        %1659 = vmatprep.mubr.f32.mxu0 0.0
        %1660 = vmatmul.mubr.f32.gmra.mrb[0].mxu0 %v1514
        %v1661 = vpop.f32.mrb[0].mxu0
        %v1662 = vadd.f32 %v1543, %v1661
        %v1663 = vpop.f32.mrb[0].mxu0
        %1664 = vmatprep.mubr.f32.mxu0 0.0
        %1665 = vmatmul.mubr.f32.gmra.mrb[0].mxu0 %v1515
        %v1666 = vpop.f32.mrb[0].mxu0
        %v1667 = vadd.f32 %v1543, %v1666
        %v1668 = vpop.f32.mrb[0].mxu0
        %1669 = vmatprep.mubr.f32.mxu0 0.0
        %1670 = vmatmul.mubr.f32.gmra.mrb[0].mxu0 %v1516
        %v1671 = vpop.f32.mrb[0].mxu0
        %v1672 = vadd.f32 %v1543, %v1671
        %v1673 = vpop.f32.mrb[0].mxu0
        %1674 = vmatprep.mubr.f32.mxu0 0.0
        %1675 = vmatmul.mubr.f32.gmra.mrb[0].mxu0 %v1517
        %v1676 = vpop.f32.mrb[0].mxu0
        %v1677 = vadd.f32 %v1543, %v1676
        %v1678 = vpop.f32.mrb[0].mxu0
        %1679 = vmatprep.mubr.f32.mxu0 0.0
        %1680 = vmatmul.mubr.f32.gmra.mrb[0].mxu0 %v1518
        %v1681 = vpop.f32.mrb[0].mxu0
        %v1682 = vadd.f32 %v1543, %v1681
        %v1683 = vpop.f32.mrb[0].mxu0
        %1684 = vmatprep.mubr.f32.mxu0 0.0
        %1685 = vmatmul.mubr.f32.gmra.mrb[0].mxu0 %v1519
        %v1686 = vpop.f32.mrb[0].mxu0
        %v1687 = vadd.f32 %v1543, %v1686
        %v1688 = vpop.f32.mrb[0].mxu0
        %1689 = vdwg.mxu0
        %1690 = vst [vmem:[%s217] sm:$0xff] %v1612
        %1691 = vst [vmem:[%s217 + $0x8] sm:$0xff] %v1617
        %1692 = vst [vmem:[%s217 + $0x10] sm:$0xff] %v1622
        %1693 = vst [vmem:[%s217 + $0x18] sm:$0xff] %v1627
        %1694 = vst [vmem:[%s217 + $0x20] sm:$0xff] %v1632
        %1695 = vst [vmem:[%s217 + $0x28] sm:$0xff] %v1637
        %1696 = vst [vmem:[%s217 + $0x30] sm:$0xff] %v1642
        %1697 = vst [vmem:[%s217 + $0x38] sm:$0xff] %v1647
        %1698 = vst [vmem:[%s217 + $0x40] sm:$0xff] %v1652
        %1699 = vst [vmem:[%s217 + $0x48] sm:$0xff] %v1657
        %1700 = vst [vmem:[%s217 + $0x50] sm:$0xff] %v1662
        %1701 = vst [vmem:[%s217 + $0x58] sm:$0xff] %v1667
        %1702 = vst [vmem:[%s217 + $0x60] sm:$0xff] %v1672
        %1703 = vst [vmem:[%s217 + $0x68] sm:$0xff] %v1677
        %1704 = vst [vmem:[%s217 + $0x70] sm:$0xff] %v1682
        %1705 = vst [vmem:[%s217 + $0x78] sm:$0xff] %v1687
        %v1706 = vld [vmem:[%s187 + $0x80] sm:$0xff]
        %v1707 = vld [vmem:[%s187 + $0x88] sm:$0xff]
        %v1708 = vld [vmem:[%s187 + $0x90] sm:$0xff]
        %v1709 = vld [vmem:[%s187 + $0x98] sm:$0xff]
        %v1710 = vld [vmem:[%s187 + $0xa0] sm:$0xff]
        %v1711 = vld [vmem:[%s187 + $0xa8] sm:$0xff]
        %v1712 = vld [vmem:[%s187 + $0xb0] sm:$0xff]
        %v1713 = vld [vmem:[%s187 + $0xb8] sm:$0xff]
        %v1714 = vld [vmem:[%s187 + $0xc0] sm:$0xff]
        %v1715 = vld [vmem:[%s187 + $0xc8] sm:$0xff]
        %v1716 = vld [vmem:[%s187 + $0xd0] sm:$0xff]
        %v1717 = vld [vmem:[%s187 + $0xd8] sm:$0xff]
        %v1718 = vld [vmem:[%s187 + $0xe0] sm:$0xff]
        %v1719 = vld [vmem:[%s187 + $0xe8] sm:$0xff]
        %v1720 = vld [vmem:[%s187 + $0xf0] sm:$0xff]
        %v1721 = vld [vmem:[%s187 + $0xf8] sm:$0xff]
        %v1722 = vld [vmem:[#allocation5] sm:$0xff]
        %v1723 = vld [vmem:[#allocation5 + $0x8] sm:$0xff]
        %v1724 = vld [vmem:[#allocation5 + $0x10] sm:$0xff]
        %v1725 = vld [vmem:[#allocation5 + $0x18] sm:$0xff]
        %v1726 = vld [vmem:[#allocation5 + $0x20] sm:$0xff]
        %v1727 = vld [vmem:[#allocation5 + $0x28] sm:$0xff]
        %v1728 = vld [vmem:[#allocation5 + $0x30] sm:$0xff]
        %v1729 = vld [vmem:[#allocation5 + $0x38] sm:$0xff]
        %v1730 = vld [vmem:[#allocation5 + $0x40] sm:$0xff]
        %v1731 = vld [vmem:[#allocation5 + $0x48] sm:$0xff]
        %v1732 = vld [vmem:[#allocation5 + $0x50] sm:$0xff]
        %v1733 = vld [vmem:[#allocation5 + $0x58] sm:$0xff]
        %v1734 = vld [vmem:[#allocation5 + $0x60] sm:$0xff]
        %v1735 = vld [vmem:[#allocation5 + $0x68] sm:$0xff]
        %v1736 = vld [vmem:[#allocation5 + $0x70] sm:$0xff]
        %v1737 = vld [vmem:[#allocation5 + $0x78] sm:$0xff]
        %v1738 = vld [vmem:[#allocation7] sm:$0x1]
        %v1740 = vlaneseq
        %v1741 = vshrl.u32 %v1740, 7
        %v1742 = vsub.s32 0, %v1741
        %v1743 = vrot.slane %v1738, %v1742
        %1745 = vmatprep.subr.mxu0 0.0
        %1746 = vmatpush1.msra.mxu0 %v1722
        %1747 = vmatprep.subr.mxu0 0.0
        %1748 = vmatpush1.msra.mxu0 %v1723
        %1749 = vmatprep.subr.mxu0 0.0
        %1750 = vmatpush1.msra.mxu0 %v1724
        %1751 = vmatprep.subr.mxu0 0.0
        %1752 = vmatpush1.msra.mxu0 %v1725
        %1753 = vmatprep.subr.mxu0 0.0
        %1754 = vmatpush1.msra.mxu0 %v1726
        %1755 = vmatprep.subr.mxu0 0.0
        %1756 = vmatpush1.msra.mxu0 %v1727
        %1757 = vmatprep.subr.mxu0 0.0
        %1758 = vmatpush1.msra.mxu0 %v1728
        %1759 = vmatprep.subr.mxu0 0.0
        %1760 = vmatpush1.msra.mxu0 %v1729
        %1761 = vmatprep.subr.mxu0 0.0
        %1762 = vmatpush1.msra.mxu0 %v1730
        %1763 = vmatprep.subr.mxu0 0.0
        %1764 = vmatpush1.msra.mxu0 %v1731
        %1765 = vmatprep.subr.mxu0 0.0
        %1766 = vmatpush1.msra.mxu0 %v1732
        %1767 = vmatprep.subr.mxu0 0.0
        %1768 = vmatpush1.msra.mxu0 %v1733
        %1769 = vmatprep.subr.mxu0 0.0
        %1770 = vmatpush1.msra.mxu0 %v1734
        %1771 = vmatprep.subr.mxu0 0.0
        %1772 = vmatpush1.msra.mxu0 %v1735
        %1773 = vmatprep.subr.mxu0 0.0
        %1774 = vmatpush1.msra.mxu0 %v1736
        %1775 = vmatprep.subr.mxu0 0.0
        %1776 = vmatpush1.msra.mxu0 %v1737
        %1777 = vmatprep.subr.mxu0 0.0
        %1778 = vmatpush1.msra.mxu0 0.0
        %1779 = vmatprep.subr.mxu0 0.0
        %1780 = vmatpush1.msra.mxu0 0.0
        %1781 = vmatprep.subr.mxu0 0.0
        %1782 = vmatpush1.msra.mxu0 0.0
        %1783 = vmatprep.subr.mxu0 0.0
        %1784 = vmatpush1.msra.mxu0 0.0
        %1785 = vmatprep.subr.mxu0 0.0
        %1786 = vmatpush1.msra.mxu0 0.0
        %1787 = vmatprep.subr.mxu0 0.0
        %1788 = vmatpush1.msra.mxu0 0.0
        %1789 = vmatprep.subr.mxu0 0.0
        %1790 = vmatpush1.msra.mxu0 0.0
        %1791 = vmatprep.subr.mxu0 0.0
        %1792 = vmatpush1.msra.mxu0 0.0
        %1793 = vmatprep.subr.mxu0 0.0
        %1794 = vmatpush1.msra.mxu0 0.0
        %1795 = vmatprep.subr.mxu0 0.0
        %1796 = vmatpush1.msra.mxu0 0.0
        %1797 = vmatprep.subr.mxu0 0.0
        %1798 = vmatpush1.msra.mxu0 0.0
        %1799 = vmatprep.subr.mxu0 0.0
        %1800 = vmatpush1.msra.mxu0 0.0
        %1801 = vmatprep.subr.mxu0 0.0
        %1802 = vmatpush1.msra.mxu0 0.0
        %1803 = vmatprep.subr.mxu0 0.0
        %1804 = vmatpush1.msra.mxu0 0.0
        %1805 = vmatprep.subr.mxu0 0.0
        %1806 = vmatpush1.msra.mxu0 0.0
        %1807 = vmatprep.subr.mxu0 0.0
        %1808 = vmatpush1.msra.mxu0 0.0
        %1809 = vmatprep.mubr.f32.mxu0 0.0
        %1810 = vmatmul.mubr.f32.gmra.mrb[0].mxu0 %v1706
        %v1811 = vpop.f32.mrb[0].mxu0
        %v1812 = vadd.f32 %v1743, %v1811
        %v1813 = vpop.f32.mrb[0].mxu0
        %1814 = vmatprep.mubr.f32.mxu0 0.0
        %1815 = vmatmul.mubr.f32.gmra.mrb[0].mxu0 %v1707
        %v1816 = vpop.f32.mrb[0].mxu0
        %v1817 = vadd.f32 %v1743, %v1816
        %v1818 = vpop.f32.mrb[0].mxu0
        %1819 = vmatprep.mubr.f32.mxu0 0.0
        %1820 = vmatmul.mubr.f32.gmra.mrb[0].mxu0 %v1708
        %v1821 = vpop.f32.mrb[0].mxu0
        %v1822 = vadd.f32 %v1743, %v1821
        %v1823 = vpop.f32.mrb[0].mxu0
        %1824 = vmatprep.mubr.f32.mxu0 0.0
        %1825 = vmatmul.mubr.f32.gmra.mrb[0].mxu0 %v1709
        %v1826 = vpop.f32.mrb[0].mxu0
        %v1827 = vadd.f32 %v1743, %v1826
        %v1828 = vpop.f32.mrb[0].mxu0
        %1829 = vmatprep.mubr.f32.mxu0 0.0
        %1830 = vmatmul.mubr.f32.gmra.mrb[0].mxu0 %v1710
        %v1831 = vpop.f32.mrb[0].mxu0
        %v1832 = vadd.f32 %v1743, %v1831
        %v1833 = vpop.f32.mrb[0].mxu0
        %1834 = vmatprep.mubr.f32.mxu0 0.0
        %1835 = vmatmul.mubr.f32.gmra.mrb[0].mxu0 %v1711
        %v1836 = vpop.f32.mrb[0].mxu0
        %v1837 = vadd.f32 %v1743, %v1836
        %v1838 = vpop.f32.mrb[0].mxu0
        %1839 = vmatprep.mubr.f32.mxu0 0.0
        %1840 = vmatmul.mubr.f32.gmra.mrb[0].mxu0 %v1712
        %v1841 = vpop.f32.mrb[0].mxu0
        %v1842 = vadd.f32 %v1743, %v1841
        %v1843 = vpop.f32.mrb[0].mxu0
        %1844 = vmatprep.mubr.f32.mxu0 0.0
        %1845 = vmatmul.mubr.f32.gmra.mrb[0].mxu0 %v1713
        %v1846 = vpop.f32.mrb[0].mxu0
        %v1847 = vadd.f32 %v1743, %v1846
        %v1848 = vpop.f32.mrb[0].mxu0
        %1849 = vmatprep.mubr.f32.mxu0 0.0
        %1850 = vmatmul.mubr.f32.gmra.mrb[0].mxu0 %v1714
        %v1851 = vpop.f32.mrb[0].mxu0
        %v1852 = vadd.f32 %v1743, %v1851
        %v1853 = vpop.f32.mrb[0].mxu0
        %1854 = vmatprep.mubr.f32.mxu0 0.0
        %1855 = vmatmul.mubr.f32.gmra.mrb[0].mxu0 %v1715
        %v1856 = vpop.f32.mrb[0].mxu0
        %v1857 = vadd.f32 %v1743, %v1856
        %v1858 = vpop.f32.mrb[0].mxu0
        %1859 = vmatprep.mubr.f32.mxu0 0.0
        %1860 = vmatmul.mubr.f32.gmra.mrb[0].mxu0 %v1716
        %v1861 = vpop.f32.mrb[0].mxu0
        %v1862 = vadd.f32 %v1743, %v1861
        %v1863 = vpop.f32.mrb[0].mxu0
        %1864 = vmatprep.mubr.f32.mxu0 0.0
        %1865 = vmatmul.mubr.f32.gmra.mrb[0].mxu0 %v1717
        %v1866 = vpop.f32.mrb[0].mxu0
        %v1867 = vadd.f32 %v1743, %v1866
        %v1868 = vpop.f32.mrb[0].mxu0
        %1869 = vmatprep.mubr.f32.mxu0 0.0
        %1870 = vmatmul.mubr.f32.gmra.mrb[0].mxu0 %v1718
        %v1871 = vpop.f32.mrb[0].mxu0
        %v1872 = vadd.f32 %v1743, %v1871
        %v1873 = vpop.f32.mrb[0].mxu0
        %1874 = vmatprep.mubr.f32.mxu0 0.0
        %1875 = vmatmul.mubr.f32.gmra.mrb[0].mxu0 %v1719
        %v1876 = vpop.f32.mrb[0].mxu0
        %v1877 = vadd.f32 %v1743, %v1876
        %v1878 = vpop.f32.mrb[0].mxu0
        %1879 = vmatprep.mubr.f32.mxu0 0.0
        %1880 = vmatmul.mubr.f32.gmra.mrb[0].mxu0 %v1720
        %v1881 = vpop.f32.mrb[0].mxu0
        %v1882 = vadd.f32 %v1743, %v1881
        %v1883 = vpop.f32.mrb[0].mxu0
        %1884 = vmatprep.mubr.f32.mxu0 0.0
        %1885 = vmatmul.mubr.f32.gmra.mrb[0].mxu0 %v1721
        %v1886 = vpop.f32.mrb[0].mxu0
        %v1887 = vadd.f32 %v1743, %v1886
        %v1888 = vpop.f32.mrb[0].mxu0
        %1889 = vdwg.mxu0
        %v1890 = vmax.f32 %v1812, 0.0
        %v1891 = vmax.f32 %v1817, 0.0
        %v1892 = vmax.f32 %v1822, 0.0
        %v1893 = vmax.f32 %v1827, 0.0
        %v1894 = vmax.f32 %v1832, 0.0
        %v1895 = vmax.f32 %v1837, 0.0
        %v1896 = vmax.f32 %v1842, 0.0
        %v1897 = vmax.f32 %v1847, 0.0
        %v1898 = vmax.f32 %v1852, 0.0
        %v1899 = vmax.f32 %v1857, 0.0
        %v1900 = vmax.f32 %v1862, 0.0
        %v1901 = vmax.f32 %v1867, 0.0
        %v1902 = vmax.f32 %v1872, 0.0
        %v1903 = vmax.f32 %v1877, 0.0
        %v1904 = vmax.f32 %v1882, 0.0
        %v1905 = vmax.f32 %v1887, 0.0
        %v1906 = vld [vmem:[%s420] sm:$0xff]
        %v1907 = vld [vmem:[%s420 + $0x8] sm:$0xff]
        %v1908 = vld [vmem:[%s420 + $0x10] sm:$0xff]
        %v1909 = vld [vmem:[%s420 + $0x18] sm:$0xff]
        %v1910 = vld [vmem:[%s420 + $0x20] sm:$0xff]
        %v1911 = vld [vmem:[%s420 + $0x28] sm:$0xff]
        %v1912 = vld [vmem:[%s420 + $0x30] sm:$0xff]
        %v1913 = vld [vmem:[%s420 + $0x38] sm:$0xff]
        %v1914 = vld [vmem:[%s420 + $0x40] sm:$0xff]
        %v1915 = vld [vmem:[%s420 + $0x48] sm:$0xff]
        %v1916 = vld [vmem:[%s420 + $0x50] sm:$0xff]
        %v1917 = vld [vmem:[%s420 + $0x58] sm:$0xff]
        %v1918 = vld [vmem:[%s420 + $0x60] sm:$0xff]
        %v1919 = vld [vmem:[%s420 + $0x68] sm:$0xff]
        %v1920 = vld [vmem:[%s420 + $0x70] sm:$0xff]
        %v1921 = vld [vmem:[%s420 + $0x78] sm:$0xff]
        %v1922 = vld [vmem:[%s437] sm:$0x1]
        %v1924 = vlaneseq
        %v1925 = vshrl.u32 %v1924, 7
        %v1926 = vsub.s32 0, %v1925
        %v1927 = vrot.slane %v1922, %v1926
        %1929 = vmatprep.subr.mxu0 0.0
        %1930 = vmatpush1.msra.mxu0 %v1906
        %1931 = vmatprep.subr.mxu0 0.0
        %1932 = vmatpush1.msra.mxu0 %v1907
        %1933 = vmatprep.subr.mxu0 0.0
        %1934 = vmatpush1.msra.mxu0 %v1908
        %1935 = vmatprep.subr.mxu0 0.0
        %1936 = vmatpush1.msra.mxu0 %v1909
        %1937 = vmatprep.subr.mxu0 0.0
        %1938 = vmatpush1.msra.mxu0 %v1910
        %1939 = vmatprep.subr.mxu0 0.0
        %1940 = vmatpush1.msra.mxu0 %v1911
        %1941 = vmatprep.subr.mxu0 0.0
        %1942 = vmatpush1.msra.mxu0 %v1912
        %1943 = vmatprep.subr.mxu0 0.0
        %1944 = vmatpush1.msra.mxu0 %v1913
        %1945 = vmatprep.subr.mxu0 0.0
        %1946 = vmatpush1.msra.mxu0 %v1914
        %1947 = vmatprep.subr.mxu0 0.0
        %1948 = vmatpush1.msra.mxu0 %v1915
        %1949 = vmatprep.subr.mxu0 0.0
        %1950 = vmatpush1.msra.mxu0 %v1916
        %1951 = vmatprep.subr.mxu0 0.0
        %1952 = vmatpush1.msra.mxu0 %v1917
        %1953 = vmatprep.subr.mxu0 0.0
        %1954 = vmatpush1.msra.mxu0 %v1918
        %1955 = vmatprep.subr.mxu0 0.0
        %1956 = vmatpush1.msra.mxu0 %v1919
        %1957 = vmatprep.subr.mxu0 0.0
        %1958 = vmatpush1.msra.mxu0 %v1920
        %1959 = vmatprep.subr.mxu0 0.0
        %1960 = vmatpush1.msra.mxu0 %v1921
        %1961 = vmatprep.subr.mxu0 0.0
        %1962 = vmatpush1.msra.mxu0 0.0
        %1963 = vmatprep.subr.mxu0 0.0
        %1964 = vmatpush1.msra.mxu0 0.0
        %1965 = vmatprep.subr.mxu0 0.0
        %1966 = vmatpush1.msra.mxu0 0.0
        %1967 = vmatprep.subr.mxu0 0.0
        %1968 = vmatpush1.msra.mxu0 0.0
        %1969 = vmatprep.subr.mxu0 0.0
        %1970 = vmatpush1.msra.mxu0 0.0
        %1971 = vmatprep.subr.mxu0 0.0
        %1972 = vmatpush1.msra.mxu0 0.0
        %1973 = vmatprep.subr.mxu0 0.0
        %1974 = vmatpush1.msra.mxu0 0.0
        %1975 = vmatprep.subr.mxu0 0.0
        %1976 = vmatpush1.msra.mxu0 0.0
        %1977 = vmatprep.subr.mxu0 0.0
        %1978 = vmatpush1.msra.mxu0 0.0
        %1979 = vmatprep.subr.mxu0 0.0
        %1980 = vmatpush1.msra.mxu0 0.0
        %1981 = vmatprep.subr.mxu0 0.0
        %1982 = vmatpush1.msra.mxu0 0.0
        %1983 = vmatprep.subr.mxu0 0.0
        %1984 = vmatpush1.msra.mxu0 0.0
        %1985 = vmatprep.subr.mxu0 0.0
        %1986 = vmatpush1.msra.mxu0 0.0
        %1987 = vmatprep.subr.mxu0 0.0
        %1988 = vmatpush1.msra.mxu0 0.0
        %1989 = vmatprep.subr.mxu0 0.0
        %1990 = vmatpush1.msra.mxu0 0.0
        %1991 = vmatprep.subr.mxu0 0.0
        %1992 = vmatpush1.msra.mxu0 0.0
        %1993 = vmatprep.mubr.f32.mxu0 0.0
        %1994 = vmatmul.mubr.f32.gmra.mrb[0].mxu0 %v1890
        %v1995 = vpop.f32.mrb[0].mxu0
        %v1996 = vadd.f32 %v1927, %v1995
        %v1997 = vpop.f32.mrb[0].mxu0
        %1998 = vmatprep.mubr.f32.mxu0 0.0
        %1999 = vmatmul.mubr.f32.gmra.mrb[0].mxu0 %v1891
        %v2000 = vpop.f32.mrb[0].mxu0
        %v2001 = vadd.f32 %v1927, %v2000
        %v2002 = vpop.f32.mrb[0].mxu0
        %2003 = vmatprep.mubr.f32.mxu0 0.0
        %2004 = vmatmul.mubr.f32.gmra.mrb[0].mxu0 %v1892
        %v2005 = vpop.f32.mrb[0].mxu0
        %v2006 = vadd.f32 %v1927, %v2005
        %v2007 = vpop.f32.mrb[0].mxu0
        %2008 = vmatprep.mubr.f32.mxu0 0.0
        %2009 = vmatmul.mubr.f32.gmra.mrb[0].mxu0 %v1893
        %v2010 = vpop.f32.mrb[0].mxu0
        %v2011 = vadd.f32 %v1927, %v2010
        %v2012 = vpop.f32.mrb[0].mxu0
        %2013 = vmatprep.mubr.f32.mxu0 0.0
        %2014 = vmatmul.mubr.f32.gmra.mrb[0].mxu0 %v1894
        %v2015 = vpop.f32.mrb[0].mxu0
        %v2016 = vadd.f32 %v1927, %v2015
        %v2017 = vpop.f32.mrb[0].mxu0
        %2018 = vmatprep.mubr.f32.mxu0 0.0
        %2019 = vmatmul.mubr.f32.gmra.mrb[0].mxu0 %v1895
        %v2020 = vpop.f32.mrb[0].mxu0
        %v2021 = vadd.f32 %v1927, %v2020
        %v2022 = vpop.f32.mrb[0].mxu0
        %2023 = vmatprep.mubr.f32.mxu0 0.0
        %2024 = vmatmul.mubr.f32.gmra.mrb[0].mxu0 %v1896
        %v2025 = vpop.f32.mrb[0].mxu0
        %v2026 = vadd.f32 %v1927, %v2025
        %v2027 = vpop.f32.mrb[0].mxu0
        %2028 = vmatprep.mubr.f32.mxu0 0.0
        %2029 = vmatmul.mubr.f32.gmra.mrb[0].mxu0 %v1897
        %v2030 = vpop.f32.mrb[0].mxu0
        %v2031 = vadd.f32 %v1927, %v2030
        %v2032 = vpop.f32.mrb[0].mxu0
        %2033 = vmatprep.mubr.f32.mxu0 0.0
        %2034 = vmatmul.mubr.f32.gmra.mrb[0].mxu0 %v1898
        %v2035 = vpop.f32.mrb[0].mxu0
        %v2036 = vadd.f32 %v1927, %v2035
        %v2037 = vpop.f32.mrb[0].mxu0
        %2038 = vmatprep.mubr.f32.mxu0 0.0
        %2039 = vmatmul.mubr.f32.gmra.mrb[0].mxu0 %v1899
        %v2040 = vpop.f32.mrb[0].mxu0
        %v2041 = vadd.f32 %v1927, %v2040
        %v2042 = vpop.f32.mrb[0].mxu0
        %2043 = vmatprep.mubr.f32.mxu0 0.0
        %2044 = vmatmul.mubr.f32.gmra.mrb[0].mxu0 %v1900
        %v2045 = vpop.f32.mrb[0].mxu0
        %v2046 = vadd.f32 %v1927, %v2045
        %v2047 = vpop.f32.mrb[0].mxu0
        %2048 = vmatprep.mubr.f32.mxu0 0.0
        %2049 = vmatmul.mubr.f32.gmra.mrb[0].mxu0 %v1901
        %v2050 = vpop.f32.mrb[0].mxu0
        %v2051 = vadd.f32 %v1927, %v2050
        %v2052 = vpop.f32.mrb[0].mxu0
        %2053 = vmatprep.mubr.f32.mxu0 0.0
        %2054 = vmatmul.mubr.f32.gmra.mrb[0].mxu0 %v1902
        %v2055 = vpop.f32.mrb[0].mxu0
        %v2056 = vadd.f32 %v1927, %v2055
        %v2057 = vpop.f32.mrb[0].mxu0
        %2058 = vmatprep.mubr.f32.mxu0 0.0
        %2059 = vmatmul.mubr.f32.gmra.mrb[0].mxu0 %v1903
        %v2060 = vpop.f32.mrb[0].mxu0
        %v2061 = vadd.f32 %v1927, %v2060
        %v2062 = vpop.f32.mrb[0].mxu0
        %2063 = vmatprep.mubr.f32.mxu0 0.0
        %2064 = vmatmul.mubr.f32.gmra.mrb[0].mxu0 %v1904
        %v2065 = vpop.f32.mrb[0].mxu0
        %v2066 = vadd.f32 %v1927, %v2065
        %v2067 = vpop.f32.mrb[0].mxu0
        %2068 = vmatprep.mubr.f32.mxu0 0.0
        %2069 = vmatmul.mubr.f32.gmra.mrb[0].mxu0 %v1905
        %v2070 = vpop.f32.mrb[0].mxu0
        %v2071 = vadd.f32 %v1927, %v2070
        %v2072 = vpop.f32.mrb[0].mxu0
        %2073 = vdwg.mxu0
        %v2074 = vmax.f32 %v1996, 0.0
        %v2075 = vmax.f32 %v2001, 0.0
        %v2076 = vmax.f32 %v2006, 0.0
        %v2077 = vmax.f32 %v2011, 0.0
        %v2078 = vmax.f32 %v2016, 0.0
        %v2079 = vmax.f32 %v2021, 0.0
        %v2080 = vmax.f32 %v2026, 0.0
        %v2081 = vmax.f32 %v2031, 0.0
        %v2082 = vmax.f32 %v2036, 0.0
        %v2083 = vmax.f32 %v2041, 0.0
        %v2084 = vmax.f32 %v2046, 0.0
        %v2085 = vmax.f32 %v2051, 0.0
        %v2086 = vmax.f32 %v2056, 0.0
        %v2087 = vmax.f32 %v2061, 0.0
        %v2088 = vmax.f32 %v2066, 0.0
        %v2089 = vmax.f32 %v2071, 0.0
        %v2090 = vld [vmem:[%s606] sm:$0xff]
        %v2091 = vld [vmem:[%s606 + $0x8] sm:$0xff]
        %v2092 = vld [vmem:[%s606 + $0x10] sm:$0xff]
        %v2093 = vld [vmem:[%s606 + $0x18] sm:$0xff]
        %v2094 = vld [vmem:[%s606 + $0x20] sm:$0xff]
        %v2095 = vld [vmem:[%s606 + $0x28] sm:$0xff]
        %v2096 = vld [vmem:[%s606 + $0x30] sm:$0xff]
        %v2097 = vld [vmem:[%s606 + $0x38] sm:$0xff]
        %v2098 = vld [vmem:[%s606 + $0x40] sm:$0xff]
        %v2099 = vld [vmem:[%s606 + $0x48] sm:$0xff]
        %v2100 = vld [vmem:[%s606 + $0x50] sm:$0xff]
        %v2101 = vld [vmem:[%s606 + $0x58] sm:$0xff]
        %v2102 = vld [vmem:[%s606 + $0x60] sm:$0xff]
        %v2103 = vld [vmem:[%s606 + $0x68] sm:$0xff]
        %v2104 = vld [vmem:[%s606 + $0x70] sm:$0xff]
        %v2105 = vld [vmem:[%s606 + $0x78] sm:$0xff]
        %v2106 = vld [vmem:[%s623] sm:$0x1]
        %v2108 = vlaneseq
        %v2109 = vshrl.u32 %v2108, 7
        %v2110 = vsub.s32 0, %v2109
        %v2111 = vrot.slane %v2106, %v2110
        %2113 = vmatprep.subr.mxu0 0.0
        %2114 = vmatpush1.msra.mxu0 %v2090
        %2115 = vmatprep.subr.mxu0 0.0
        %2116 = vmatpush1.msra.mxu0 %v2091
        %2117 = vmatprep.subr.mxu0 0.0
        %2118 = vmatpush1.msra.mxu0 %v2092
        %2119 = vmatprep.subr.mxu0 0.0
        %2120 = vmatpush1.msra.mxu0 %v2093
        %2121 = vmatprep.subr.mxu0 0.0
        %2122 = vmatpush1.msra.mxu0 %v2094
        %2123 = vmatprep.subr.mxu0 0.0
        %2124 = vmatpush1.msra.mxu0 %v2095
        %2125 = vmatprep.subr.mxu0 0.0
        %2126 = vmatpush1.msra.mxu0 %v2096
        %2127 = vmatprep.subr.mxu0 0.0
        %2128 = vmatpush1.msra.mxu0 %v2097
        %2129 = vmatprep.subr.mxu0 0.0
        %2130 = vmatpush1.msra.mxu0 %v2098
        %2131 = vmatprep.subr.mxu0 0.0
        %2132 = vmatpush1.msra.mxu0 %v2099
        %2133 = vmatprep.subr.mxu0 0.0
        %2134 = vmatpush1.msra.mxu0 %v2100
        %2135 = vmatprep.subr.mxu0 0.0
        %2136 = vmatpush1.msra.mxu0 %v2101
        %2137 = vmatprep.subr.mxu0 0.0
        %2138 = vmatpush1.msra.mxu0 %v2102
        %2139 = vmatprep.subr.mxu0 0.0
        %2140 = vmatpush1.msra.mxu0 %v2103
        %2141 = vmatprep.subr.mxu0 0.0
        %2142 = vmatpush1.msra.mxu0 %v2104
        %2143 = vmatprep.subr.mxu0 0.0
        %2144 = vmatpush1.msra.mxu0 %v2105
        %2145 = vmatprep.subr.mxu0 0.0
        %2146 = vmatpush1.msra.mxu0 0.0
        %2147 = vmatprep.subr.mxu0 0.0
        %2148 = vmatpush1.msra.mxu0 0.0
        %2149 = vmatprep.subr.mxu0 0.0
        %2150 = vmatpush1.msra.mxu0 0.0
        %2151 = vmatprep.subr.mxu0 0.0
        %2152 = vmatpush1.msra.mxu0 0.0
        %2153 = vmatprep.subr.mxu0 0.0
        %2154 = vmatpush1.msra.mxu0 0.0
        %2155 = vmatprep.subr.mxu0 0.0
        %2156 = vmatpush1.msra.mxu0 0.0
        %2157 = vmatprep.subr.mxu0 0.0
        %2158 = vmatpush1.msra.mxu0 0.0
        %2159 = vmatprep.subr.mxu0 0.0
        %2160 = vmatpush1.msra.mxu0 0.0
        %2161 = vmatprep.subr.mxu0 0.0
        %2162 = vmatpush1.msra.mxu0 0.0
        %2163 = vmatprep.subr.mxu0 0.0
        %2164 = vmatpush1.msra.mxu0 0.0
        %2165 = vmatprep.subr.mxu0 0.0
        %2166 = vmatpush1.msra.mxu0 0.0
        %2167 = vmatprep.subr.mxu0 0.0
        %2168 = vmatpush1.msra.mxu0 0.0
        %2169 = vmatprep.subr.mxu0 0.0
        %2170 = vmatpush1.msra.mxu0 0.0
        %2171 = vmatprep.subr.mxu0 0.0
        %2172 = vmatpush1.msra.mxu0 0.0
        %2173 = vmatprep.subr.mxu0 0.0
        %2174 = vmatpush1.msra.mxu0 0.0
        %2175 = vmatprep.subr.mxu0 0.0
        %2176 = vmatpush1.msra.mxu0 0.0
        %2177 = vmatprep.mubr.f32.mxu0 0.0
        %2178 = vmatmul.mubr.f32.gmra.mrb[0].mxu0 %v2074
        %v2179 = vpop.f32.mrb[0].mxu0
        %v2180 = vadd.f32 %v2111, %v2179
        %v2181 = vpop.f32.mrb[0].mxu0
        %2182 = vmatprep.mubr.f32.mxu0 0.0
        %2183 = vmatmul.mubr.f32.gmra.mrb[0].mxu0 %v2075
        %v2184 = vpop.f32.mrb[0].mxu0
        %v2185 = vadd.f32 %v2111, %v2184
        %v2186 = vpop.f32.mrb[0].mxu0
        %2187 = vmatprep.mubr.f32.mxu0 0.0
        %2188 = vmatmul.mubr.f32.gmra.mrb[0].mxu0 %v2076
        %v2189 = vpop.f32.mrb[0].mxu0
        %v2190 = vadd.f32 %v2111, %v2189
        %v2191 = vpop.f32.mrb[0].mxu0
        %2192 = vmatprep.mubr.f32.mxu0 0.0
        %2193 = vmatmul.mubr.f32.gmra.mrb[0].mxu0 %v2077
        %v2194 = vpop.f32.mrb[0].mxu0
        %v2195 = vadd.f32 %v2111, %v2194
        %v2196 = vpop.f32.mrb[0].mxu0
        %2197 = vmatprep.mubr.f32.mxu0 0.0
        %2198 = vmatmul.mubr.f32.gmra.mrb[0].mxu0 %v2078
        %v2199 = vpop.f32.mrb[0].mxu0
        %v2200 = vadd.f32 %v2111, %v2199
        %v2201 = vpop.f32.mrb[0].mxu0
        %2202 = vmatprep.mubr.f32.mxu0 0.0
        %2203 = vmatmul.mubr.f32.gmra.mrb[0].mxu0 %v2079
        %v2204 = vpop.f32.mrb[0].mxu0
        %v2205 = vadd.f32 %v2111, %v2204
        %v2206 = vpop.f32.mrb[0].mxu0
        %2207 = vmatprep.mubr.f32.mxu0 0.0
        %2208 = vmatmul.mubr.f32.gmra.mrb[0].mxu0 %v2080
        %v2209 = vpop.f32.mrb[0].mxu0
        %v2210 = vadd.f32 %v2111, %v2209
        %v2211 = vpop.f32.mrb[0].mxu0
        %2212 = vmatprep.mubr.f32.mxu0 0.0
        %2213 = vmatmul.mubr.f32.gmra.mrb[0].mxu0 %v2081
        %v2214 = vpop.f32.mrb[0].mxu0
        %v2215 = vadd.f32 %v2111, %v2214
        %v2216 = vpop.f32.mrb[0].mxu0
        %2217 = vmatprep.mubr.f32.mxu0 0.0
        %2218 = vmatmul.mubr.f32.gmra.mrb[0].mxu0 %v2082
        %v2219 = vpop.f32.mrb[0].mxu0
        %v2220 = vadd.f32 %v2111, %v2219
        %v2221 = vpop.f32.mrb[0].mxu0
        %2222 = vmatprep.mubr.f32.mxu0 0.0
        %2223 = vmatmul.mubr.f32.gmra.mrb[0].mxu0 %v2083
        %v2224 = vpop.f32.mrb[0].mxu0
        %v2225 = vadd.f32 %v2111, %v2224
        %v2226 = vpop.f32.mrb[0].mxu0
        %2227 = vmatprep.mubr.f32.mxu0 0.0
        %2228 = vmatmul.mubr.f32.gmra.mrb[0].mxu0 %v2084
        %v2229 = vpop.f32.mrb[0].mxu0
        %v2230 = vadd.f32 %v2111, %v2229
        %v2231 = vpop.f32.mrb[0].mxu0
        %2232 = vmatprep.mubr.f32.mxu0 0.0
        %2233 = vmatmul.mubr.f32.gmra.mrb[0].mxu0 %v2085
        %v2234 = vpop.f32.mrb[0].mxu0
        %v2235 = vadd.f32 %v2111, %v2234
        %v2236 = vpop.f32.mrb[0].mxu0
        %2237 = vmatprep.mubr.f32.mxu0 0.0
        %2238 = vmatmul.mubr.f32.gmra.mrb[0].mxu0 %v2086
        %v2239 = vpop.f32.mrb[0].mxu0
        %v2240 = vadd.f32 %v2111, %v2239
        %v2241 = vpop.f32.mrb[0].mxu0
        %2242 = vmatprep.mubr.f32.mxu0 0.0
        %2243 = vmatmul.mubr.f32.gmra.mrb[0].mxu0 %v2087
        %v2244 = vpop.f32.mrb[0].mxu0
        %v2245 = vadd.f32 %v2111, %v2244
        %v2246 = vpop.f32.mrb[0].mxu0
        %2247 = vmatprep.mubr.f32.mxu0 0.0
        %2248 = vmatmul.mubr.f32.gmra.mrb[0].mxu0 %v2088
        %v2249 = vpop.f32.mrb[0].mxu0
        %v2250 = vadd.f32 %v2111, %v2249
        %v2251 = vpop.f32.mrb[0].mxu0
        %2252 = vmatprep.mubr.f32.mxu0 0.0
        %2253 = vmatmul.mubr.f32.gmra.mrb[0].mxu0 %v2089
        %v2254 = vpop.f32.mrb[0].mxu0
        %v2255 = vadd.f32 %v2111, %v2254
        %v2256 = vpop.f32.mrb[0].mxu0
        %2257 = vdwg.mxu0
        %v2258 = vmax.f32 %v2180, 0.0
        %v2259 = vmax.f32 %v2185, 0.0
        %v2260 = vmax.f32 %v2190, 0.0
        %v2261 = vmax.f32 %v2195, 0.0
        %v2262 = vmax.f32 %v2200, 0.0
        %v2263 = vmax.f32 %v2205, 0.0
        %v2264 = vmax.f32 %v2210, 0.0
        %v2265 = vmax.f32 %v2215, 0.0
        %v2266 = vmax.f32 %v2220, 0.0
        %v2267 = vmax.f32 %v2225, 0.0
        %v2268 = vmax.f32 %v2230, 0.0
        %v2269 = vmax.f32 %v2235, 0.0
        %v2270 = vmax.f32 %v2240, 0.0
        %v2271 = vmax.f32 %v2245, 0.0
        %v2272 = vmax.f32 %v2250, 0.0
        %v2273 = vmax.f32 %v2255, 0.0
        %v2274 = vld [vmem:[%s792] sm:$0xff]
        %v2275 = vld [vmem:[%s792 + $0x8] sm:$0xff]
        %v2276 = vld [vmem:[%s792 + $0x10] sm:$0xff]
        %v2277 = vld [vmem:[%s792 + $0x18] sm:$0xff]
        %v2278 = vld [vmem:[%s792 + $0x20] sm:$0xff]
        %v2279 = vld [vmem:[%s792 + $0x28] sm:$0xff]
        %v2280 = vld [vmem:[%s792 + $0x30] sm:$0xff]
        %v2281 = vld [vmem:[%s792 + $0x38] sm:$0xff]
        %v2282 = vld [vmem:[%s792 + $0x40] sm:$0xff]
        %v2283 = vld [vmem:[%s792 + $0x48] sm:$0xff]
        %v2284 = vld [vmem:[%s792 + $0x50] sm:$0xff]
        %v2285 = vld [vmem:[%s792 + $0x58] sm:$0xff]
        %v2286 = vld [vmem:[%s792 + $0x60] sm:$0xff]
        %v2287 = vld [vmem:[%s792 + $0x68] sm:$0xff]
        %v2288 = vld [vmem:[%s792 + $0x70] sm:$0xff]
        %v2289 = vld [vmem:[%s792 + $0x78] sm:$0xff]
        %v2290 = vld [vmem:[%s809] sm:$0x1]
        %v2292 = vlaneseq
        %v2293 = vshrl.u32 %v2292, 7
        %v2294 = vsub.s32 0, %v2293
        %v2295 = vrot.slane %v2290, %v2294
        %2297 = vmatprep.subr.mxu0 0.0
        %2298 = vmatpush1.msra.mxu0 %v2274
        %2299 = vmatprep.subr.mxu0 0.0
        %2300 = vmatpush1.msra.mxu0 %v2275
        %2301 = vmatprep.subr.mxu0 0.0
        %2302 = vmatpush1.msra.mxu0 %v2276
        %2303 = vmatprep.subr.mxu0 0.0
        %2304 = vmatpush1.msra.mxu0 %v2277
        %2305 = vmatprep.subr.mxu0 0.0
        %2306 = vmatpush1.msra.mxu0 %v2278
        %2307 = vmatprep.subr.mxu0 0.0
        %2308 = vmatpush1.msra.mxu0 %v2279
        %2309 = vmatprep.subr.mxu0 0.0
        %2310 = vmatpush1.msra.mxu0 %v2280
        %2311 = vmatprep.subr.mxu0 0.0
        %2312 = vmatpush1.msra.mxu0 %v2281
        %2313 = vmatprep.subr.mxu0 0.0
        %2314 = vmatpush1.msra.mxu0 %v2282
        %2315 = vmatprep.subr.mxu0 0.0
        %2316 = vmatpush1.msra.mxu0 %v2283
        %2317 = vmatprep.subr.mxu0 0.0
        %2318 = vmatpush1.msra.mxu0 %v2284
        %2319 = vmatprep.subr.mxu0 0.0
        %2320 = vmatpush1.msra.mxu0 %v2285
        %2321 = vmatprep.subr.mxu0 0.0
        %2322 = vmatpush1.msra.mxu0 %v2286
        %2323 = vmatprep.subr.mxu0 0.0
        %2324 = vmatpush1.msra.mxu0 %v2287
        %2325 = vmatprep.subr.mxu0 0.0
        %2326 = vmatpush1.msra.mxu0 %v2288
        %2327 = vmatprep.subr.mxu0 0.0
        %2328 = vmatpush1.msra.mxu0 %v2289
        %2329 = vmatprep.subr.mxu0 0.0
        %2330 = vmatpush1.msra.mxu0 0.0
        %2331 = vmatprep.subr.mxu0 0.0
        %2332 = vmatpush1.msra.mxu0 0.0
        %2333 = vmatprep.subr.mxu0 0.0
        %2334 = vmatpush1.msra.mxu0 0.0
        %2335 = vmatprep.subr.mxu0 0.0
        %2336 = vmatpush1.msra.mxu0 0.0
        %2337 = vmatprep.subr.mxu0 0.0
        %2338 = vmatpush1.msra.mxu0 0.0
        %2339 = vmatprep.subr.mxu0 0.0
        %2340 = vmatpush1.msra.mxu0 0.0
        %2341 = vmatprep.subr.mxu0 0.0
        %2342 = vmatpush1.msra.mxu0 0.0
        %2343 = vmatprep.subr.mxu0 0.0
        %2344 = vmatpush1.msra.mxu0 0.0
        %2345 = vmatprep.subr.mxu0 0.0
        %2346 = vmatpush1.msra.mxu0 0.0
        %2347 = vmatprep.subr.mxu0 0.0
        %2348 = vmatpush1.msra.mxu0 0.0
        %2349 = vmatprep.subr.mxu0 0.0
        %2350 = vmatpush1.msra.mxu0 0.0
        %2351 = vmatprep.subr.mxu0 0.0
        %2352 = vmatpush1.msra.mxu0 0.0
        %2353 = vmatprep.subr.mxu0 0.0
        %2354 = vmatpush1.msra.mxu0 0.0
        %2355 = vmatprep.subr.mxu0 0.0
        %2356 = vmatpush1.msra.mxu0 0.0
        %2357 = vmatprep.subr.mxu0 0.0
        %2358 = vmatpush1.msra.mxu0 0.0
        %2359 = vmatprep.subr.mxu0 0.0
        %2360 = vmatpush1.msra.mxu0 0.0
        %2361 = vmatprep.mubr.f32.mxu0 0.0
        %2362 = vmatmul.mubr.f32.gmra.mrb[0].mxu0 %v2258
        %v2363 = vpop.f32.mrb[0].mxu0
        %v2364 = vadd.f32 %v2295, %v2363
        %v2365 = vpop.f32.mrb[0].mxu0
        %2366 = vmatprep.mubr.f32.mxu0 0.0
        %2367 = vmatmul.mubr.f32.gmra.mrb[0].mxu0 %v2259
        %v2368 = vpop.f32.mrb[0].mxu0
        %v2369 = vadd.f32 %v2295, %v2368
        %v2370 = vpop.f32.mrb[0].mxu0
        %2371 = vmatprep.mubr.f32.mxu0 0.0
        %2372 = vmatmul.mubr.f32.gmra.mrb[0].mxu0 %v2260
        %v2373 = vpop.f32.mrb[0].mxu0
        %v2374 = vadd.f32 %v2295, %v2373
        %v2375 = vpop.f32.mrb[0].mxu0
        %2376 = vmatprep.mubr.f32.mxu0 0.0
        %2377 = vmatmul.mubr.f32.gmra.mrb[0].mxu0 %v2261
        %v2378 = vpop.f32.mrb[0].mxu0
        %v2379 = vadd.f32 %v2295, %v2378
        %v2380 = vpop.f32.mrb[0].mxu0
        %2381 = vmatprep.mubr.f32.mxu0 0.0
        %2382 = vmatmul.mubr.f32.gmra.mrb[0].mxu0 %v2262
        %v2383 = vpop.f32.mrb[0].mxu0
        %v2384 = vadd.f32 %v2295, %v2383
        %v2385 = vpop.f32.mrb[0].mxu0
        %2386 = vmatprep.mubr.f32.mxu0 0.0
        %2387 = vmatmul.mubr.f32.gmra.mrb[0].mxu0 %v2263
        %v2388 = vpop.f32.mrb[0].mxu0
        %v2389 = vadd.f32 %v2295, %v2388
        %v2390 = vpop.f32.mrb[0].mxu0
        %2391 = vmatprep.mubr.f32.mxu0 0.0
        %2392 = vmatmul.mubr.f32.gmra.mrb[0].mxu0 %v2264
        %v2393 = vpop.f32.mrb[0].mxu0
        %v2394 = vadd.f32 %v2295, %v2393
        %v2395 = vpop.f32.mrb[0].mxu0
        %2396 = vmatprep.mubr.f32.mxu0 0.0
        %2397 = vmatmul.mubr.f32.gmra.mrb[0].mxu0 %v2265
        %v2398 = vpop.f32.mrb[0].mxu0
        %v2399 = vadd.f32 %v2295, %v2398
        %v2400 = vpop.f32.mrb[0].mxu0
        %2401 = vmatprep.mubr.f32.mxu0 0.0
        %2402 = vmatmul.mubr.f32.gmra.mrb[0].mxu0 %v2266
        %v2403 = vpop.f32.mrb[0].mxu0
        %v2404 = vadd.f32 %v2295, %v2403
        %v2405 = vpop.f32.mrb[0].mxu0
        %2406 = vmatprep.mubr.f32.mxu0 0.0
        %2407 = vmatmul.mubr.f32.gmra.mrb[0].mxu0 %v2267
        %v2408 = vpop.f32.mrb[0].mxu0
        %v2409 = vadd.f32 %v2295, %v2408
        %v2410 = vpop.f32.mrb[0].mxu0
        %2411 = vmatprep.mubr.f32.mxu0 0.0
        %2412 = vmatmul.mubr.f32.gmra.mrb[0].mxu0 %v2268
        %v2413 = vpop.f32.mrb[0].mxu0
        %v2414 = vadd.f32 %v2295, %v2413
        %v2415 = vpop.f32.mrb[0].mxu0
        %2416 = vmatprep.mubr.f32.mxu0 0.0
        %2417 = vmatmul.mubr.f32.gmra.mrb[0].mxu0 %v2269
        %v2418 = vpop.f32.mrb[0].mxu0
        %v2419 = vadd.f32 %v2295, %v2418
        %v2420 = vpop.f32.mrb[0].mxu0
        %2421 = vmatprep.mubr.f32.mxu0 0.0
        %2422 = vmatmul.mubr.f32.gmra.mrb[0].mxu0 %v2270
        %v2423 = vpop.f32.mrb[0].mxu0
        %v2424 = vadd.f32 %v2295, %v2423
        %v2425 = vpop.f32.mrb[0].mxu0
        %2426 = vmatprep.mubr.f32.mxu0 0.0
        %2427 = vmatmul.mubr.f32.gmra.mrb[0].mxu0 %v2271
        %v2428 = vpop.f32.mrb[0].mxu0
        %v2429 = vadd.f32 %v2295, %v2428
        %v2430 = vpop.f32.mrb[0].mxu0
        %2431 = vmatprep.mubr.f32.mxu0 0.0
        %2432 = vmatmul.mubr.f32.gmra.mrb[0].mxu0 %v2272
        %v2433 = vpop.f32.mrb[0].mxu0
        %v2434 = vadd.f32 %v2295, %v2433
        %v2435 = vpop.f32.mrb[0].mxu0
        %2436 = vmatprep.mubr.f32.mxu0 0.0
        %2437 = vmatmul.mubr.f32.gmra.mrb[0].mxu0 %v2273
        %v2438 = vpop.f32.mrb[0].mxu0
        %v2439 = vadd.f32 %v2295, %v2438
        %v2440 = vpop.f32.mrb[0].mxu0
        %2441 = vdwg.mxu0
        %v2442 = vld [vmem:[%s962] sm:$0xff]
        %v2443 = vld [vmem:[%s962 + $0x8] sm:$0xff]
        %v2444 = vld [vmem:[%s962 + $0x10] sm:$0xff]
        %v2445 = vld [vmem:[%s962 + $0x18] sm:$0xff]
        %v2446 = vld [vmem:[%s962 + $0x20] sm:$0xff]
        %v2447 = vld [vmem:[%s962 + $0x28] sm:$0xff]
        %v2448 = vld [vmem:[%s962 + $0x30] sm:$0xff]
        %v2449 = vld [vmem:[%s962 + $0x38] sm:$0xff]
        %v2450 = vld [vmem:[%s962 + $0x40] sm:$0xff]
        %v2451 = vld [vmem:[%s962 + $0x48] sm:$0xff]
        %v2452 = vld [vmem:[%s962 + $0x50] sm:$0xff]
        %v2453 = vld [vmem:[%s962 + $0x58] sm:$0xff]
        %v2454 = vld [vmem:[%s962 + $0x60] sm:$0xff]
        %v2455 = vld [vmem:[%s962 + $0x68] sm:$0xff]
        %v2456 = vld [vmem:[%s962 + $0x70] sm:$0xff]
        %v2457 = vld [vmem:[%s962 + $0x78] sm:$0xff]
        %v2458 = vld [vmem:[%s979] sm:$0x1]
        %v2460 = vlaneseq
        %v2461 = vshrl.u32 %v2460, 7
        %v2462 = vsub.s32 0, %v2461
        %v2463 = vrot.slane %v2458, %v2462
        %2465 = vmatprep.subr.mxu0 0.0
        %2466 = vmatpush1.msra.mxu0 %v2442
        %2467 = vmatprep.subr.mxu0 0.0
        %2468 = vmatpush1.msra.mxu0 %v2443
        %2469 = vmatprep.subr.mxu0 0.0
        %2470 = vmatpush1.msra.mxu0 %v2444
        %2471 = vmatprep.subr.mxu0 0.0
        %2472 = vmatpush1.msra.mxu0 %v2445
        %2473 = vmatprep.subr.mxu0 0.0
        %2474 = vmatpush1.msra.mxu0 %v2446
        %2475 = vmatprep.subr.mxu0 0.0
        %2476 = vmatpush1.msra.mxu0 %v2447
        %2477 = vmatprep.subr.mxu0 0.0
        %2478 = vmatpush1.msra.mxu0 %v2448
        %2479 = vmatprep.subr.mxu0 0.0
        %2480 = vmatpush1.msra.mxu0 %v2449
        %2481 = vmatprep.subr.mxu0 0.0
        %2482 = vmatpush1.msra.mxu0 %v2450
        %2483 = vmatprep.subr.mxu0 0.0
        %2484 = vmatpush1.msra.mxu0 %v2451
        %2485 = vmatprep.subr.mxu0 0.0
        %2486 = vmatpush1.msra.mxu0 %v2452
        %2487 = vmatprep.subr.mxu0 0.0
        %2488 = vmatpush1.msra.mxu0 %v2453
        %2489 = vmatprep.subr.mxu0 0.0
        %2490 = vmatpush1.msra.mxu0 %v2454
        %2491 = vmatprep.subr.mxu0 0.0
        %2492 = vmatpush1.msra.mxu0 %v2455
        %2493 = vmatprep.subr.mxu0 0.0
        %2494 = vmatpush1.msra.mxu0 %v2456
        %2495 = vmatprep.subr.mxu0 0.0
        %2496 = vmatpush1.msra.mxu0 %v2457
        %2497 = vmatprep.subr.mxu0 0.0
        %2498 = vmatpush1.msra.mxu0 0.0
        %2499 = vmatprep.subr.mxu0 0.0
        %2500 = vmatpush1.msra.mxu0 0.0
        %2501 = vmatprep.subr.mxu0 0.0
        %2502 = vmatpush1.msra.mxu0 0.0
        %2503 = vmatprep.subr.mxu0 0.0
        %2504 = vmatpush1.msra.mxu0 0.0
        %2505 = vmatprep.subr.mxu0 0.0
        %2506 = vmatpush1.msra.mxu0 0.0
        %2507 = vmatprep.subr.mxu0 0.0
        %2508 = vmatpush1.msra.mxu0 0.0
        %2509 = vmatprep.subr.mxu0 0.0
        %2510 = vmatpush1.msra.mxu0 0.0
        %2511 = vmatprep.subr.mxu0 0.0
        %2512 = vmatpush1.msra.mxu0 0.0
        %2513 = vmatprep.subr.mxu0 0.0
        %2514 = vmatpush1.msra.mxu0 0.0
        %2515 = vmatprep.subr.mxu0 0.0
        %2516 = vmatpush1.msra.mxu0 0.0
        %2517 = vmatprep.subr.mxu0 0.0
        %2518 = vmatpush1.msra.mxu0 0.0
        %2519 = vmatprep.subr.mxu0 0.0
        %2520 = vmatpush1.msra.mxu0 0.0
        %2521 = vmatprep.subr.mxu0 0.0
        %2522 = vmatpush1.msra.mxu0 0.0
        %2523 = vmatprep.subr.mxu0 0.0
        %2524 = vmatpush1.msra.mxu0 0.0
        %2525 = vmatprep.subr.mxu0 0.0
        %2526 = vmatpush1.msra.mxu0 0.0
        %2527 = vmatprep.subr.mxu0 0.0
        %2528 = vmatpush1.msra.mxu0 0.0
        %2529 = vmatprep.mubr.f32.mxu0 0.0
        %2530 = vmatmul.mubr.f32.gmra.mrb[0].mxu0 %v2364
        %v2531 = vpop.f32.mrb[0].mxu0
        %v2532 = vadd.f32 %v2463, %v2531
        %v2533 = vpop.f32.mrb[0].mxu0
        %2534 = vmatprep.mubr.f32.mxu0 0.0
        %2535 = vmatmul.mubr.f32.gmra.mrb[0].mxu0 %v2369
        %v2536 = vpop.f32.mrb[0].mxu0
        %v2537 = vadd.f32 %v2463, %v2536
        %v2538 = vpop.f32.mrb[0].mxu0
        %2539 = vmatprep.mubr.f32.mxu0 0.0
        %2540 = vmatmul.mubr.f32.gmra.mrb[0].mxu0 %v2374
        %v2541 = vpop.f32.mrb[0].mxu0
        %v2542 = vadd.f32 %v2463, %v2541
        %v2543 = vpop.f32.mrb[0].mxu0
        %2544 = vmatprep.mubr.f32.mxu0 0.0
        %2545 = vmatmul.mubr.f32.gmra.mrb[0].mxu0 %v2379
        %v2546 = vpop.f32.mrb[0].mxu0
        %v2547 = vadd.f32 %v2463, %v2546
        %v2548 = vpop.f32.mrb[0].mxu0
        %2549 = vmatprep.mubr.f32.mxu0 0.0
        %2550 = vmatmul.mubr.f32.gmra.mrb[0].mxu0 %v2384
        %v2551 = vpop.f32.mrb[0].mxu0
        %v2552 = vadd.f32 %v2463, %v2551
        %v2553 = vpop.f32.mrb[0].mxu0
        %2554 = vmatprep.mubr.f32.mxu0 0.0
        %2555 = vmatmul.mubr.f32.gmra.mrb[0].mxu0 %v2389
        %v2556 = vpop.f32.mrb[0].mxu0
        %v2557 = vadd.f32 %v2463, %v2556
        %v2558 = vpop.f32.mrb[0].mxu0
        %2559 = vmatprep.mubr.f32.mxu0 0.0
        %2560 = vmatmul.mubr.f32.gmra.mrb[0].mxu0 %v2394
        %v2561 = vpop.f32.mrb[0].mxu0
        %v2562 = vadd.f32 %v2463, %v2561
        %v2563 = vpop.f32.mrb[0].mxu0
        %2564 = vmatprep.mubr.f32.mxu0 0.0
        %2565 = vmatmul.mubr.f32.gmra.mrb[0].mxu0 %v2399
        %v2566 = vpop.f32.mrb[0].mxu0
        %v2567 = vadd.f32 %v2463, %v2566
        %v2568 = vpop.f32.mrb[0].mxu0
        %2569 = vmatprep.mubr.f32.mxu0 0.0
        %2570 = vmatmul.mubr.f32.gmra.mrb[0].mxu0 %v2404
        %v2571 = vpop.f32.mrb[0].mxu0
        %v2572 = vadd.f32 %v2463, %v2571
        %v2573 = vpop.f32.mrb[0].mxu0
        %2574 = vmatprep.mubr.f32.mxu0 0.0
        %2575 = vmatmul.mubr.f32.gmra.mrb[0].mxu0 %v2409
        %v2576 = vpop.f32.mrb[0].mxu0
        %v2577 = vadd.f32 %v2463, %v2576
        %v2578 = vpop.f32.mrb[0].mxu0
        %2579 = vmatprep.mubr.f32.mxu0 0.0
        %2580 = vmatmul.mubr.f32.gmra.mrb[0].mxu0 %v2414
        %v2581 = vpop.f32.mrb[0].mxu0
        %v2582 = vadd.f32 %v2463, %v2581
        %v2583 = vpop.f32.mrb[0].mxu0
        %2584 = vmatprep.mubr.f32.mxu0 0.0
        %2585 = vmatmul.mubr.f32.gmra.mrb[0].mxu0 %v2419
        %v2586 = vpop.f32.mrb[0].mxu0
        %v2587 = vadd.f32 %v2463, %v2586
        %v2588 = vpop.f32.mrb[0].mxu0
        %2589 = vmatprep.mubr.f32.mxu0 0.0
        %2590 = vmatmul.mubr.f32.gmra.mrb[0].mxu0 %v2424
        %v2591 = vpop.f32.mrb[0].mxu0
        %v2592 = vadd.f32 %v2463, %v2591
        %v2593 = vpop.f32.mrb[0].mxu0
        %2594 = vmatprep.mubr.f32.mxu0 0.0
        %2595 = vmatmul.mubr.f32.gmra.mrb[0].mxu0 %v2429
        %v2596 = vpop.f32.mrb[0].mxu0
        %v2597 = vadd.f32 %v2463, %v2596
        %v2598 = vpop.f32.mrb[0].mxu0
        %2599 = vmatprep.mubr.f32.mxu0 0.0
        %2600 = vmatmul.mubr.f32.gmra.mrb[0].mxu0 %v2434
        %v2601 = vpop.f32.mrb[0].mxu0
        %v2602 = vadd.f32 %v2463, %v2601
        %v2603 = vpop.f32.mrb[0].mxu0
        %2604 = vmatprep.mubr.f32.mxu0 0.0
        %2605 = vmatmul.mubr.f32.gmra.mrb[0].mxu0 %v2439
        %v2606 = vpop.f32.mrb[0].mxu0
        %v2607 = vadd.f32 %v2463, %v2606
        %v2608 = vpop.f32.mrb[0].mxu0
        %2609 = vdwg.mxu0
        %v2610 = vmax.f32 %v2532, 0.0
        %v2611 = vmax.f32 %v2537, 0.0
        %v2612 = vmax.f32 %v2542, 0.0
        %v2613 = vmax.f32 %v2547, 0.0
        %v2614 = vmax.f32 %v2552, 0.0
        %v2615 = vmax.f32 %v2557, 0.0
        %v2616 = vmax.f32 %v2562, 0.0
        %v2617 = vmax.f32 %v2567, 0.0
        %v2618 = vmax.f32 %v2572, 0.0
        %v2619 = vmax.f32 %v2577, 0.0
        %v2620 = vmax.f32 %v2582, 0.0
        %v2621 = vmax.f32 %v2587, 0.0
        %v2622 = vmax.f32 %v2592, 0.0
        %v2623 = vmax.f32 %v2597, 0.0
        %v2624 = vmax.f32 %v2602, 0.0
        %v2625 = vmax.f32 %v2607, 0.0
        %v2626 = vld [vmem:[%s1148] sm:$0xff]
        %v2627 = vld [vmem:[%s1148 + $0x8] sm:$0xff]
        %v2628 = vld [vmem:[%s1148 + $0x10] sm:$0xff]
        %v2629 = vld [vmem:[%s1148 + $0x18] sm:$0xff]
        %v2630 = vld [vmem:[%s1148 + $0x20] sm:$0xff]
        %v2631 = vld [vmem:[%s1148 + $0x28] sm:$0xff]
        %v2632 = vld [vmem:[%s1148 + $0x30] sm:$0xff]
        %v2633 = vld [vmem:[%s1148 + $0x38] sm:$0xff]
        %v2634 = vld [vmem:[%s1148 + $0x40] sm:$0xff]
        %v2635 = vld [vmem:[%s1148 + $0x48] sm:$0xff]
        %v2636 = vld [vmem:[%s1148 + $0x50] sm:$0xff]
        %v2637 = vld [vmem:[%s1148 + $0x58] sm:$0xff]
        %v2638 = vld [vmem:[%s1148 + $0x60] sm:$0xff]
        %v2639 = vld [vmem:[%s1148 + $0x68] sm:$0xff]
        %v2640 = vld [vmem:[%s1148 + $0x70] sm:$0xff]
        %v2641 = vld [vmem:[%s1148 + $0x78] sm:$0xff]
        %v2642 = vld [vmem:[%s1165] sm:$0x1]
        %v2644 = vlaneseq
        %v2645 = vshrl.u32 %v2644, 7
        %v2646 = vsub.s32 0, %v2645
        %v2647 = vrot.slane %v2642, %v2646
        %2649 = vmatprep.subr.mxu0 0.0
        %2650 = vmatpush1.msra.mxu0 %v2626
        %2651 = vmatprep.subr.mxu0 0.0
        %2652 = vmatpush1.msra.mxu0 %v2627
        %2653 = vmatprep.subr.mxu0 0.0
        %2654 = vmatpush1.msra.mxu0 %v2628
        %2655 = vmatprep.subr.mxu0 0.0
        %2656 = vmatpush1.msra.mxu0 %v2629
        %2657 = vmatprep.subr.mxu0 0.0
        %2658 = vmatpush1.msra.mxu0 %v2630
        %2659 = vmatprep.subr.mxu0 0.0
        %2660 = vmatpush1.msra.mxu0 %v2631
        %2661 = vmatprep.subr.mxu0 0.0
        %2662 = vmatpush1.msra.mxu0 %v2632
        %2663 = vmatprep.subr.mxu0 0.0
        %2664 = vmatpush1.msra.mxu0 %v2633
        %2665 = vmatprep.subr.mxu0 0.0
        %2666 = vmatpush1.msra.mxu0 %v2634
        %2667 = vmatprep.subr.mxu0 0.0
        %2668 = vmatpush1.msra.mxu0 %v2635
        %2669 = vmatprep.subr.mxu0 0.0
        %2670 = vmatpush1.msra.mxu0 %v2636
        %2671 = vmatprep.subr.mxu0 0.0
        %2672 = vmatpush1.msra.mxu0 %v2637
        %2673 = vmatprep.subr.mxu0 0.0
        %2674 = vmatpush1.msra.mxu0 %v2638
        %2675 = vmatprep.subr.mxu0 0.0
        %2676 = vmatpush1.msra.mxu0 %v2639
        %2677 = vmatprep.subr.mxu0 0.0
        %2678 = vmatpush1.msra.mxu0 %v2640
        %2679 = vmatprep.subr.mxu0 0.0
        %2680 = vmatpush1.msra.mxu0 %v2641
        %2681 = vmatprep.subr.mxu0 0.0
        %2682 = vmatpush1.msra.mxu0 0.0
        %2683 = vmatprep.subr.mxu0 0.0
        %2684 = vmatpush1.msra.mxu0 0.0
        %2685 = vmatprep.subr.mxu0 0.0
        %2686 = vmatpush1.msra.mxu0 0.0
        %2687 = vmatprep.subr.mxu0 0.0
        %2688 = vmatpush1.msra.mxu0 0.0
        %2689 = vmatprep.subr.mxu0 0.0
        %2690 = vmatpush1.msra.mxu0 0.0
        %2691 = vmatprep.subr.mxu0 0.0
        %2692 = vmatpush1.msra.mxu0 0.0
        %2693 = vmatprep.subr.mxu0 0.0
        %2694 = vmatpush1.msra.mxu0 0.0
        %2695 = vmatprep.subr.mxu0 0.0
        %2696 = vmatpush1.msra.mxu0 0.0
        %2697 = vmatprep.subr.mxu0 0.0
        %2698 = vmatpush1.msra.mxu0 0.0
        %2699 = vmatprep.subr.mxu0 0.0
        %2700 = vmatpush1.msra.mxu0 0.0
        %2701 = vmatprep.subr.mxu0 0.0
        %2702 = vmatpush1.msra.mxu0 0.0
        %2703 = vmatprep.subr.mxu0 0.0
        %2704 = vmatpush1.msra.mxu0 0.0
        %2705 = vmatprep.subr.mxu0 0.0
        %2706 = vmatpush1.msra.mxu0 0.0
        %2707 = vmatprep.subr.mxu0 0.0
        %2708 = vmatpush1.msra.mxu0 0.0
        %2709 = vmatprep.subr.mxu0 0.0
        %2710 = vmatpush1.msra.mxu0 0.0
        %2711 = vmatprep.subr.mxu0 0.0
        %2712 = vmatpush1.msra.mxu0 0.0
        %2713 = vmatprep.mubr.f32.mxu0 0.0
        %2714 = vmatmul.mubr.f32.gmra.mrb[0].mxu0 %v2610
        %v2715 = vpop.f32.mrb[0].mxu0
        %v2716 = vadd.f32 %v2647, %v2715
        %v2717 = vpop.f32.mrb[0].mxu0
        %2718 = vmatprep.mubr.f32.mxu0 0.0
        %2719 = vmatmul.mubr.f32.gmra.mrb[0].mxu0 %v2611
        %v2720 = vpop.f32.mrb[0].mxu0
        %v2721 = vadd.f32 %v2647, %v2720
        %v2722 = vpop.f32.mrb[0].mxu0
        %2723 = vmatprep.mubr.f32.mxu0 0.0
        %2724 = vmatmul.mubr.f32.gmra.mrb[0].mxu0 %v2612
        %v2725 = vpop.f32.mrb[0].mxu0
        %v2726 = vadd.f32 %v2647, %v2725
        %v2727 = vpop.f32.mrb[0].mxu0
        %2728 = vmatprep.mubr.f32.mxu0 0.0
        %2729 = vmatmul.mubr.f32.gmra.mrb[0].mxu0 %v2613
        %v2730 = vpop.f32.mrb[0].mxu0
        %v2731 = vadd.f32 %v2647, %v2730
        %v2732 = vpop.f32.mrb[0].mxu0
        %2733 = vmatprep.mubr.f32.mxu0 0.0
        %2734 = vmatmul.mubr.f32.gmra.mrb[0].mxu0 %v2614
        %v2735 = vpop.f32.mrb[0].mxu0
        %v2736 = vadd.f32 %v2647, %v2735
        %v2737 = vpop.f32.mrb[0].mxu0
        %2738 = vmatprep.mubr.f32.mxu0 0.0
        %2739 = vmatmul.mubr.f32.gmra.mrb[0].mxu0 %v2615
        %v2740 = vpop.f32.mrb[0].mxu0
        %v2741 = vadd.f32 %v2647, %v2740
        %v2742 = vpop.f32.mrb[0].mxu0
        %2743 = vmatprep.mubr.f32.mxu0 0.0
        %2744 = vmatmul.mubr.f32.gmra.mrb[0].mxu0 %v2616
        %v2745 = vpop.f32.mrb[0].mxu0
        %v2746 = vadd.f32 %v2647, %v2745
        %v2747 = vpop.f32.mrb[0].mxu0
        %2748 = vmatprep.mubr.f32.mxu0 0.0
        %2749 = vmatmul.mubr.f32.gmra.mrb[0].mxu0 %v2617
        %v2750 = vpop.f32.mrb[0].mxu0
        %v2751 = vadd.f32 %v2647, %v2750
        %v2752 = vpop.f32.mrb[0].mxu0
        %2753 = vmatprep.mubr.f32.mxu0 0.0
        %2754 = vmatmul.mubr.f32.gmra.mrb[0].mxu0 %v2618
        %v2755 = vpop.f32.mrb[0].mxu0
        %v2756 = vadd.f32 %v2647, %v2755
        %v2757 = vpop.f32.mrb[0].mxu0
        %2758 = vmatprep.mubr.f32.mxu0 0.0
        %2759 = vmatmul.mubr.f32.gmra.mrb[0].mxu0 %v2619
        %v2760 = vpop.f32.mrb[0].mxu0
        %v2761 = vadd.f32 %v2647, %v2760
        %v2762 = vpop.f32.mrb[0].mxu0
        %2763 = vmatprep.mubr.f32.mxu0 0.0
        %2764 = vmatmul.mubr.f32.gmra.mrb[0].mxu0 %v2620
        %v2765 = vpop.f32.mrb[0].mxu0
        %v2766 = vadd.f32 %v2647, %v2765
        %v2767 = vpop.f32.mrb[0].mxu0
        %2768 = vmatprep.mubr.f32.mxu0 0.0
        %2769 = vmatmul.mubr.f32.gmra.mrb[0].mxu0 %v2621
        %v2770 = vpop.f32.mrb[0].mxu0
        %v2771 = vadd.f32 %v2647, %v2770
        %v2772 = vpop.f32.mrb[0].mxu0
        %2773 = vmatprep.mubr.f32.mxu0 0.0
        %2774 = vmatmul.mubr.f32.gmra.mrb[0].mxu0 %v2622
        %v2775 = vpop.f32.mrb[0].mxu0
        %v2776 = vadd.f32 %v2647, %v2775
        %v2777 = vpop.f32.mrb[0].mxu0
        %2778 = vmatprep.mubr.f32.mxu0 0.0
        %2779 = vmatmul.mubr.f32.gmra.mrb[0].mxu0 %v2623
        %v2780 = vpop.f32.mrb[0].mxu0
        %v2781 = vadd.f32 %v2647, %v2780
        %v2782 = vpop.f32.mrb[0].mxu0
        %2783 = vmatprep.mubr.f32.mxu0 0.0
        %2784 = vmatmul.mubr.f32.gmra.mrb[0].mxu0 %v2624
        %v2785 = vpop.f32.mrb[0].mxu0
        %v2786 = vadd.f32 %v2647, %v2785
        %v2787 = vpop.f32.mrb[0].mxu0
        %2788 = vmatprep.mubr.f32.mxu0 0.0
        %2789 = vmatmul.mubr.f32.gmra.mrb[0].mxu0 %v2625
        %v2790 = vpop.f32.mrb[0].mxu0
        %v2791 = vadd.f32 %v2647, %v2790
        %v2792 = vpop.f32.mrb[0].mxu0
        %2793 = vdwg.mxu0
        %v2794 = vmax.f32 %v2716, 0.0
        %v2795 = vmax.f32 %v2721, 0.0
        %v2796 = vmax.f32 %v2726, 0.0
        %v2797 = vmax.f32 %v2731, 0.0
        %v2798 = vmax.f32 %v2736, 0.0
        %v2799 = vmax.f32 %v2741, 0.0
        %v2800 = vmax.f32 %v2746, 0.0
        %v2801 = vmax.f32 %v2751, 0.0
        %v2802 = vmax.f32 %v2756, 0.0
        %v2803 = vmax.f32 %v2761, 0.0
        %v2804 = vmax.f32 %v2766, 0.0
        %v2805 = vmax.f32 %v2771, 0.0
        %v2806 = vmax.f32 %v2776, 0.0
        %v2807 = vmax.f32 %v2781, 0.0
        %v2808 = vmax.f32 %v2786, 0.0
        %v2809 = vmax.f32 %v2791, 0.0
        %v2810 = vld [vmem:[%s1334] sm:$0xff]
        %v2811 = vld [vmem:[%s1334 + $0x8] sm:$0xff]
        %v2812 = vld [vmem:[%s1334 + $0x10] sm:$0xff]
        %v2813 = vld [vmem:[%s1334 + $0x18] sm:$0xff]
        %v2814 = vld [vmem:[%s1334 + $0x20] sm:$0xff]
        %v2815 = vld [vmem:[%s1334 + $0x28] sm:$0xff]
        %v2816 = vld [vmem:[%s1334 + $0x30] sm:$0xff]
        %v2817 = vld [vmem:[%s1334 + $0x38] sm:$0xff]
        %v2818 = vld [vmem:[%s1334 + $0x40] sm:$0xff]
        %v2819 = vld [vmem:[%s1334 + $0x48] sm:$0xff]
        %v2820 = vld [vmem:[%s1334 + $0x50] sm:$0xff]
        %v2821 = vld [vmem:[%s1334 + $0x58] sm:$0xff]
        %v2822 = vld [vmem:[%s1334 + $0x60] sm:$0xff]
        %v2823 = vld [vmem:[%s1334 + $0x68] sm:$0xff]
        %v2824 = vld [vmem:[%s1334 + $0x70] sm:$0xff]
        %v2825 = vld [vmem:[%s1334 + $0x78] sm:$0xff]
        %v2826 = vld [vmem:[%s1351] sm:$0x1]
        %v2828 = vlaneseq
        %v2829 = vshrl.u32 %v2828, 7
        %v2830 = vsub.s32 0, %v2829
        %v2831 = vrot.slane %v2826, %v2830
        %2833 = vmatprep.subr.mxu0 0.0
        %2834 = vmatpush1.msra.mxu0 %v2810
        %2835 = vmatprep.subr.mxu0 0.0
        %2836 = vmatpush1.msra.mxu0 %v2811
        %2837 = vmatprep.subr.mxu0 0.0
        %2838 = vmatpush1.msra.mxu0 %v2812
        %2839 = vmatprep.subr.mxu0 0.0
        %2840 = vmatpush1.msra.mxu0 %v2813
        %2841 = vmatprep.subr.mxu0 0.0
        %2842 = vmatpush1.msra.mxu0 %v2814
        %2843 = vmatprep.subr.mxu0 0.0
        %2844 = vmatpush1.msra.mxu0 %v2815
        %2845 = vmatprep.subr.mxu0 0.0
        %2846 = vmatpush1.msra.mxu0 %v2816
        %2847 = vmatprep.subr.mxu0 0.0
        %2848 = vmatpush1.msra.mxu0 %v2817
        %2849 = vmatprep.subr.mxu0 0.0
        %2850 = vmatpush1.msra.mxu0 %v2818
        %2851 = vmatprep.subr.mxu0 0.0
        %2852 = vmatpush1.msra.mxu0 %v2819
        %2853 = vmatprep.subr.mxu0 0.0
        %2854 = vmatpush1.msra.mxu0 %v2820
        %2855 = vmatprep.subr.mxu0 0.0
        %2856 = vmatpush1.msra.mxu0 %v2821
        %2857 = vmatprep.subr.mxu0 0.0
        %2858 = vmatpush1.msra.mxu0 %v2822
        %2859 = vmatprep.subr.mxu0 0.0
        %2860 = vmatpush1.msra.mxu0 %v2823
        %2861 = vmatprep.subr.mxu0 0.0
        %2862 = vmatpush1.msra.mxu0 %v2824
        %2863 = vmatprep.subr.mxu0 0.0
        %2864 = vmatpush1.msra.mxu0 %v2825
        %2865 = vmatprep.subr.mxu0 0.0
        %2866 = vmatpush1.msra.mxu0 0.0
        %2867 = vmatprep.subr.mxu0 0.0
        %2868 = vmatpush1.msra.mxu0 0.0
        %2869 = vmatprep.subr.mxu0 0.0
        %2870 = vmatpush1.msra.mxu0 0.0
        %2871 = vmatprep.subr.mxu0 0.0
        %2872 = vmatpush1.msra.mxu0 0.0
        %2873 = vmatprep.subr.mxu0 0.0
        %2874 = vmatpush1.msra.mxu0 0.0
        %2875 = vmatprep.subr.mxu0 0.0
        %2876 = vmatpush1.msra.mxu0 0.0
        %2877 = vmatprep.subr.mxu0 0.0
        %2878 = vmatpush1.msra.mxu0 0.0
        %2879 = vmatprep.subr.mxu0 0.0
        %2880 = vmatpush1.msra.mxu0 0.0
        %2881 = vmatprep.subr.mxu0 0.0
        %2882 = vmatpush1.msra.mxu0 0.0
        %2883 = vmatprep.subr.mxu0 0.0
        %2884 = vmatpush1.msra.mxu0 0.0
        %2885 = vmatprep.subr.mxu0 0.0
        %2886 = vmatpush1.msra.mxu0 0.0
        %2887 = vmatprep.subr.mxu0 0.0
        %2888 = vmatpush1.msra.mxu0 0.0
        %2889 = vmatprep.subr.mxu0 0.0
        %2890 = vmatpush1.msra.mxu0 0.0
        %2891 = vmatprep.subr.mxu0 0.0
        %2892 = vmatpush1.msra.mxu0 0.0
        %2893 = vmatprep.subr.mxu0 0.0
        %2894 = vmatpush1.msra.mxu0 0.0
        %2895 = vmatprep.subr.mxu0 0.0
        %2896 = vmatpush1.msra.mxu0 0.0
        %2897 = vmatprep.mubr.f32.mxu0 0.0
        %2898 = vmatmul.mubr.f32.gmra.mrb[0].mxu0 %v2794
        %v2899 = vpop.f32.mrb[0].mxu0
        %v2900 = vadd.f32 %v2831, %v2899
        %v2901 = vpop.f32.mrb[0].mxu0
        %2902 = vmatprep.mubr.f32.mxu0 0.0
        %2903 = vmatmul.mubr.f32.gmra.mrb[0].mxu0 %v2795
        %v2904 = vpop.f32.mrb[0].mxu0
        %v2905 = vadd.f32 %v2831, %v2904
        %v2906 = vpop.f32.mrb[0].mxu0
        %2907 = vmatprep.mubr.f32.mxu0 0.0
        %2908 = vmatmul.mubr.f32.gmra.mrb[0].mxu0 %v2796
        %v2909 = vpop.f32.mrb[0].mxu0
        %v2910 = vadd.f32 %v2831, %v2909
        %v2911 = vpop.f32.mrb[0].mxu0
        %2912 = vmatprep.mubr.f32.mxu0 0.0
        %2913 = vmatmul.mubr.f32.gmra.mrb[0].mxu0 %v2797
        %v2914 = vpop.f32.mrb[0].mxu0
        %v2915 = vadd.f32 %v2831, %v2914
        %v2916 = vpop.f32.mrb[0].mxu0
        %2917 = vmatprep.mubr.f32.mxu0 0.0
        %2918 = vmatmul.mubr.f32.gmra.mrb[0].mxu0 %v2798
        %v2919 = vpop.f32.mrb[0].mxu0
        %v2920 = vadd.f32 %v2831, %v2919
        %v2921 = vpop.f32.mrb[0].mxu0
        %2922 = vmatprep.mubr.f32.mxu0 0.0
        %2923 = vmatmul.mubr.f32.gmra.mrb[0].mxu0 %v2799
        %v2924 = vpop.f32.mrb[0].mxu0
        %v2925 = vadd.f32 %v2831, %v2924
        %v2926 = vpop.f32.mrb[0].mxu0
        %2927 = vmatprep.mubr.f32.mxu0 0.0
        %2928 = vmatmul.mubr.f32.gmra.mrb[0].mxu0 %v2800
        %v2929 = vpop.f32.mrb[0].mxu0
        %v2930 = vadd.f32 %v2831, %v2929
        %v2931 = vpop.f32.mrb[0].mxu0
        %2932 = vmatprep.mubr.f32.mxu0 0.0
        %2933 = vmatmul.mubr.f32.gmra.mrb[0].mxu0 %v2801
        %v2934 = vpop.f32.mrb[0].mxu0
        %v2935 = vadd.f32 %v2831, %v2934
        %v2936 = vpop.f32.mrb[0].mxu0
        %2937 = vmatprep.mubr.f32.mxu0 0.0
        %2938 = vmatmul.mubr.f32.gmra.mrb[0].mxu0 %v2802
        %v2939 = vpop.f32.mrb[0].mxu0
        %v2940 = vadd.f32 %v2831, %v2939
        %v2941 = vpop.f32.mrb[0].mxu0
        %2942 = vmatprep.mubr.f32.mxu0 0.0
        %2943 = vmatmul.mubr.f32.gmra.mrb[0].mxu0 %v2803
        %v2944 = vpop.f32.mrb[0].mxu0
        %v2945 = vadd.f32 %v2831, %v2944
        %v2946 = vpop.f32.mrb[0].mxu0
        %2947 = vmatprep.mubr.f32.mxu0 0.0
        %2948 = vmatmul.mubr.f32.gmra.mrb[0].mxu0 %v2804
        %v2949 = vpop.f32.mrb[0].mxu0
        %v2950 = vadd.f32 %v2831, %v2949
        %v2951 = vpop.f32.mrb[0].mxu0
        %2952 = vmatprep.mubr.f32.mxu0 0.0
        %2953 = vmatmul.mubr.f32.gmra.mrb[0].mxu0 %v2805
        %v2954 = vpop.f32.mrb[0].mxu0
        %v2955 = vadd.f32 %v2831, %v2954
        %v2956 = vpop.f32.mrb[0].mxu0
        %2957 = vmatprep.mubr.f32.mxu0 0.0
        %2958 = vmatmul.mubr.f32.gmra.mrb[0].mxu0 %v2806
        %v2959 = vpop.f32.mrb[0].mxu0
        %v2960 = vadd.f32 %v2831, %v2959
        %v2961 = vpop.f32.mrb[0].mxu0
        %2962 = vmatprep.mubr.f32.mxu0 0.0
        %2963 = vmatmul.mubr.f32.gmra.mrb[0].mxu0 %v2807
        %v2964 = vpop.f32.mrb[0].mxu0
        %v2965 = vadd.f32 %v2831, %v2964
        %v2966 = vpop.f32.mrb[0].mxu0
        %2967 = vmatprep.mubr.f32.mxu0 0.0
        %2968 = vmatmul.mubr.f32.gmra.mrb[0].mxu0 %v2808
        %v2969 = vpop.f32.mrb[0].mxu0
        %v2970 = vadd.f32 %v2831, %v2969
        %v2971 = vpop.f32.mrb[0].mxu0
        %2972 = vmatprep.mubr.f32.mxu0 0.0
        %2973 = vmatmul.mubr.f32.gmra.mrb[0].mxu0 %v2809
        %v2974 = vpop.f32.mrb[0].mxu0
        %v2975 = vadd.f32 %v2831, %v2974
        %v2976 = vpop.f32.mrb[0].mxu0
        %2977 = vdwg.mxu0
        %v2978 = vmax.f32 %v2900, 0.0
        %v2979 = vmax.f32 %v2905, 0.0
        %v2980 = vmax.f32 %v2910, 0.0
        %v2981 = vmax.f32 %v2915, 0.0
        %v2982 = vmax.f32 %v2920, 0.0
        %v2983 = vmax.f32 %v2925, 0.0
        %v2984 = vmax.f32 %v2930, 0.0
        %v2985 = vmax.f32 %v2935, 0.0
        %v2986 = vmax.f32 %v2940, 0.0
        %v2987 = vmax.f32 %v2945, 0.0
        %v2988 = vmax.f32 %v2950, 0.0
        %v2989 = vmax.f32 %v2955, 0.0
        %v2990 = vmax.f32 %v2960, 0.0
        %v2991 = vmax.f32 %v2965, 0.0
        %v2992 = vmax.f32 %v2970, 0.0
        %v2993 = vmax.f32 %v2975, 0.0
        %v2994 = vld [vmem:[%s1520] sm:$0xff]
        %v2995 = vld [vmem:[%s1520 + $0x8] sm:$0xff]
        %v2996 = vld [vmem:[%s1520 + $0x10] sm:$0xff]
        %v2997 = vld [vmem:[%s1520 + $0x18] sm:$0xff]
        %v2998 = vld [vmem:[%s1520 + $0x20] sm:$0xff]
        %v2999 = vld [vmem:[%s1520 + $0x28] sm:$0xff]
        %v3000 = vld [vmem:[%s1520 + $0x30] sm:$0xff]
        %v3001 = vld [vmem:[%s1520 + $0x38] sm:$0xff]
        %v3002 = vld [vmem:[%s1520 + $0x40] sm:$0xff]
        %v3003 = vld [vmem:[%s1520 + $0x48] sm:$0xff]
        %v3004 = vld [vmem:[%s1520 + $0x50] sm:$0xff]
        %v3005 = vld [vmem:[%s1520 + $0x58] sm:$0xff]
        %v3006 = vld [vmem:[%s1520 + $0x60] sm:$0xff]
        %v3007 = vld [vmem:[%s1520 + $0x68] sm:$0xff]
        %v3008 = vld [vmem:[%s1520 + $0x70] sm:$0xff]
        %v3009 = vld [vmem:[%s1520 + $0x78] sm:$0xff]
        %v3010 = vld [vmem:[%s1537] sm:$0x1]
        %v3012 = vlaneseq
        %v3013 = vshrl.u32 %v3012, 7
        %v3014 = vsub.s32 0, %v3013
        %v3015 = vrot.slane %v3010, %v3014
        %3017 = vmatprep.subr.mxu0 0.0
        %3018 = vmatpush1.msra.mxu0 %v2994
        %3019 = vmatprep.subr.mxu0 0.0
        %3020 = vmatpush1.msra.mxu0 %v2995
        %3021 = vmatprep.subr.mxu0 0.0
        %3022 = vmatpush1.msra.mxu0 %v2996
        %3023 = vmatprep.subr.mxu0 0.0
        %3024 = vmatpush1.msra.mxu0 %v2997
        %3025 = vmatprep.subr.mxu0 0.0
        %3026 = vmatpush1.msra.mxu0 %v2998
        %3027 = vmatprep.subr.mxu0 0.0
        %3028 = vmatpush1.msra.mxu0 %v2999
        %3029 = vmatprep.subr.mxu0 0.0
        %3030 = vmatpush1.msra.mxu0 %v3000
        %3031 = vmatprep.subr.mxu0 0.0
        %3032 = vmatpush1.msra.mxu0 %v3001
        %3033 = vmatprep.subr.mxu0 0.0
        %3034 = vmatpush1.msra.mxu0 %v3002
        %3035 = vmatprep.subr.mxu0 0.0
        %3036 = vmatpush1.msra.mxu0 %v3003
        %3037 = vmatprep.subr.mxu0 0.0
        %3038 = vmatpush1.msra.mxu0 %v3004
        %3039 = vmatprep.subr.mxu0 0.0
        %3040 = vmatpush1.msra.mxu0 %v3005
        %3041 = vmatprep.subr.mxu0 0.0
        %3042 = vmatpush1.msra.mxu0 %v3006
        %3043 = vmatprep.subr.mxu0 0.0
        %3044 = vmatpush1.msra.mxu0 %v3007
        %3045 = vmatprep.subr.mxu0 0.0
        %3046 = vmatpush1.msra.mxu0 %v3008
        %3047 = vmatprep.subr.mxu0 0.0
        %3048 = vmatpush1.msra.mxu0 %v3009
        %3049 = vmatprep.subr.mxu0 0.0
        %3050 = vmatpush1.msra.mxu0 0.0
        %3051 = vmatprep.subr.mxu0 0.0
        %3052 = vmatpush1.msra.mxu0 0.0
        %3053 = vmatprep.subr.mxu0 0.0
        %3054 = vmatpush1.msra.mxu0 0.0
        %3055 = vmatprep.subr.mxu0 0.0
        %3056 = vmatpush1.msra.mxu0 0.0
        %3057 = vmatprep.subr.mxu0 0.0
        %3058 = vmatpush1.msra.mxu0 0.0
        %3059 = vmatprep.subr.mxu0 0.0
        %3060 = vmatpush1.msra.mxu0 0.0
        %3061 = vmatprep.subr.mxu0 0.0
        %3062 = vmatpush1.msra.mxu0 0.0
        %3063 = vmatprep.subr.mxu0 0.0
        %3064 = vmatpush1.msra.mxu0 0.0
        %3065 = vmatprep.subr.mxu0 0.0
        %3066 = vmatpush1.msra.mxu0 0.0
        %3067 = vmatprep.subr.mxu0 0.0
        %3068 = vmatpush1.msra.mxu0 0.0
        %3069 = vmatprep.subr.mxu0 0.0
        %3070 = vmatpush1.msra.mxu0 0.0
        %3071 = vmatprep.subr.mxu0 0.0
        %3072 = vmatpush1.msra.mxu0 0.0
        %3073 = vmatprep.subr.mxu0 0.0
        %3074 = vmatpush1.msra.mxu0 0.0
        %3075 = vmatprep.subr.mxu0 0.0
        %3076 = vmatpush1.msra.mxu0 0.0
        %3077 = vmatprep.subr.mxu0 0.0
        %3078 = vmatpush1.msra.mxu0 0.0
        %3079 = vmatprep.subr.mxu0 0.0
        %3080 = vmatpush1.msra.mxu0 0.0
        %3081 = vmatprep.mubr.f32.mxu0 0.0
        %3082 = vmatmul.mubr.f32.gmra.mrb[0].mxu0 %v2978
        %v3083 = vpop.f32.mrb[0].mxu0
        %v3084 = vadd.f32 %v3015, %v3083
        %v3085 = vpop.f32.mrb[0].mxu0
        %3086 = vmatprep.mubr.f32.mxu0 0.0
        %3087 = vmatmul.mubr.f32.gmra.mrb[0].mxu0 %v2979
        %v3088 = vpop.f32.mrb[0].mxu0
        %v3089 = vadd.f32 %v3015, %v3088
        %v3090 = vpop.f32.mrb[0].mxu0
        %3091 = vmatprep.mubr.f32.mxu0 0.0
        %3092 = vmatmul.mubr.f32.gmra.mrb[0].mxu0 %v2980
        %v3093 = vpop.f32.mrb[0].mxu0
        %v3094 = vadd.f32 %v3015, %v3093
        %v3095 = vpop.f32.mrb[0].mxu0
        %3096 = vmatprep.mubr.f32.mxu0 0.0
        %3097 = vmatmul.mubr.f32.gmra.mrb[0].mxu0 %v2981
        %v3098 = vpop.f32.mrb[0].mxu0
        %v3099 = vadd.f32 %v3015, %v3098
        %v3100 = vpop.f32.mrb[0].mxu0
        %3101 = vmatprep.mubr.f32.mxu0 0.0
        %3102 = vmatmul.mubr.f32.gmra.mrb[0].mxu0 %v2982
        %v3103 = vpop.f32.mrb[0].mxu0
        %v3104 = vadd.f32 %v3015, %v3103
        %v3105 = vpop.f32.mrb[0].mxu0
        %3106 = vmatprep.mubr.f32.mxu0 0.0
        %3107 = vmatmul.mubr.f32.gmra.mrb[0].mxu0 %v2983
        %v3108 = vpop.f32.mrb[0].mxu0
        %v3109 = vadd.f32 %v3015, %v3108
        %v3110 = vpop.f32.mrb[0].mxu0
        %3111 = vmatprep.mubr.f32.mxu0 0.0
        %3112 = vmatmul.mubr.f32.gmra.mrb[0].mxu0 %v2984
        %v3113 = vpop.f32.mrb[0].mxu0
        %v3114 = vadd.f32 %v3015, %v3113
        %v3115 = vpop.f32.mrb[0].mxu0
        %3116 = vmatprep.mubr.f32.mxu0 0.0
        %3117 = vmatmul.mubr.f32.gmra.mrb[0].mxu0 %v2985
        %v3118 = vpop.f32.mrb[0].mxu0
        %v3119 = vadd.f32 %v3015, %v3118
        %v3120 = vpop.f32.mrb[0].mxu0
        %3121 = vmatprep.mubr.f32.mxu0 0.0
        %3122 = vmatmul.mubr.f32.gmra.mrb[0].mxu0 %v2986
        %v3123 = vpop.f32.mrb[0].mxu0
        %v3124 = vadd.f32 %v3015, %v3123
        %v3125 = vpop.f32.mrb[0].mxu0
        %3126 = vmatprep.mubr.f32.mxu0 0.0
        %3127 = vmatmul.mubr.f32.gmra.mrb[0].mxu0 %v2987
        %v3128 = vpop.f32.mrb[0].mxu0
        %v3129 = vadd.f32 %v3015, %v3128
        %v3130 = vpop.f32.mrb[0].mxu0
        %3131 = vmatprep.mubr.f32.mxu0 0.0
        %3132 = vmatmul.mubr.f32.gmra.mrb[0].mxu0 %v2988
        %v3133 = vpop.f32.mrb[0].mxu0
        %v3134 = vadd.f32 %v3015, %v3133
        %v3135 = vpop.f32.mrb[0].mxu0
        %3136 = vmatprep.mubr.f32.mxu0 0.0
        %3137 = vmatmul.mubr.f32.gmra.mrb[0].mxu0 %v2989
        %v3138 = vpop.f32.mrb[0].mxu0
        %v3139 = vadd.f32 %v3015, %v3138
        %v3140 = vpop.f32.mrb[0].mxu0
        %3141 = vmatprep.mubr.f32.mxu0 0.0
        %3142 = vmatmul.mubr.f32.gmra.mrb[0].mxu0 %v2990
        %v3143 = vpop.f32.mrb[0].mxu0
        %v3144 = vadd.f32 %v3015, %v3143
        %v3145 = vpop.f32.mrb[0].mxu0
        %3146 = vmatprep.mubr.f32.mxu0 0.0
        %3147 = vmatmul.mubr.f32.gmra.mrb[0].mxu0 %v2991
        %v3148 = vpop.f32.mrb[0].mxu0
        %v3149 = vadd.f32 %v3015, %v3148
        %v3150 = vpop.f32.mrb[0].mxu0
        %3151 = vmatprep.mubr.f32.mxu0 0.0
        %3152 = vmatmul.mubr.f32.gmra.mrb[0].mxu0 %v2992
        %v3153 = vpop.f32.mrb[0].mxu0
        %v3154 = vadd.f32 %v3015, %v3153
        %v3155 = vpop.f32.mrb[0].mxu0
        %3156 = vmatprep.mubr.f32.mxu0 0.0
        %3157 = vmatmul.mubr.f32.gmra.mrb[0].mxu0 %v2993
        %v3158 = vpop.f32.mrb[0].mxu0
        %v3159 = vadd.f32 %v3015, %v3158
        %v3160 = vpop.f32.mrb[0].mxu0
        %3161 = vdwg.mxu0
        %3162 = vst [vmem:[%s217 + $0x80] sm:$0xff] %v3084
        %3163 = vst [vmem:[%s217 + $0x88] sm:$0xff] %v3089
        %3164 = vst [vmem:[%s217 + $0x90] sm:$0xff] %v3094
        %3165 = vst [vmem:[%s217 + $0x98] sm:$0xff] %v3099
        %3166 = vst [vmem:[%s217 + $0xa0] sm:$0xff] %v3104
        %3167 = vst [vmem:[%s217 + $0xa8] sm:$0xff] %v3109
        %3168 = vst [vmem:[%s217 + $0xb0] sm:$0xff] %v3114
        %3169 = vst [vmem:[%s217 + $0xb8] sm:$0xff] %v3119
        %3170 = vst [vmem:[%s217 + $0xc0] sm:$0xff] %v3124
        %3171 = vst [vmem:[%s217 + $0xc8] sm:$0xff] %v3129
        %3172 = vst [vmem:[%s217 + $0xd0] sm:$0xff] %v3134
        %3173 = vst [vmem:[%s217 + $0xd8] sm:$0xff] %v3139
        %3174 = vst [vmem:[%s217 + $0xe0] sm:$0xff] %v3144
        %3175 = vst [vmem:[%s217 + $0xe8] sm:$0xff] %v3149
        %3176 = vst [vmem:[%s217 + $0xf0] sm:$0xff] %v3154
        %3177 = vst [vmem:[%s217 + $0xf8] sm:$0xff] %v3159
        %s3178 = sand.u32 %s97, 1
        %s3179 = scalar_lea.sflag [#allocation4], %s3178
        %s3180 = sand.u32 %s97, 1
        %s3181 = smul.addr %s3180, 256
        %s3182 = scalar_lea.vmem [#allocation8], %s3181
        // Predicated region
        $region45: #{tpu_custom_call.1} parent=31 // pred_check
          %p3183 = pneg %p107
        $region46: #{tpu_custom_call.1} parent=31 // pred_check_branch
          %3185 = sbr.rel (%p3183) target = $region48
        $region47: #{tpu_custom_call.1} parent=31 // pred_region
          %s3186 = smul.u32 32, %s21
          %s3188 = ssub.s32 4096, 4096
          %3189 = vsyncadd %s3179, %s3188
          %s3190 = smul.addr %s3186, 128
          %s3191 = scalar_lea.hbm %s3, %s3190
          %s3192 = sshll.u32 %s3182, 4
          %s3193 = int_to_ptr.vmem [resolvable:$true] %s3192
          %3198 = dma.vmem_to_hbm [thread:$0]  %s3193, 4096, %s3191, %s3179, 128, 128, 8
        $region48: #{tpu_custom_call.1} parent=31 // pred_fallthru
          _
      $region32: #{tpu_custom_call.1} parent=5 // pred_fallthru
        _
      %p3199 = scmp.le.s32.totalorder 2, %s16
      // Predicated region
      $region49: #{tpu_custom_call.1} parent=5 // pred_check
        %p3200 = pneg %p3199
      $region50: #{tpu_custom_call.1} parent=5 // pred_check_branch
        %3202 = sbr.rel (%p3200) target = $region52
      $region51: #{tpu_custom_call.1} parent=5 // pred_region
        %s3203 = ssub.s32 %s16, 2
        // Predicated region
        $region53: #{tpu_custom_call.1} parent=51 // pred_check
          %p3204 = pneg %p113
        $region54: #{tpu_custom_call.1} parent=51 // pred_check_branch
          %3206 = sbr.rel (%p3204) target = $region56
        $region55: #{tpu_custom_call.1} parent=51 // pred_region
          %s3207 = sand.u32 %s98, 1
          %s3208 = scalar_lea.sflag [#allocation4], %s3207
          %s3209 = sand.u32 %s98, 1
          %s3210 = smul.addr %s3209, 256
          %s3211 = scalar_lea.vmem [#allocation8], %s3210
          %3212 = dma.done %s3208, 4096
        $region56: #{tpu_custom_call.1} parent=51 // pred_fallthru
          _
      $region52: #{tpu_custom_call.1} parent=5 // pred_fallthru
        _
    $region6: #{tpu_custom_call.1} parent=1 // loop_footer
      %s20 = sadd.s32 1, %s16
    $region7: #{tpu_custom_call.1} parent=1 // loop_footer_branch
      %15 = sbr.rel target = $region3
    $region8: #{tpu_custom_call.1} parent=1 // loop_exit
      _
    %3213 = vsyncpa [#allocation3], 1
    %s3214 = scalar_lea.sflag [#allocation3], 1
    %3215 = vsyncpa %s3214, 1
    %3216 = vsyncpa [#allocation6], 1
    %3217 = vsyncpa [#allocation4], 1
    %s3218 = scalar_lea.sflag [#allocation4], 1
    %3219 = vsyncpa %s3218, 1

</llo_original>
